<compile_context>
chip_gen: v7x
topology: tpu7x:2x2x1
jax: 0.10.0
libtpu: 0.0.40
codegen_flags: <defaults>
</compile_context>

<pallas_src>
import functools

import numpy as np
import jax
import jax.numpy as jnp
from jax import lax
from jax.experimental import pallas as pl
from jax.experimental.pallas import tpu as pltpu


def _round_up(x, m):
    return (x + m - 1) // m * m


# ----------------------------- Pallas kernel -------------------------------


def _gdml_kernel(xs_ref, train_ref, tc_ref, fsx_ref, es_ref,
                 xs_sq_sc, es_acc, *, sig, out_mm_dtype):
    """One grid step: (block_m, D_pad) queries x (block_t, D_pad) training rows.

    Grid is (split, m, t) with t (the T reduction) innermost.

    xs_ref    : (Bm, D)     raw query descriptors (resident per m-block)
    train_ref : (2, Bt, D)  [0] = xs_train rows, [1] = Jx_alphas rows (raw, f32)
    tc_ref    : (2, Bt)     [0] = ||xt||^2, [1] = xt . ja   (per training row)
    fsx_ref   : (Bm, D)     accumulates F1 - F2 (un-scaled Fs_x), resident over t
    es_ref    : (Bm, 1)     energy accumulator output (written on last t step)
    xs_sq_sc  : (Bm, 1)     VMEM scratch: ||xs||^2 (t-invariant, filled at t==0)
    es_acc    : (Bm, 1)     VMEM scratch accumulator for es
    """
    q = float(np.sqrt(5.0) / sig)
    k0 = 5.0 / (3.0 * sig * sig)

    t = pl.program_id(2)
    nt = pl.num_programs(2)

    xs = xs_ref[...]                                   # (Bm, D) f32, raw

    @pl.when(t == 0)
    def _():
        fsx_ref[...] = jnp.zeros_like(fsx_ref)
        es_acc[...] = jnp.zeros_like(es_acc)
        # loop-invariant in t: raw squared norm of each query descriptor
        xs_sq_sc[...] = jnp.sum(xs * xs, axis=-1, keepdims=True)

    xt = train_ref[0]                                  # (Bt, D) f32, raw
    ja = train_ref[1]                                  # (Bt, D) f32, raw
    tcv = tc_ref[...]                                  # (2, Bt)
    xt_sq = tcv[0:1, :]                                # (1, Bt)  ||xt||^2
    ct = tcv[1:2, :]                                   # (1, Bt)  xt . ja

    dn = (((1,), (1,)), ((), ()))                      # contract last dims: A @ B.T

    # Distances via norm expansion, q^2 folded into the (Bm, Bt) result.
    # gram stays f32: cancellation-sensitive where x_dists is small.
    gram = lax.dot_general(xs, xt, dn, preferred_element_type=jnp.float32)   # (Bm, Bt)
    r2 = jnp.maximum(xs_sq_sc[...] + xt_sq - 2.0 * gram, 0.0)
    x_dists = q * jnp.sqrt(r2)                                                # (Bm, Bt)
    exp_xs = k0 * jnp.exp(-x_dists)                                           # (Bm, Bt)

    # dotr[m,t] = sum_d (xs[m,d] - xt[t,d]) * ja[t,d]   (f32; q folded downstream)
    dotr = (lax.dot_general(xs, ja, dn, preferred_element_type=jnp.float32)
            - ct)                                                             # (Bm, Bt)

    exp1 = exp_xs * (1.0 + x_dists)                                           # (Bm, Bt)
    wq = (q * q) * (exp_xs * dotr)                                            # (Bm, Bt)

    # Output-side matmuls: bf16 MXU operands (f32 accumulation) by default.
    xt_c = xt.astype(out_mm_dtype)
    ja_c = ja.astype(out_mm_dtype)
    # F1[m,:] = sum_t wq[m,t] * (xs[m,:] - xt[t,:])
    f1 = (jnp.sum(wq, axis=-1, keepdims=True) * xs
          - jnp.dot(wq.astype(out_mm_dtype), xt_c,
                    preferred_element_type=jnp.float32))                      # (Bm, D)
    # F2 = exp_xs_1_x_dists @ Jx_alphas
    f2 = jnp.dot(exp1.astype(out_mm_dtype), ja_c,
                 preferred_element_type=jnp.float32)                          # (Bm, D)

    fsx_ref[...] += f1 - f2
    # Es_raw contribution: sum_t exp1 * dot / q == sum_t exp1 * dotr
    es_acc[...] += jnp.sum(exp1 * dotr, axis=-1, keepdims=True)

    @pl.when(t == nt - 1)
    def _():
        es_ref[...] = es_acc[...]


def _max_block_t_for_vmem(D_pad, block_m, budget_bytes=28 * 1024 * 1024):
    """Largest block_t (power-of-two multiple of 128) whose working set fits VMEM budget."""
    bt = 1024
    while bt > 128:
        stream = 2 * (2 * bt * D_pad * 4 + 2 * bt * 4)        # train + tconst, double-buffered
        resident = 2 * 2 * block_m * D_pad * 4                # xs input + fsx output (dbuf)
        temps = (2 * bt * D_pad * 2                           # bf16 casts of xt / ja
                 + 10 * block_m * bt * 4                      # (Bm, Bt) temporaries
                 + 4 * block_m * D_pad * 4)                   # f1 / f2 / partials
        if stream + resident + temps <= budget_bytes:
            break
        bt //= 2
    return bt


def _gdml_core(xs, xs_train, Jx_alphas, *, sig, block_m=128, block_t=512,
               out_mm_dtype=jnp.bfloat16):
    """Hot path on TPU: returns (Fs_x_unscaled (M, D), Es_raw (M, 1))."""
    M, D = xs.shape
    T, D2 = xs_train.shape
    assert D == D2 and Jx_alphas.shape == (T, D)

    f32 = jnp.float32

    # Lane-dense / MXU-friendly padding.  Zero-padded descriptor columns and zero
    # training rows (ja == 0 => dotr == 0 => wq == 0) contribute exactly 0.
    D_pad = _round_up(D, 128)
    M_pad = _round_up(M, block_m)                 # full MXU row blocks, even for small M
    T_pad = _round_up(T, 128)                     # no over-padding to block_t

    # block_t: largest multiple of 128 <= min(requested, VMEM cap, T_pad) dividing T_pad.
    desired = min(block_t, _max_block_t_for_vmem(D_pad, block_m), T_pad)
    desired = max(128, desired - desired % 128)
    eff_bt = 128
    for cand in range(desired, 127, -128):
        if T_pad % cand == 0:
            eff_bt = cand
            break
    block_t = eff_bt
    t_blocks = T_pad // block_t
    m_blocks = M_pad // block_m

    # Small-batch core split: if only one m block, split the T reduction over a
    # leading "parallel" grid axis (keeps v7x's 2nd TensorCore busy); partial
    # outputs are summed with one cheap XLA add below.
    num_splits = 2 if (m_blocks == 1 and t_blocks >= 2 and t_blocks % 2 == 0) else 1
    tps = t_blocks // num_splits

    xs_p = jnp.zeros((M_pad, D_pad), f32).at[:M, :D].set(xs.astype(f32))
    train = jnp.zeros((2, T_pad, D_pad), f32)
    train = train.at[0, :T, :D].set(xs_train.astype(f32))
    train = train.at[1, :T, :D].set(Jx_alphas.astype(f32))

    # Per-training-row constants (raw, no q factors), packed into one stream.
    xt_sq = jnp.sum(train[0] * train[0], axis=-1)          # (T_pad,)
    ct = jnp.sum(train[0] * train[1], axis=-1)              # (T_pad,)
    tconst = jnp.stack([xt_sq, ct], axis=0)                 # (2, T_pad)

    kernel = functools.partial(_gdml_kernel, sig=sig, out_mm_dtype=out_mm_dtype)
    fsx, es = pl.pallas_call(
        kernel,
        out_shape=(
            jax.ShapeDtypeStruct((num_splits, M_pad, D_pad), f32),
            jax.ShapeDtypeStruct((num_splits, M_pad, 1), f32),
        ),
        grid_spec=pltpu.PrefetchScalarGridSpec(
            num_scalar_prefetch=0,
            grid=(num_splits, m_blocks, tps),                # reduction axis (t) last
            in_specs=[
                pl.BlockSpec((block_m, D_pad), lambda s, m, t: (m, 0)),
                pl.BlockSpec((2, block_t, D_pad),
                             lambda s, m, t: (0, s * tps + t, 0)),
                pl.BlockSpec((2, block_t),
                             lambda s, m, t: (0, s * tps + t)),
            ],
            out_specs=[
                pl.BlockSpec((None, block_m, D_pad), lambda s, m, t: (s, m, 0)),
                pl.BlockSpec((None, block_m, 1), lambda s, m, t: (s, m, 0)),
            ],
            scratch_shapes=[
                pltpu.VMEM((block_m, 1), jnp.float32),       # ||xs||^2 (t-invariant)
                pltpu.VMEM((block_m, 1), jnp.float32),       # es accumulator
            ],
        ),
        compiler_params=pltpu.CompilerParams(
            dimension_semantics=("parallel", "parallel", "arbitrary"),
            vmem_limit_bytes=40 * 1024 * 1024,               # <= v7x's 64 MiB physical VMEM
        ),
    )(xs_p, train, tconst)

    fsx = jnp.sum(fsx, axis=0)                               # combine core-split partials
    es = jnp.sum(es, axis=0)
    return fsx[:M, :D], es[:M, :1]


# ------------------------------- full forward ------------------------------


def gdml_forward(Rs, xs_train, Jx_alphas, *, sig, c, std,
                 descriptor="coulomb_matrix", block_m=128, block_t=512,
                 out_mm_dtype=jnp.bfloat16):
    """JAX/Pallas equivalent of GDMLTorchPredict._forward (lat_and_inv=None)."""
    M, N, _ = Rs.shape

    Rs = Rs.astype(jnp.float32)
    diffs = Rs[:, :, None, :] - Rs[:, None, :, :]                 # (M, N, N, 3)
    dists = jnp.sqrt(jnp.sum(diffs * diffs, axis=-1))             # (M, N, N)
    dists = jnp.where(jnp.eye(N, dtype=bool)[None], jnp.inf, dists)

    il, jl = np.tril_indices(N, k=-1)
    if descriptor == "coulomb_matrix":
        xs = 1.0 / dists[:, il, jl]                               # (M, D)
    elif descriptor == "exp_decay_matrix":
        exp_dists = jnp.exp(-dists)
        xs = exp_dists[:, il, jl]
    else:
        raise ValueError(descriptor)

    fsx_raw, es_raw = _gdml_core(xs, xs_train, Jx_alphas, sig=sig,
                                 block_m=block_m, block_t=block_t,
                                 out_mm_dtype=out_mm_dtype)
    Fs_x = fsx_raw * std                                          # (M, D)

    # expand_tril: symmetric matrix with zero diagonal
    Fs_full = jnp.zeros((M, N, N), Fs_x.dtype)
    Fs_full = Fs_full.at[:, il, jl].set(Fs_x)
    Fs_full = Fs_full.at[:, jl, il].set(Fs_x)

    if descriptor == "coulomb_matrix":
        Fs = jnp.sum((Fs_full / dists ** 3)[..., None] * diffs, axis=1)
    else:
        Fs = jnp.sum((Fs_full * exp_dists / dists)[..., None] * diffs, axis=1)

    # Kernel accumulates sum(exp1 * dotr) == sum(exp1 * dot) / q, so no 1/q here.
    Es = c + es_raw[:, 0] * std                                   # (M,)
    return Es, Fs


# ------------------------- pure-JAX reference (check) -----------------------


def gdml_reference(Rs, xs_train, Jx_alphas, *, sig, c, std,
                   descriptor="coulomb_matrix"):
    M, N, _ = Rs.shape
    q = np.sqrt(5.0) / sig
    Rs = Rs.astype(jnp.float32)
    diffs = Rs[:, :, None, :] - Rs[:, None, :, :]
    dists = jnp.sqrt(jnp.sum(diffs * diffs, axis=-1))
    dists = jnp.where(jnp.eye(N, dtype=bool)[None], jnp.inf, dists)
    il, jl = np.tril_indices(N, k=-1)
    if descriptor == "coulomb_matrix":
        xs = 1.0 / dists[:, il, jl]
    else:
        exp_dists = jnp.exp(-dists)
        xs = exp_dists[:, il, jl]
    x_diffs = (q * xs)[:, None, :] - q * xs_train[None]
    x_dists = jnp.sqrt(jnp.sum(x_diffs * x_diffs, axis=-1))
    exp_xs = 5.0 / (3.0 * sig ** 2) * jnp.exp(-x_dists)
    dot = jnp.sum(x_diffs * Jx_alphas[None], axis=-1)
    exp1 = exp_xs * (1.0 + x_dists)
    F1 = jnp.sum((exp_xs * dot)[..., None] * x_diffs, axis=1)
    F2 = exp1 @ Jx_alphas
    Fs_x = (F1 - F2) * std
    Fs_full = jnp.zeros((M, N, N), Fs_x.dtype)
    Fs_full = Fs_full.at[:, il, jl].set(Fs_x).at[:, jl, il].set(Fs_x)
    if descriptor == "coulomb_matrix":
        Fs = jnp.sum((Fs_full / dists ** 3)[..., None] * diffs, axis=1)
    else:
        Fs = jnp.sum((Fs_full * exp_dists / dists)[..., None] * diffs, axis=1)
    Es = c + (jnp.sum(exp1 * dot, axis=-1) / q) * std
    return Es, Fs


# ----------------------------------- main -----------------------------------

if __name__ == "__main__":
    key = jax.random.PRNGKey(0)
    M, N = 4, 9                       # 4 molecules of 9 atoms
    D = N * (N - 1) // 2              # descriptor size = 36
    T = 512                           # n_train * n_perms (perm-expanded rows)
    sig, c, std = 10.0, -1000.0, 1.0  # deterministic synthetic model scalars

    k1, k2, k3 = jax.random.split(key, 3)

    # atoms on a jittered 3x3 grid so pair distances stay well away from zero
    g = jnp.stack(jnp.meshgrid(jnp.arange(3.0), jnp.arange(3.0), indexing="ij"),
                  axis=-1).reshape(N, 2)
    base = jnp.concatenate([g * 1.5, jnp.zeros((N, 1))], axis=-1)     # (N, 3)
    Rs = base[None] + 0.1 * jax.random.normal(k1, (M, N, 3), jnp.float32)

    # synthetic perm-expanded training descriptors (inverse-distance-like, >0)
    xs_train = jax.random.uniform(k2, (T, D), jnp.float32, minval=0.1, maxval=1.0)
    Jx_alphas = 0.01 * jax.random.normal(k3, (T, D), jnp.float32)

    Es_ref, Fs_ref = gdml_reference(Rs, xs_train, Jx_alphas, sig=sig, c=c, std=std)

    # (1) default fast path: bf16 operands on the output-side MXU matmuls.
    Es, Fs = jax.block_until_ready(
        gdml_forward(Rs, xs_train, Jx_alphas, sig=sig, c=c, std=std))
    assert Es.shape == (M,) and Fs.shape == (M, N, 3)
    assert bool(jnp.all(jnp.isfinite(Es))) and bool(jnp.all(jnp.isfinite(Fs)))
    assert jnp.allclose(Es - c, Es_ref - c, rtol=2e-3, atol=1e-5), "energy mismatch (bf16 path)"
    # forces tolerance loosened slightly: F1/F2 matmuls use bf16 MXU inputs
    assert jnp.allclose(Fs, Fs_ref, rtol=1e-2, atol=5e-5), "force mismatch (bf16 path)"

    # (2) all-f32 MXU path: tight check against the pure-JAX reference.
    Es32, Fs32 = jax.block_until_ready(
        gdml_forward(Rs, xs_train, Jx_alphas, sig=sig, c=c, std=std,
                     out_mm_dtype=jnp.float32))
    assert jnp.allclose(Es32 - c, Es_ref - c, rtol=2e-3, atol=1e-5), "energy mismatch (f32 path)"
    assert jnp.allclose(Fs32, Fs_ref, rtol=2e-3, atol=1e-5), "force mismatch (f32 path)"

    # (3) small-block config: multiple T blocks + T-reduction split over the
    #     leading "parallel" grid axis (v7x two-core path); tight f32 check.
    Es_s, Fs_s = jax.block_until_ready(
        gdml_forward(Rs, xs_train, Jx_alphas, sig=sig, c=c, std=std,
                     block_t=128, out_mm_dtype=jnp.float32))
    assert jnp.allclose(Es_s - c, Es_ref - c, rtol=2e-3, atol=1e-5), "energy mismatch (split path)"
    assert jnp.allclose(Fs_s, Fs_ref, rtol=2e-3, atol=1e-5), "force mismatch (split path)"

    print("KERNEL_OK")
</pallas_src>

<mosaic_0001>
module attributes {stable_mosaic.version = 11 : i64} {
  func.func @_gdml_kernel(%arg0: i32, %arg1: i32, %arg2: i32, %arg3: memref<128x128xf32, #tpu.memory_space<vmem>>, %arg4: memref<2x512x128xf32, #tpu.memory_space<vmem>>, %arg5: memref<2x512xf32, #tpu.memory_space<vmem>>, %arg6: memref<1x128x128xf32, #tpu.memory_space<vmem>>, %arg7: memref<1x128x1xf32, #tpu.memory_space<vmem>>, %arg8: memref<128x1xf32, #tpu.memory_space<vmem>>, %arg9: memref<128x1xf32, #tpu.memory_space<vmem>>) attributes {dimension_semantics = [#tpu.dimension_semantics<parallel>, #tpu.dimension_semantics<parallel>, #tpu.dimension_semantics<arbitrary>], iteration_bounds = array<i64: 1, 1, 1>, scalar_prefetch = 0 : i64, scratch_operands = 2 : i64, tpu.core_type = #tpu.core_type<tc>, window_params = [{transform_indices = @transform_0, window_bounds = array<i64: 128, 128>}, {transform_indices = @transform_1, window_bounds = array<i64: 2, 512, 128>}, {transform_indices = @transform_2, window_bounds = array<i64: 2, 512>}, {transform_indices = @transform_3, window_bounds = array<i64: 1, 128, 128>}, {transform_indices = @transform_4, window_bounds = array<i64: 1, 128, 1>}]} {
    %c0 = arith.constant 0 : index
    %c0_0 = arith.constant 0 : index
    %0 = vector.load %arg3[%c0, %c0_0] : memref<128x128xf32, #tpu.memory_space<vmem>>, vector<128x128xf32>
    %c0_i32 = arith.constant 0 : i32
    %1 = arith.cmpi eq, %arg2, %c0_i32 : i32
    %2 = arith.extui %1 : i1 to i32
    %c0_i32_1 = arith.constant 0 : i32
    %3 = arith.cmpi ne, %2, %c0_i32_1 : i32
    scf.if %3 {
      %cst_35 = arith.constant 0.000000e+00 : f32
      %65 = vector.broadcast %cst_35 : f32 to vector<128x128xf32>
      %c0_36 = arith.constant 0 : index
      %c0_37 = arith.constant 0 : index
      %c0_38 = arith.constant 0 : index
      %66 = vector.load %arg6[%c0_36, %c0_37, %c0_38] : memref<1x128x128xf32, #tpu.memory_space<vmem>>, vector<1x128x128xf32>
      %67 = vector.shape_cast %66 : vector<1x128x128xf32> to vector<128x128xf32>
      %68 = vector.shape_cast %65 : vector<128x128xf32> to vector<1x128x128xf32>
      tpu.vector_store %arg6[%c0_36, %c0_37, %c0_38], %68 {strides = array<i32>} : memref<1x128x128xf32, #tpu.memory_space<vmem>>, vector<1x128x128xf32>,
      %cst_39 = arith.constant 0.000000e+00 : f32
      %69 = vector.broadcast %cst_39 : f32 to vector<128x1xf32>
      %c0_40 = arith.constant 0 : index
      %c0_41 = arith.constant 0 : index
      %70 = vector.load %arg9[%c0_40, %c0_41] : memref<128x1xf32, #tpu.memory_space<vmem>>, vector<128x1xf32>
      tpu.vector_store %arg9[%c0_40, %c0_41], %69 {strides = array<i32>} : memref<128x1xf32, #tpu.memory_space<vmem>>, vector<128x1xf32>,
      %71 = arith.mulf %0, %0 : vector<128x128xf32>
      %cst_42 = arith.constant dense<0.000000e+00> : vector<128xf32>
      %72 = vector.multi_reduction <add>, %71, %cst_42 [1] : vector<128x128xf32> to vector<128xf32>
      %73 = vector.shape_cast %72 : vector<128xf32> to vector<128x1xf32>
      %c0_43 = arith.constant 0 : index
      %c0_44 = arith.constant 0 : index
      %74 = vector.load %arg8[%c0_43, %c0_44] : memref<128x1xf32, #tpu.memory_space<vmem>>, vector<128x1xf32>
      tpu.vector_store %arg8[%c0_43, %c0_44], %73 {strides = array<i32>} : memref<128x1xf32, #tpu.memory_space<vmem>>, vector<128x1xf32>,
    } else {
    }
    %c0_2 = arith.constant 0 : index
    %c0_3 = arith.constant 0 : index
    %c0_4 = arith.constant 0 : index
    %4 = vector.load %arg4[%c0_2, %c0_3, %c0_4] : memref<2x512x128xf32, #tpu.memory_space<vmem>>, vector<1x512x128xf32>
    %5 = vector.shape_cast %4 : vector<1x512x128xf32> to vector<512x128xf32>
    %c1 = arith.constant 1 : index
    %c0_5 = arith.constant 0 : index
    %c0_6 = arith.constant 0 : index
    %6 = vector.load %arg4[%c1, %c0_5, %c0_6] : memref<2x512x128xf32, #tpu.memory_space<vmem>>, vector<1x512x128xf32>
    %7 = vector.shape_cast %6 : vector<1x512x128xf32> to vector<512x128xf32>
    %c0_7 = arith.constant 0 : index
    %c0_8 = arith.constant 0 : index
    %8 = vector.load %arg5[%c0_7, %c0_8] : memref<2x512xf32, #tpu.memory_space<vmem>>, vector<2x512xf32>
    %9 = vector.extract_strided_slice %8 {offsets = [0, 0], sizes = [1, 512], strides = [1, 1]} : vector<2x512xf32> to vector<1x512xf32>
    %10 = vector.extract_strided_slice %8 {offsets = [1, 0], sizes = [1, 512], strides = [1, 1]} : vector<2x512xf32> to vector<1x512xf32>
    %cst = arith.constant dense<0.000000e+00> : vector<128x512xf32>
    %11 = tpu.matmul %0, %5, %cst {dimension_numbers = #tpu.dot_dimension_numbers<[1], [1], [0], [0], [0, 0, 1, 0], [], []>} : vector<128x128xf32>, vector<512x128xf32>, vector<128x512xf32> -> vector<128x512xf32>
    %c0_9 = arith.constant 0 : index
    %c0_10 = arith.constant 0 : index
    %12 = vector.load %arg8[%c0_9, %c0_10] : memref<128x1xf32, #tpu.memory_space<vmem>>, vector<128x1xf32>
    %13 = vector.broadcast %12 : vector<128x1xf32> to vector<128x512xf32>
    %14 = vector.broadcast %9 : vector<1x512xf32> to vector<128x512xf32>
    %15 = arith.addf %13, %14 : vector<128x512xf32>
    %cst_11 = arith.constant 2.000000e+00 : f32
    %16 = vector.broadcast %cst_11 : f32 to vector<128x512xf32>
    %17 = arith.mulf %16, %11 : vector<128x512xf32>
    %18 = arith.subf %15, %17 : vector<128x512xf32>
    %cst_12 = arith.constant 0.000000e+00 : f32
    %19 = vector.broadcast %cst_12 : f32 to vector<128x512xf32>
    %20 = arith.maximumf %18, %19 : vector<128x512xf32>
    %21 = math.sqrt %20 : vector<128x512xf32>
    %cst_13 = arith.constant 0.223606795 : f32
    %22 = vector.broadcast %cst_13 : f32 to vector<128x512xf32>
    %23 = arith.mulf %22, %21 : vector<128x512xf32>
    %cst_14 = arith.constant 0.000000e+00 : f32
    %24 = vector.broadcast %cst_14 : f32 to vector<128x512xf32>
    %25 = arith.subf %24, %23 : vector<128x512xf32>
    %26 = math.exp %25 : vector<128x512xf32>
    %cst_15 = arith.constant 0.0166666675 : f32
    %27 = vector.broadcast %cst_15 : f32 to vector<128x512xf32>
    %28 = arith.mulf %27, %26 : vector<128x512xf32>
    %cst_16 = arith.constant dense<0.000000e+00> : vector<128x512xf32>
    %29 = tpu.matmul %0, %7, %cst_16 {dimension_numbers = #tpu.dot_dimension_numbers<[1], [1], [0], [0], [0, 0, 1, 0], [], []>} : vector<128x128xf32>, vector<512x128xf32>, vector<128x512xf32> -> vector<128x512xf32>
    %30 = vector.broadcast %10 : vector<1x512xf32> to vector<128x512xf32>
    %31 = arith.subf %29, %30 : vector<128x512xf32>
    %cst_17 = arith.constant 1.000000e+00 : f32
    %32 = vector.broadcast %cst_17 : f32 to vector<128x512xf32>
    %33 = arith.addf %32, %23 : vector<128x512xf32>
    %34 = arith.mulf %28, %33 : vector<128x512xf32>
    %35 = arith.mulf %28, %31 : vector<128x512xf32>
    %cst_18 = arith.constant 5.000000e-02 : f32
    %36 = vector.broadcast %cst_18 : f32 to vector<128x512xf32>
    %37 = arith.mulf %36, %35 : vector<128x512xf32>
    %38 = arith.truncf %5 : vector<512x128xf32> to vector<512x128xbf16>
    %39 = arith.truncf %7 : vector<512x128xf32> to vector<512x128xbf16>
    %cst_19 = arith.constant dense<0.000000e+00> : vector<128xf32>
    %40 = vector.multi_reduction <add>, %37, %cst_19 [1] : vector<128x512xf32> to vector<128xf32>
    %41 = vector.shape_cast %40 : vector<128xf32> to vector<128x1xf32>
    %42 = vector.broadcast %41 : vector<128x1xf32> to vector<128x128xf32>
    %43 = arith.mulf %42, %0 : vector<128x128xf32>
    %44 = arith.truncf %37 : vector<128x512xf32> to vector<128x512xbf16>
    %cst_20 = arith.constant dense<0.000000e+00> : vector<128x128xf32>
    %45 = tpu.matmul %44, %38, %cst_20 {dimension_numbers = #tpu.dot_dimension_numbers<[1], [0], [0], [1], [0, 0, 1, 1], [], []>} : vector<128x512xbf16>, vector<512x128xbf16>, vector<128x128xf32> -> vector<128x128xf32>
    %46 = arith.subf %43, %45 : vector<128x128xf32>
    %47 = arith.truncf %34 : vector<128x512xf32> to vector<128x512xbf16>
    %cst_21 = arith.constant dense<0.000000e+00> : vector<128x128xf32>
    %48 = tpu.matmul %47, %39, %cst_21 {dimension_numbers = #tpu.dot_dimension_numbers<[1], [0], [0], [1], [0, 0, 1, 1], [], []>} : vector<128x512xbf16>, vector<512x128xbf16>, vector<128x128xf32> -> vector<128x128xf32>
    %c0_22 = arith.constant 0 : index
    %c0_23 = arith.constant 0 : index
    %c0_24 = arith.constant 0 : index
    %49 = vector.load %arg6[%c0_22, %c0_23, %c0_24] : memref<1x128x128xf32, #tpu.memory_space<vmem>>, vector<1x128x128xf32>
    %50 = vector.shape_cast %49 : vector<1x128x128xf32> to vector<128x128xf32>
    %51 = arith.subf %46, %48 : vector<128x128xf32>
    %52 = arith.addf %50, %51 : vector<128x128xf32>
    %c0_25 = arith.constant 0 : index
    %c0_26 = arith.constant 0 : index
    %c0_27 = arith.constant 0 : index
    %53 = vector.load %arg6[%c0_25, %c0_26, %c0_27] : memref<1x128x128xf32, #tpu.memory_space<vmem>>, vector<1x128x128xf32>
    %54 = vector.shape_cast %53 : vector<1x128x128xf32> to vector<128x128xf32>
    %55 = vector.shape_cast %52 : vector<128x128xf32> to vector<1x128x128xf32>
    tpu.vector_store %arg6[%c0_25, %c0_26, %c0_27], %55 {strides = array<i32>} : memref<1x128x128xf32, #tpu.memory_space<vmem>>, vector<1x128x128xf32>,
    %c0_28 = arith.constant 0 : index
    %c0_29 = arith.constant 0 : index
    %56 = vector.load %arg9[%c0_28, %c0_29] : memref<128x1xf32, #tpu.memory_space<vmem>>, vector<128x1xf32>
    %57 = arith.mulf %34, %31 : vector<128x512xf32>
    %cst_30 = arith.constant dense<0.000000e+00> : vector<128xf32>
    %58 = vector.multi_reduction <add>, %57, %cst_30 [1] : vector<128x512xf32> to vector<128xf32>
    %59 = vector.shape_cast %58 : vector<128xf32> to vector<128x1xf32>
    %60 = arith.addf %56, %59 : vector<128x1xf32>
    %c0_31 = arith.constant 0 : index
    %c0_32 = arith.constant 0 : index
    %61 = vector.load %arg9[%c0_31, %c0_32] : memref<128x1xf32, #tpu.memory_space<vmem>>, vector<128x1xf32>
    tpu.vector_store %arg9[%c0_31, %c0_32], %60 {strides = array<i32>} : memref<128x1xf32, #tpu.memory_space<vmem>>, vector<128x1xf32>,
    %c0_i32_33 = arith.constant 0 : i32
    %62 = arith.cmpi eq, %arg2, %c0_i32_33 : i32
    %63 = arith.extui %62 : i1 to i32
    %c0_i32_34 = arith.constant 0 : i32
    %64 = arith.cmpi ne, %63, %c0_i32_34 : i32
    scf.if %64 {
      %c0_35 = arith.constant 0 : index
      %c0_36 = arith.constant 0 : index
      %65 = vector.load %arg9[%c0_35, %c0_36] : memref<128x1xf32, #tpu.memory_space<vmem>>, vector<128x1xf32>
      %c0_37 = arith.constant 0 : index
      %c0_38 = arith.constant 0 : index
      %c0_39 = arith.constant 0 : index
      %66 = vector.load %arg7[%c0_37, %c0_38, %c0_39] : memref<1x128x1xf32, #tpu.memory_space<vmem>>, vector<1x128x1xf32>
      %67 = vector.shape_cast %66 : vector<1x128x1xf32> to vector<128x1xf32>
      %68 = vector.shape_cast %65 : vector<128x1xf32> to vector<1x128x1xf32>
      tpu.vector_store %arg7[%c0_37, %c0_38, %c0_39], %68 {strides = array<i32>} : memref<1x128x1xf32, #tpu.memory_space<vmem>>, vector<1x128x1xf32>,
    } else {
    }
    return
  }
  func.func @transform_0(%arg0: i32, %arg1: i32, %arg2: i32) -> (i32, i32) {
    %c0_i32 = arith.constant 0 : i32
    %c0_i32_0 = arith.constant 0 : i32
    return %arg1, %c0_i32 : i32, i32
  }
  func.func @transform_1(%arg0: i32, %arg1: i32, %arg2: i32) -> (i32, i32, i32) {
    %c1_i32 = arith.constant 1 : i32
    %0 = arith.muli %arg0, %c1_i32 : i32
    %1 = arith.addi %0, %arg2 : i32
    %c0_i32 = arith.constant 0 : i32
    %c0_i32_0 = arith.constant 0 : i32
    %c0_i32_1 = arith.constant 0 : i32
    return %c0_i32, %1, %c0_i32_0 : i32, i32, i32
  }
  func.func @transform_2(%arg0: i32, %arg1: i32, %arg2: i32) -> (i32, i32) {
    %c1_i32 = arith.constant 1 : i32
    %0 = arith.muli %arg0, %c1_i32 : i32
    %1 = arith.addi %0, %arg2 : i32
    %c0_i32 = arith.constant 0 : i32
    %c0_i32_0 = arith.constant 0 : i32
    return %c0_i32, %1 : i32, i32
  }
  func.func @transform_3(%arg0: i32, %arg1: i32, %arg2: i32) -> (i32, i32, i32) {
    %c0_i32 = arith.constant 0 : i32
    %c0_i32_0 = arith.constant 0 : i32
    return %arg0, %arg1, %c0_i32 : i32, i32, i32
  }
  func.func @transform_4(%arg0: i32, %arg1: i32, %arg2: i32) -> (i32, i32, i32) {
    %c0_i32 = arith.constant 0 : i32
    %c0_i32_0 = arith.constant 0 : i32
    return %arg0, %arg1, %c0_i32 : i32, i32, i32
  }
}

</mosaic_0001>

<llo_original>
// kernel: tpu_custom_call.1
$region0: #{tpu_custom_call.1}
  #allocation0 [shape = 'u32[]', space=smem, size = 0x4, offset = 0x4, fixed_abs, tag = 'smem constant byte address 0x4 - core index']
  #allocation1 [shape = 'u32[144,128]{1,0:T(1,128)}', space=vmem, size = 0x12000, scoped, tag = 'internal scratch']
  #allocation2 [shape = 'f32[128,1]{1,0:T(8,128)}', space=vmem, size = 0x10000, scoped, tag = 'scratch operand']
  #allocation3 [shape = 'f32[128,1]{1,0:T(8,128)}', space=vmem, size = 0x10000, scoped, tag = 'scratch operand']
  %s0 = inlined_call_operand.hbm [shape: f32[128,128], index: 0, kind: input, shape index: {}]
  %s1 = inlined_call_operand.hbm [shape: f32[2,512,128], index: 1, kind: input, shape index: {}]
  %s2 = inlined_call_operand.hbm [shape: f32[2,512], index: 2, kind: input, shape index: {}]
  %s3 = inlined_call_operand.hbm [shape: f32[1,128,128], index: 3, kind: output, shape index: {0}]
  %s4 = inlined_call_operand.vmem [shape: f32[1,128,1], index: 4, kind: output, shape index: {1}]
  %5 = xla_tuple %s3, %s4
  %s6 = sld [smem:[#allocation0]]
  $region50: #{tpu_custom_call.1} parent=0
    _
  %s8 = ssub.s32 1, %s6
  %s9 = scalar_select 0, %s8, %s6
  $region1: #{tpu_custom_call.1} parent=0
    #allocation4 [shape = 'u8[65536]{0}', space=vmem, size = 0x10000, scoped, tag = 'input window, operand 0, single buffered']
    #allocation5 [shape = 's32[1]{0}', space=sflag, size = 0x4, scoped, tag = 'scoped memory for tpu_custom_call.1']
    #allocation6 [shape = 's32[1]{0}', space=sflag, size = 0x4, scoped, tag = 'scoped memory for tpu_custom_call.1']
    #allocation7 [shape = 'u8[524288]{0}', space=vmem, size = 0x80000, scoped, tag = 'input window, operand 1, single buffered']
    #allocation8 [shape = 's32[1]{0}', space=sflag, size = 0x4, scoped, tag = 'scoped memory for tpu_custom_call.1']
    #allocation9 [shape = 'u8[4096]{0}', space=vmem, size = 0x1000, scoped, tag = 'input window, operand 2, single buffered']
    #allocation10 [shape = 'u8[65536]{0}', space=vmem, size = 0x10000, scoped, tag = 'output window, operand 0, single buffered']
    %10 = vsyncpa [#allocation5], 0
    %11 = vsyncpa [#allocation8], 0
    %12 = vsyncpa [#allocation6], 0
    // Predicated region
    $region2: #{tpu_custom_call.1} parent=1 // pred_check
      _
    $region3: #{tpu_custom_call.1} parent=1 // pred_check_branch
      %14 = sbr.rel (0) target = $region5
    $region4: #{tpu_custom_call.1} parent=1 // pred_region
      %s16 = ssub.s32 2048, 2048
      %17 = vsyncadd [#allocation5], %s16
      %s18 = sshll.u32 [#allocation4], 4
      %s19 = int_to_ptr.vmem [resolvable:$true] %s18
      %24 = dma.hbm_to_vmem [thread:$0]  %s0, 2048, %s19, [#allocation5], 128, 128, 8
    $region5: #{tpu_custom_call.1} parent=1 // pred_fallthru
      _
    // Predicated region
    $region6: #{tpu_custom_call.1} parent=1 // pred_check
      _
    $region7: #{tpu_custom_call.1} parent=1 // pred_check_branch
      %26 = sbr.rel (0) target = $region9
    $region8: #{tpu_custom_call.1} parent=1 // pred_region
      %s27 = sadd.s32 0, 0
      %s28 = smul.u32 64, %s27
      %s30 = ssub.s32 16384, 16384
      %31 = vsyncadd [#allocation8], %s30
      %s32 = smul.addr %s28, 128
      %s33 = scalar_lea.hbm %s1, %s32
      %s34 = sshll.u32 [#allocation7], 4
      %s35 = int_to_ptr.vmem [resolvable:$true] %s34
      %40 = dma.hbm_to_vmem [thread:$0]  %s33, 16384, %s35, [#allocation8], 128, 128, 8
    $region9: #{tpu_custom_call.1} parent=1 // pred_fallthru
      _
    // Predicated region
    $region10: #{tpu_custom_call.1} parent=1 // pred_check
      _
    $region11: #{tpu_custom_call.1} parent=1 // pred_check_branch
      %42 = sbr.rel (0) target = $region13
    $region12: #{tpu_custom_call.1} parent=1 // pred_region
      %s43 = sadd.s32 0, 0
      %s44 = smul.u32 4, %s43
      %s46 = ssub.s32 128, 128
      %47 = vsyncadd [#allocation8], %s46
      %s48 = smul.addr %s44, 32
      %s49 = scalar_lea.hbm %s2, %s48
      %s51 = sshll.u32 [#allocation9], 4
      %s52 = int_to_ptr.vmem [resolvable:$true] %s51
      %54 = dma.hbm_to_vmem [thread:$0]  %s49, 128, %s52, [#allocation8]
    $region13: #{tpu_custom_call.1} parent=1 // pred_fallthru
      _
    // Predicated region
    $region14: #{tpu_custom_call.1} parent=1 // pred_check
      _
    $region15: #{tpu_custom_call.1} parent=1 // pred_check_branch
      %56 = sbr.rel (0) target = $region17
    $region16: #{tpu_custom_call.1} parent=1 // pred_region
      %57 = dma.done [#allocation5], 2048
    $region17: #{tpu_custom_call.1} parent=1 // pred_fallthru
      _
    // Predicated region
    $region18: #{tpu_custom_call.1} parent=1 // pred_check
      _
    $region19: #{tpu_custom_call.1} parent=1 // pred_check_branch
      %59 = sbr.rel (0) target = $region21
    $region20: #{tpu_custom_call.1} parent=1 // pred_region
      %60 = dma.done [#allocation8], 16384
    $region21: #{tpu_custom_call.1} parent=1 // pred_fallthru
      _
    // Predicated region
    $region22: #{tpu_custom_call.1} parent=1 // pred_check
      _
    $region23: #{tpu_custom_call.1} parent=1 // pred_check_branch
      %62 = sbr.rel (0) target = $region25
    $region24: #{tpu_custom_call.1} parent=1 // pred_region
      %63 = dma.done [#allocation8], 128
    $region25: #{tpu_custom_call.1} parent=1 // pred_fallthru
      _
    %s64 = sadd.s32 0, 0
    %s65 = smul.u32 64, %s64
    %s66 = sadd.s32 0, 0
    %s67 = smul.u32 4, %s66
    %v69 = vld [vmem:[#allocation4] sm:$0xff]
    %v70 = vld [vmem:[#allocation4 + $0x8] sm:$0xff]
    %v71 = vld [vmem:[#allocation4 + $0x10] sm:$0xff]
    %v72 = vld [vmem:[#allocation4 + $0x18] sm:$0xff]
    %v73 = vld [vmem:[#allocation4 + $0x20] sm:$0xff]
    %v74 = vld [vmem:[#allocation4 + $0x28] sm:$0xff]
    %v75 = vld [vmem:[#allocation4 + $0x30] sm:$0xff]
    %v76 = vld [vmem:[#allocation4 + $0x38] sm:$0xff]
    %v77 = vld [vmem:[#allocation4 + $0x40] sm:$0xff]
    %v78 = vld [vmem:[#allocation4 + $0x48] sm:$0xff]
    %v79 = vld [vmem:[#allocation4 + $0x50] sm:$0xff]
    %v80 = vld [vmem:[#allocation4 + $0x58] sm:$0xff]
    %v81 = vld [vmem:[#allocation4 + $0x60] sm:$0xff]
    %v82 = vld [vmem:[#allocation4 + $0x68] sm:$0xff]
    %v83 = vld [vmem:[#allocation4 + $0x70] sm:$0xff]
    %v84 = vld [vmem:[#allocation4 + $0x78] sm:$0xff]
    %p85 = scmp.eq.s32.totalorder 0, 0
    // Predicated region
    $region26: #{tpu_custom_call.1} parent=1 // pred_check
      %p86 = pneg %p85
    $region27: #{tpu_custom_call.1} parent=1 // pred_check_branch
      %88 = sbr.rel (%p86) target = $region29
    $region28: #{tpu_custom_call.1} parent=1 // pred_region
      %89 = vst [vmem:[#allocation10] sm:$0xff] 0.0
      %90 = vst [vmem:[#allocation10 + $0x8] sm:$0xff] 0.0
      %91 = vst [vmem:[#allocation10 + $0x10] sm:$0xff] 0.0
      %92 = vst [vmem:[#allocation10 + $0x18] sm:$0xff] 0.0
      %93 = vst [vmem:[#allocation10 + $0x20] sm:$0xff] 0.0
      %94 = vst [vmem:[#allocation10 + $0x28] sm:$0xff] 0.0
      %95 = vst [vmem:[#allocation10 + $0x30] sm:$0xff] 0.0
      %96 = vst [vmem:[#allocation10 + $0x38] sm:$0xff] 0.0
      %97 = vst [vmem:[#allocation10 + $0x40] sm:$0xff] 0.0
      %98 = vst [vmem:[#allocation10 + $0x48] sm:$0xff] 0.0
      %99 = vst [vmem:[#allocation10 + $0x50] sm:$0xff] 0.0
      %100 = vst [vmem:[#allocation10 + $0x58] sm:$0xff] 0.0
      %101 = vst [vmem:[#allocation10 + $0x60] sm:$0xff] 0.0
      %102 = vst [vmem:[#allocation10 + $0x68] sm:$0xff] 0.0
      %103 = vst [vmem:[#allocation10 + $0x70] sm:$0xff] 0.0
      %104 = vst [vmem:[#allocation10 + $0x78] sm:$0xff] 0.0
      %vm105 = vcmask 7168
      %106 = vst.msk [vmem:[#allocation3] sm:$0xff] %vm105, 0.0
      %107 = vst.msk [vmem:[#allocation3 + $0x8] sm:$0xff] %vm105, 0.0
      %108 = vst.msk [vmem:[#allocation3 + $0x10] sm:$0xff] %vm105, 0.0
      %109 = vst.msk [vmem:[#allocation3 + $0x18] sm:$0xff] %vm105, 0.0
      %110 = vst.msk [vmem:[#allocation3 + $0x20] sm:$0xff] %vm105, 0.0
      %111 = vst.msk [vmem:[#allocation3 + $0x28] sm:$0xff] %vm105, 0.0
      %112 = vst.msk [vmem:[#allocation3 + $0x30] sm:$0xff] %vm105, 0.0
      %113 = vst.msk [vmem:[#allocation3 + $0x38] sm:$0xff] %vm105, 0.0
      %114 = vst.msk [vmem:[#allocation3 + $0x40] sm:$0xff] %vm105, 0.0
      %115 = vst.msk [vmem:[#allocation3 + $0x48] sm:$0xff] %vm105, 0.0
      %116 = vst.msk [vmem:[#allocation3 + $0x50] sm:$0xff] %vm105, 0.0
      %117 = vst.msk [vmem:[#allocation3 + $0x58] sm:$0xff] %vm105, 0.0
      %118 = vst.msk [vmem:[#allocation3 + $0x60] sm:$0xff] %vm105, 0.0
      %119 = vst.msk [vmem:[#allocation3 + $0x68] sm:$0xff] %vm105, 0.0
      %120 = vst.msk [vmem:[#allocation3 + $0x70] sm:$0xff] %vm105, 0.0
      %121 = vst.msk [vmem:[#allocation3 + $0x78] sm:$0xff] %vm105, 0.0
      %v122 = vmul.f32 %v69, %v69
      %v123 = vmul.f32 %v70, %v70
      %v124 = vmul.f32 %v71, %v71
      %v125 = vmul.f32 %v72, %v72
      %v126 = vmul.f32 %v73, %v73
      %v127 = vmul.f32 %v74, %v74
      %v128 = vmul.f32 %v75, %v75
      %v129 = vmul.f32 %v76, %v76
      %v130 = vmul.f32 %v77, %v77
      %v131 = vmul.f32 %v78, %v78
      %v132 = vmul.f32 %v79, %v79
      %v133 = vmul.f32 %v80, %v80
      %v134 = vmul.f32 %v81, %v81
      %v135 = vmul.f32 %v82, %v82
      %v136 = vmul.f32 %v83, %v83
      %v137 = vmul.f32 %v84, %v84
      %138 = vadd.xlane.f32.xlu0 %v122
      %v139 = vpop.xlane.xlu0 %138
      %140 = vadd.xlane.f32.xlu0 %v123
      %v141 = vpop.xlane.xlu0 %140
      %142 = vadd.xlane.f32.xlu0 %v124
      %v143 = vpop.xlane.xlu0 %142
      %144 = vadd.xlane.f32.xlu0 %v125
      %v145 = vpop.xlane.xlu0 %144
      %146 = vadd.xlane.f32.xlu0 %v126
      %v147 = vpop.xlane.xlu0 %146
      %148 = vadd.xlane.f32.xlu0 %v127
      %v149 = vpop.xlane.xlu0 %148
      %150 = vadd.xlane.f32.xlu0 %v128
      %v151 = vpop.xlane.xlu0 %150
      %152 = vadd.xlane.f32.xlu0 %v129
      %v153 = vpop.xlane.xlu0 %152
      %154 = vadd.xlane.f32.xlu0 %v130
      %v155 = vpop.xlane.xlu0 %154
      %156 = vadd.xlane.f32.xlu0 %v131
      %v157 = vpop.xlane.xlu0 %156
      %158 = vadd.xlane.f32.xlu0 %v132
      %v159 = vpop.xlane.xlu0 %158
      %160 = vadd.xlane.f32.xlu0 %v133
      %v161 = vpop.xlane.xlu0 %160
      %162 = vadd.xlane.f32.xlu0 %v134
      %v163 = vpop.xlane.xlu0 %162
      %164 = vadd.xlane.f32.xlu0 %v135
      %v165 = vpop.xlane.xlu0 %164
      %166 = vadd.xlane.f32.xlu0 %v136
      %v167 = vpop.xlane.xlu0 %166
      %168 = vadd.xlane.f32.xlu0 %v137
      %v169 = vpop.xlane.xlu0 %168
      %170 = vst.msk [vmem:[#allocation2] sm:$0xff] %vm105, %v139
      %171 = vst.msk [vmem:[#allocation2 + $0x8] sm:$0xff] %vm105, %v141
      %172 = vst.msk [vmem:[#allocation2 + $0x10] sm:$0xff] %vm105, %v143
      %173 = vst.msk [vmem:[#allocation2 + $0x18] sm:$0xff] %vm105, %v145
      %174 = vst.msk [vmem:[#allocation2 + $0x20] sm:$0xff] %vm105, %v147
      %175 = vst.msk [vmem:[#allocation2 + $0x28] sm:$0xff] %vm105, %v149
      %176 = vst.msk [vmem:[#allocation2 + $0x30] sm:$0xff] %vm105, %v151
      %177 = vst.msk [vmem:[#allocation2 + $0x38] sm:$0xff] %vm105, %v153
      %178 = vst.msk [vmem:[#allocation2 + $0x40] sm:$0xff] %vm105, %v155
      %179 = vst.msk [vmem:[#allocation2 + $0x48] sm:$0xff] %vm105, %v157
      %180 = vst.msk [vmem:[#allocation2 + $0x50] sm:$0xff] %vm105, %v159
      %181 = vst.msk [vmem:[#allocation2 + $0x58] sm:$0xff] %vm105, %v161
      %182 = vst.msk [vmem:[#allocation2 + $0x60] sm:$0xff] %vm105, %v163
      %183 = vst.msk [vmem:[#allocation2 + $0x68] sm:$0xff] %vm105, %v165
      %184 = vst.msk [vmem:[#allocation2 + $0x70] sm:$0xff] %vm105, %v167
      %185 = vst.msk [vmem:[#allocation2 + $0x78] sm:$0xff] %vm105, %v169
    $region29: #{tpu_custom_call.1} parent=1 // pred_fallthru
      _
    %v186 = vld [vmem:[#allocation7] sm:$0xff]
    %v187 = vld [vmem:[#allocation7 + $0x8] sm:$0xff]
    %v188 = vld [vmem:[#allocation7 + $0x10] sm:$0xff]
    %v189 = vld [vmem:[#allocation7 + $0x18] sm:$0xff]
    %v190 = vld [vmem:[#allocation7 + $0x20] sm:$0xff]
    %v191 = vld [vmem:[#allocation7 + $0x28] sm:$0xff]
    %v192 = vld [vmem:[#allocation7 + $0x30] sm:$0xff]
    %v193 = vld [vmem:[#allocation7 + $0x38] sm:$0xff]
    %v194 = vld [vmem:[#allocation7 + $0x40] sm:$0xff]
    %v195 = vld [vmem:[#allocation7 + $0x48] sm:$0xff]
    %v196 = vld [vmem:[#allocation7 + $0x50] sm:$0xff]
    %v197 = vld [vmem:[#allocation7 + $0x58] sm:$0xff]
    %v198 = vld [vmem:[#allocation7 + $0x60] sm:$0xff]
    %v199 = vld [vmem:[#allocation7 + $0x68] sm:$0xff]
    %v200 = vld [vmem:[#allocation7 + $0x70] sm:$0xff]
    %v201 = vld [vmem:[#allocation7 + $0x78] sm:$0xff]
    %v202 = vld [vmem:[#allocation7 + $0x80] sm:$0xff]
    %v203 = vld [vmem:[#allocation7 + $0x88] sm:$0xff]
    %v204 = vld [vmem:[#allocation7 + $0x90] sm:$0xff]
    %v205 = vld [vmem:[#allocation7 + $0x98] sm:$0xff]
    %v206 = vld [vmem:[#allocation7 + $0xa0] sm:$0xff]
    %v207 = vld [vmem:[#allocation7 + $0xa8] sm:$0xff]
    %v208 = vld [vmem:[#allocation7 + $0xb0] sm:$0xff]
    %v209 = vld [vmem:[#allocation7 + $0xb8] sm:$0xff]
    %v210 = vld [vmem:[#allocation7 + $0xc0] sm:$0xff]
    %v211 = vld [vmem:[#allocation7 + $0xc8] sm:$0xff]
    %v212 = vld [vmem:[#allocation7 + $0xd0] sm:$0xff]
    %v213 = vld [vmem:[#allocation7 + $0xd8] sm:$0xff]
    %v214 = vld [vmem:[#allocation7 + $0xe0] sm:$0xff]
    %v215 = vld [vmem:[#allocation7 + $0xe8] sm:$0xff]
    %v216 = vld [vmem:[#allocation7 + $0xf0] sm:$0xff]
    %v217 = vld [vmem:[#allocation7 + $0xf8] sm:$0xff]
    %v218 = vld [vmem:[#allocation7 + $0x100] sm:$0xff]
    %v219 = vld [vmem:[#allocation7 + $0x108] sm:$0xff]
    %v220 = vld [vmem:[#allocation7 + $0x110] sm:$0xff]
    %v221 = vld [vmem:[#allocation7 + $0x118] sm:$0xff]
    %v222 = vld [vmem:[#allocation7 + $0x120] sm:$0xff]
    %v223 = vld [vmem:[#allocation7 + $0x128] sm:$0xff]
    %v224 = vld [vmem:[#allocation7 + $0x130] sm:$0xff]
    %v225 = vld [vmem:[#allocation7 + $0x138] sm:$0xff]
    %v226 = vld [vmem:[#allocation7 + $0x140] sm:$0xff]
    %v227 = vld [vmem:[#allocation7 + $0x148] sm:$0xff]
    %v228 = vld [vmem:[#allocation7 + $0x150] sm:$0xff]
    %v229 = vld [vmem:[#allocation7 + $0x158] sm:$0xff]
    %v230 = vld [vmem:[#allocation7 + $0x160] sm:$0xff]
    %v231 = vld [vmem:[#allocation7 + $0x168] sm:$0xff]
    %v232 = vld [vmem:[#allocation7 + $0x170] sm:$0xff]
    %v233 = vld [vmem:[#allocation7 + $0x178] sm:$0xff]
    %v234 = vld [vmem:[#allocation7 + $0x180] sm:$0xff]
    %v235 = vld [vmem:[#allocation7 + $0x188] sm:$0xff]
    %v236 = vld [vmem:[#allocation7 + $0x190] sm:$0xff]
    %v237 = vld [vmem:[#allocation7 + $0x198] sm:$0xff]
    %v238 = vld [vmem:[#allocation7 + $0x1a0] sm:$0xff]
    %v239 = vld [vmem:[#allocation7 + $0x1a8] sm:$0xff]
    %v240 = vld [vmem:[#allocation7 + $0x1b0] sm:$0xff]
    %v241 = vld [vmem:[#allocation7 + $0x1b8] sm:$0xff]
    %v242 = vld [vmem:[#allocation7 + $0x1c0] sm:$0xff]
    %v243 = vld [vmem:[#allocation7 + $0x1c8] sm:$0xff]
    %v244 = vld [vmem:[#allocation7 + $0x1d0] sm:$0xff]
    %v245 = vld [vmem:[#allocation7 + $0x1d8] sm:$0xff]
    %v246 = vld [vmem:[#allocation7 + $0x1e0] sm:$0xff]
    %v247 = vld [vmem:[#allocation7 + $0x1e8] sm:$0xff]
    %v248 = vld [vmem:[#allocation7 + $0x1f0] sm:$0xff]
    %v249 = vld [vmem:[#allocation7 + $0x1f8] sm:$0xff]
    %s250 = scalar_lea.vmem [#allocation7], 512
    %v251 = vld [vmem:[%s250] sm:$0xff]
    %v252 = vld [vmem:[%s250 + $0x8] sm:$0xff]
    %v253 = vld [vmem:[%s250 + $0x10] sm:$0xff]
    %v254 = vld [vmem:[%s250 + $0x18] sm:$0xff]
    %v255 = vld [vmem:[%s250 + $0x20] sm:$0xff]
    %v256 = vld [vmem:[%s250 + $0x28] sm:$0xff]
    %v257 = vld [vmem:[%s250 + $0x30] sm:$0xff]
    %v258 = vld [vmem:[%s250 + $0x38] sm:$0xff]
    %v259 = vld [vmem:[%s250 + $0x40] sm:$0xff]
    %v260 = vld [vmem:[%s250 + $0x48] sm:$0xff]
    %v261 = vld [vmem:[%s250 + $0x50] sm:$0xff]
    %v262 = vld [vmem:[%s250 + $0x58] sm:$0xff]
    %v263 = vld [vmem:[%s250 + $0x60] sm:$0xff]
    %v264 = vld [vmem:[%s250 + $0x68] sm:$0xff]
    %v265 = vld [vmem:[%s250 + $0x70] sm:$0xff]
    %v266 = vld [vmem:[%s250 + $0x78] sm:$0xff]
    %v267 = vld [vmem:[%s250 + $0x80] sm:$0xff]
    %v268 = vld [vmem:[%s250 + $0x88] sm:$0xff]
    %v269 = vld [vmem:[%s250 + $0x90] sm:$0xff]
    %v270 = vld [vmem:[%s250 + $0x98] sm:$0xff]
    %v271 = vld [vmem:[%s250 + $0xa0] sm:$0xff]
    %v272 = vld [vmem:[%s250 + $0xa8] sm:$0xff]
    %v273 = vld [vmem:[%s250 + $0xb0] sm:$0xff]
    %v274 = vld [vmem:[%s250 + $0xb8] sm:$0xff]
    %v275 = vld [vmem:[%s250 + $0xc0] sm:$0xff]
    %v276 = vld [vmem:[%s250 + $0xc8] sm:$0xff]
    %v277 = vld [vmem:[%s250 + $0xd0] sm:$0xff]
    %v278 = vld [vmem:[%s250 + $0xd8] sm:$0xff]
    %v279 = vld [vmem:[%s250 + $0xe0] sm:$0xff]
    %v280 = vld [vmem:[%s250 + $0xe8] sm:$0xff]
    %v281 = vld [vmem:[%s250 + $0xf0] sm:$0xff]
    %v282 = vld [vmem:[%s250 + $0xf8] sm:$0xff]
    %v283 = vld [vmem:[%s250 + $0x100] sm:$0xff]
    %v284 = vld [vmem:[%s250 + $0x108] sm:$0xff]
    %v285 = vld [vmem:[%s250 + $0x110] sm:$0xff]
    %v286 = vld [vmem:[%s250 + $0x118] sm:$0xff]
    %v287 = vld [vmem:[%s250 + $0x120] sm:$0xff]
    %v288 = vld [vmem:[%s250 + $0x128] sm:$0xff]
    %v289 = vld [vmem:[%s250 + $0x130] sm:$0xff]
    %v290 = vld [vmem:[%s250 + $0x138] sm:$0xff]
    %v291 = vld [vmem:[%s250 + $0x140] sm:$0xff]
    %v292 = vld [vmem:[%s250 + $0x148] sm:$0xff]
    %v293 = vld [vmem:[%s250 + $0x150] sm:$0xff]
    %v294 = vld [vmem:[%s250 + $0x158] sm:$0xff]
    %v295 = vld [vmem:[%s250 + $0x160] sm:$0xff]
    %v296 = vld [vmem:[%s250 + $0x168] sm:$0xff]
    %v297 = vld [vmem:[%s250 + $0x170] sm:$0xff]
    %v298 = vld [vmem:[%s250 + $0x178] sm:$0xff]
    %v299 = vld [vmem:[%s250 + $0x180] sm:$0xff]
    %v300 = vld [vmem:[%s250 + $0x188] sm:$0xff]
    %v301 = vld [vmem:[%s250 + $0x190] sm:$0xff]
    %v302 = vld [vmem:[%s250 + $0x198] sm:$0xff]
    %v303 = vld [vmem:[%s250 + $0x1a0] sm:$0xff]
    %v304 = vld [vmem:[%s250 + $0x1a8] sm:$0xff]
    %v305 = vld [vmem:[%s250 + $0x1b0] sm:$0xff]
    %v306 = vld [vmem:[%s250 + $0x1b8] sm:$0xff]
    %v307 = vld [vmem:[%s250 + $0x1c0] sm:$0xff]
    %v308 = vld [vmem:[%s250 + $0x1c8] sm:$0xff]
    %v309 = vld [vmem:[%s250 + $0x1d0] sm:$0xff]
    %v310 = vld [vmem:[%s250 + $0x1d8] sm:$0xff]
    %v311 = vld [vmem:[%s250 + $0x1e0] sm:$0xff]
    %v312 = vld [vmem:[%s250 + $0x1e8] sm:$0xff]
    %v313 = vld [vmem:[%s250 + $0x1f0] sm:$0xff]
    %v314 = vld [vmem:[%s250 + $0x1f8] sm:$0xff]
    %v315 = vld [vmem:[#allocation9] sm:$0xff]
    %316 = vmatprep.subr.mxu0 0.0
    %317 = vmatpush1.xpose.msra.mxu0 %v186
    %318 = vmatprep.subr.mxu0 0.0
    %319 = vmatpush1.xpose.msra.mxu0 %v187
    %320 = vmatprep.subr.mxu0 0.0
    %321 = vmatpush1.xpose.msra.mxu0 %v188
    %322 = vmatprep.subr.mxu0 0.0
    %323 = vmatpush1.xpose.msra.mxu0 %v189
    %324 = vmatprep.subr.mxu0 0.0
    %325 = vmatpush1.xpose.msra.mxu0 %v190
    %326 = vmatprep.subr.mxu0 0.0
    %327 = vmatpush1.xpose.msra.mxu0 %v191
    %328 = vmatprep.subr.mxu0 0.0
    %329 = vmatpush1.xpose.msra.mxu0 %v192
    %330 = vmatprep.subr.mxu0 0.0
    %331 = vmatpush1.xpose.msra.mxu0 %v193
    %332 = vmatprep.subr.mxu0 0.0
    %333 = vmatpush1.xpose.msra.mxu0 %v194
    %334 = vmatprep.subr.mxu0 0.0
    %335 = vmatpush1.xpose.msra.mxu0 %v195
    %336 = vmatprep.subr.mxu0 0.0
    %337 = vmatpush1.xpose.msra.mxu0 %v196
    %338 = vmatprep.subr.mxu0 0.0
    %339 = vmatpush1.xpose.msra.mxu0 %v197
    %340 = vmatprep.subr.mxu0 0.0
    %341 = vmatpush1.xpose.msra.mxu0 %v198
    %342 = vmatprep.subr.mxu0 0.0
    %343 = vmatpush1.xpose.msra.mxu0 %v199
    %344 = vmatprep.subr.mxu0 0.0
    %345 = vmatpush1.xpose.msra.mxu0 %v200
    %346 = vmatprep.subr.mxu0 0.0
    %347 = vmatpush1.xpose.msra.mxu0 %v201
    %348 = vmatprep.subr.mxu0 0.0
    %349 = vmatpush1.xpose.msra.mxu0 %v202
    %350 = vmatprep.subr.mxu0 0.0
    %351 = vmatpush1.xpose.msra.mxu0 %v203
    %352 = vmatprep.subr.mxu0 0.0
    %353 = vmatpush1.xpose.msra.mxu0 %v204
    %354 = vmatprep.subr.mxu0 0.0
    %355 = vmatpush1.xpose.msra.mxu0 %v205
    %356 = vmatprep.subr.mxu0 0.0
    %357 = vmatpush1.xpose.msra.mxu0 %v206
    %358 = vmatprep.subr.mxu0 0.0
    %359 = vmatpush1.xpose.msra.mxu0 %v207
    %360 = vmatprep.subr.mxu0 0.0
    %361 = vmatpush1.xpose.msra.mxu0 %v208
    %362 = vmatprep.subr.mxu0 0.0
    %363 = vmatpush1.xpose.msra.mxu0 %v209
    %364 = vmatprep.subr.mxu0 0.0
    %365 = vmatpush1.xpose.msra.mxu0 %v210
    %366 = vmatprep.subr.mxu0 0.0
    %367 = vmatpush1.xpose.msra.mxu0 %v211
    %368 = vmatprep.subr.mxu0 0.0
    %369 = vmatpush1.xpose.msra.mxu0 %v212
    %370 = vmatprep.subr.mxu0 0.0
    %371 = vmatpush1.xpose.msra.mxu0 %v213
    %372 = vmatprep.subr.mxu0 0.0
    %373 = vmatpush1.xpose.msra.mxu0 %v214
    %374 = vmatprep.subr.mxu0 0.0
    %375 = vmatpush1.xpose.msra.mxu0 %v215
    %376 = vmatprep.subr.mxu0 0.0
    %377 = vmatpush1.xpose.msra.mxu0 %v216
    %378 = vmatprep.subr.mxu0 0.0
    %379 = vmatpush1.xpose.msra.mxu0 %v217
    %380 = vmatprep.mubr.f32.mxu0 0.0
    %381 = vmatmul.mubr.f32.gmra.mrb[0].mxu0 %v69
    %v382 = vpop.f32.mrb[0].mxu0
    %v383 = vadd.f32 0.0, %v382
    %v384 = vpop.f32.mrb[0].mxu0
    %v385 = vadd.f32 0.0, %v384
    %386 = vmatprep.mubr.f32.mxu0 0.0
    %387 = vmatmul.mubr.f32.gmra.mrb[0].mxu0 %v70
    %v388 = vpop.f32.mrb[0].mxu0
    %v389 = vadd.f32 0.0, %v388
    %v390 = vpop.f32.mrb[0].mxu0
    %v391 = vadd.f32 0.0, %v390
    %392 = vmatprep.mubr.f32.mxu0 0.0
    %393 = vmatmul.mubr.f32.gmra.mrb[0].mxu0 %v71
    %v394 = vpop.f32.mrb[0].mxu0
    %v395 = vadd.f32 0.0, %v394
    %v396 = vpop.f32.mrb[0].mxu0
    %v397 = vadd.f32 0.0, %v396
    %398 = vmatprep.mubr.f32.mxu0 0.0
    %399 = vmatmul.mubr.f32.gmra.mrb[0].mxu0 %v72
    %v400 = vpop.f32.mrb[0].mxu0
    %v401 = vadd.f32 0.0, %v400
    %v402 = vpop.f32.mrb[0].mxu0
    %v403 = vadd.f32 0.0, %v402
    %404 = vmatprep.mubr.f32.mxu0 0.0
    %405 = vmatmul.mubr.f32.gmra.mrb[0].mxu0 %v73
    %v406 = vpop.f32.mrb[0].mxu0
    %v407 = vadd.f32 0.0, %v406
    %v408 = vpop.f32.mrb[0].mxu0
    %v409 = vadd.f32 0.0, %v408
    %410 = vmatprep.mubr.f32.mxu0 0.0
    %411 = vmatmul.mubr.f32.gmra.mrb[0].mxu0 %v74
    %v412 = vpop.f32.mrb[0].mxu0
    %v413 = vadd.f32 0.0, %v412
    %v414 = vpop.f32.mrb[0].mxu0
    %v415 = vadd.f32 0.0, %v414
    %416 = vmatprep.mubr.f32.mxu0 0.0
    %417 = vmatmul.mubr.f32.gmra.mrb[0].mxu0 %v75
    %v418 = vpop.f32.mrb[0].mxu0
    %v419 = vadd.f32 0.0, %v418
    %v420 = vpop.f32.mrb[0].mxu0
    %v421 = vadd.f32 0.0, %v420
    %422 = vmatprep.mubr.f32.mxu0 0.0
    %423 = vmatmul.mubr.f32.gmra.mrb[0].mxu0 %v76
    %v424 = vpop.f32.mrb[0].mxu0
    %v425 = vadd.f32 0.0, %v424
    %v426 = vpop.f32.mrb[0].mxu0
    %v427 = vadd.f32 0.0, %v426
    %428 = vmatprep.mubr.f32.mxu0 0.0
    %429 = vmatmul.mubr.f32.gmra.mrb[0].mxu0 %v77
    %v430 = vpop.f32.mrb[0].mxu0
    %v431 = vadd.f32 0.0, %v430
    %v432 = vpop.f32.mrb[0].mxu0
    %v433 = vadd.f32 0.0, %v432
    %434 = vmatprep.mubr.f32.mxu0 0.0
    %435 = vmatmul.mubr.f32.gmra.mrb[0].mxu0 %v78
    %v436 = vpop.f32.mrb[0].mxu0
    %v437 = vadd.f32 0.0, %v436
    %v438 = vpop.f32.mrb[0].mxu0
    %v439 = vadd.f32 0.0, %v438
    %440 = vmatprep.mubr.f32.mxu0 0.0
    %441 = vmatmul.mubr.f32.gmra.mrb[0].mxu0 %v79
    %v442 = vpop.f32.mrb[0].mxu0
    %v443 = vadd.f32 0.0, %v442
    %v444 = vpop.f32.mrb[0].mxu0
    %v445 = vadd.f32 0.0, %v444
    %446 = vmatprep.mubr.f32.mxu0 0.0
    %447 = vmatmul.mubr.f32.gmra.mrb[0].mxu0 %v80
    %v448 = vpop.f32.mrb[0].mxu0
    %v449 = vadd.f32 0.0, %v448
    %v450 = vpop.f32.mrb[0].mxu0
    %v451 = vadd.f32 0.0, %v450
    %452 = vmatprep.mubr.f32.mxu0 0.0
    %453 = vmatmul.mubr.f32.gmra.mrb[0].mxu0 %v81
    %v454 = vpop.f32.mrb[0].mxu0
    %v455 = vadd.f32 0.0, %v454
    %v456 = vpop.f32.mrb[0].mxu0
    %v457 = vadd.f32 0.0, %v456
    %458 = vmatprep.mubr.f32.mxu0 0.0
    %459 = vmatmul.mubr.f32.gmra.mrb[0].mxu0 %v82
    %v460 = vpop.f32.mrb[0].mxu0
    %v461 = vadd.f32 0.0, %v460
    %v462 = vpop.f32.mrb[0].mxu0
    %v463 = vadd.f32 0.0, %v462
    %464 = vmatprep.mubr.f32.mxu0 0.0
    %465 = vmatmul.mubr.f32.gmra.mrb[0].mxu0 %v83
    %v466 = vpop.f32.mrb[0].mxu0
    %v467 = vadd.f32 0.0, %v466
    %v468 = vpop.f32.mrb[0].mxu0
    %v469 = vadd.f32 0.0, %v468
    %470 = vmatprep.mubr.f32.mxu0 0.0
    %471 = vmatmul.mubr.f32.gmra.mrb[0].mxu0 %v84
    %v472 = vpop.f32.mrb[0].mxu0
    %v473 = vadd.f32 0.0, %v472
    %v474 = vpop.f32.mrb[0].mxu0
    %v475 = vadd.f32 0.0, %v474
    %476 = vdwg.mxu0
    %477 = vmatprep.subr.mxu0 0.0
    %478 = vmatpush1.xpose.msra.mxu0 %v218
    %479 = vmatprep.subr.mxu0 0.0
    %480 = vmatpush1.xpose.msra.mxu0 %v219
    %481 = vmatprep.subr.mxu0 0.0
    %482 = vmatpush1.xpose.msra.mxu0 %v220
    %483 = vmatprep.subr.mxu0 0.0
    %484 = vmatpush1.xpose.msra.mxu0 %v221
    %485 = vmatprep.subr.mxu0 0.0
    %486 = vmatpush1.xpose.msra.mxu0 %v222
    %487 = vmatprep.subr.mxu0 0.0
    %488 = vmatpush1.xpose.msra.mxu0 %v223
    %489 = vmatprep.subr.mxu0 0.0
    %490 = vmatpush1.xpose.msra.mxu0 %v224
    %491 = vmatprep.subr.mxu0 0.0
    %492 = vmatpush1.xpose.msra.mxu0 %v225
    %493 = vmatprep.subr.mxu0 0.0
    %494 = vmatpush1.xpose.msra.mxu0 %v226
    %495 = vmatprep.subr.mxu0 0.0
    %496 = vmatpush1.xpose.msra.mxu0 %v227
    %497 = vmatprep.subr.mxu0 0.0
    %498 = vmatpush1.xpose.msra.mxu0 %v228
    %499 = vmatprep.subr.mxu0 0.0
    %500 = vmatpush1.xpose.msra.mxu0 %v229
    %501 = vmatprep.subr.mxu0 0.0
    %502 = vmatpush1.xpose.msra.mxu0 %v230
    %503 = vmatprep.subr.mxu0 0.0
    %504 = vmatpush1.xpose.msra.mxu0 %v231
    %505 = vmatprep.subr.mxu0 0.0
    %506 = vmatpush1.xpose.msra.mxu0 %v232
    %507 = vmatprep.subr.mxu0 0.0
    %508 = vmatpush1.xpose.msra.mxu0 %v233
    %509 = vmatprep.subr.mxu0 0.0
    %510 = vmatpush1.xpose.msra.mxu0 %v234
    %511 = vmatprep.subr.mxu0 0.0
    %512 = vmatpush1.xpose.msra.mxu0 %v235
    %513 = vmatprep.subr.mxu0 0.0
    %514 = vmatpush1.xpose.msra.mxu0 %v236
    %515 = vmatprep.subr.mxu0 0.0
    %516 = vmatpush1.xpose.msra.mxu0 %v237
    %517 = vmatprep.subr.mxu0 0.0
    %518 = vmatpush1.xpose.msra.mxu0 %v238
    %519 = vmatprep.subr.mxu0 0.0
    %520 = vmatpush1.xpose.msra.mxu0 %v239
    %521 = vmatprep.subr.mxu0 0.0
    %522 = vmatpush1.xpose.msra.mxu0 %v240
    %523 = vmatprep.subr.mxu0 0.0
    %524 = vmatpush1.xpose.msra.mxu0 %v241
    %525 = vmatprep.subr.mxu0 0.0
    %526 = vmatpush1.xpose.msra.mxu0 %v242
    %527 = vmatprep.subr.mxu0 0.0
    %528 = vmatpush1.xpose.msra.mxu0 %v243
    %529 = vmatprep.subr.mxu0 0.0
    %530 = vmatpush1.xpose.msra.mxu0 %v244
    %531 = vmatprep.subr.mxu0 0.0
    %532 = vmatpush1.xpose.msra.mxu0 %v245
    %533 = vmatprep.subr.mxu0 0.0
    %534 = vmatpush1.xpose.msra.mxu0 %v246
    %535 = vmatprep.subr.mxu0 0.0
    %536 = vmatpush1.xpose.msra.mxu0 %v247
    %537 = vmatprep.subr.mxu0 0.0
    %538 = vmatpush1.xpose.msra.mxu0 %v248
    %539 = vmatprep.subr.mxu0 0.0
    %540 = vmatpush1.xpose.msra.mxu0 %v249
    %541 = vmatprep.mubr.f32.mxu0 0.0
    %542 = vmatmul.mubr.f32.gmra.mrb[0].mxu0 %v69
    %v543 = vpop.f32.mrb[0].mxu0
    %v544 = vadd.f32 0.0, %v543
    %v545 = vpop.f32.mrb[0].mxu0
    %v546 = vadd.f32 0.0, %v545
    %547 = vmatprep.mubr.f32.mxu0 0.0
    %548 = vmatmul.mubr.f32.gmra.mrb[0].mxu0 %v70
    %v549 = vpop.f32.mrb[0].mxu0
    %v550 = vadd.f32 0.0, %v549
    %v551 = vpop.f32.mrb[0].mxu0
    %v552 = vadd.f32 0.0, %v551
    %553 = vmatprep.mubr.f32.mxu0 0.0
    %554 = vmatmul.mubr.f32.gmra.mrb[0].mxu0 %v71
    %v555 = vpop.f32.mrb[0].mxu0
    %v556 = vadd.f32 0.0, %v555
    %v557 = vpop.f32.mrb[0].mxu0
    %v558 = vadd.f32 0.0, %v557
    %559 = vmatprep.mubr.f32.mxu0 0.0
    %560 = vmatmul.mubr.f32.gmra.mrb[0].mxu0 %v72
    %v561 = vpop.f32.mrb[0].mxu0
    %v562 = vadd.f32 0.0, %v561
    %v563 = vpop.f32.mrb[0].mxu0
    %v564 = vadd.f32 0.0, %v563
    %565 = vmatprep.mubr.f32.mxu0 0.0
    %566 = vmatmul.mubr.f32.gmra.mrb[0].mxu0 %v73
    %v567 = vpop.f32.mrb[0].mxu0
    %v568 = vadd.f32 0.0, %v567
    %v569 = vpop.f32.mrb[0].mxu0
    %v570 = vadd.f32 0.0, %v569
    %571 = vmatprep.mubr.f32.mxu0 0.0
    %572 = vmatmul.mubr.f32.gmra.mrb[0].mxu0 %v74
    %v573 = vpop.f32.mrb[0].mxu0
    %v574 = vadd.f32 0.0, %v573
    %v575 = vpop.f32.mrb[0].mxu0
    %v576 = vadd.f32 0.0, %v575
    %577 = vmatprep.mubr.f32.mxu0 0.0
    %578 = vmatmul.mubr.f32.gmra.mrb[0].mxu0 %v75
    %v579 = vpop.f32.mrb[0].mxu0
    %v580 = vadd.f32 0.0, %v579
    %v581 = vpop.f32.mrb[0].mxu0
    %v582 = vadd.f32 0.0, %v581
    %583 = vmatprep.mubr.f32.mxu0 0.0
    %584 = vmatmul.mubr.f32.gmra.mrb[0].mxu0 %v76
    %v585 = vpop.f32.mrb[0].mxu0
    %v586 = vadd.f32 0.0, %v585
    %v587 = vpop.f32.mrb[0].mxu0
    %v588 = vadd.f32 0.0, %v587
    %589 = vmatprep.mubr.f32.mxu0 0.0
    %590 = vmatmul.mubr.f32.gmra.mrb[0].mxu0 %v77
    %v591 = vpop.f32.mrb[0].mxu0
    %v592 = vadd.f32 0.0, %v591
    %v593 = vpop.f32.mrb[0].mxu0
    %v594 = vadd.f32 0.0, %v593
    %595 = vmatprep.mubr.f32.mxu0 0.0
    %596 = vmatmul.mubr.f32.gmra.mrb[0].mxu0 %v78
    %v597 = vpop.f32.mrb[0].mxu0
    %v598 = vadd.f32 0.0, %v597
    %v599 = vpop.f32.mrb[0].mxu0
    %v600 = vadd.f32 0.0, %v599
    %601 = vmatprep.mubr.f32.mxu0 0.0
    %602 = vmatmul.mubr.f32.gmra.mrb[0].mxu0 %v79
    %v603 = vpop.f32.mrb[0].mxu0
    %v604 = vadd.f32 0.0, %v603
    %v605 = vpop.f32.mrb[0].mxu0
    %v606 = vadd.f32 0.0, %v605
    %607 = vmatprep.mubr.f32.mxu0 0.0
    %608 = vmatmul.mubr.f32.gmra.mrb[0].mxu0 %v80
    %v609 = vpop.f32.mrb[0].mxu0
    %v610 = vadd.f32 0.0, %v609
    %v611 = vpop.f32.mrb[0].mxu0
    %v612 = vadd.f32 0.0, %v611
    %613 = vmatprep.mubr.f32.mxu0 0.0
    %614 = vmatmul.mubr.f32.gmra.mrb[0].mxu0 %v81
    %v615 = vpop.f32.mrb[0].mxu0
    %v616 = vadd.f32 0.0, %v615
    %v617 = vpop.f32.mrb[0].mxu0
    %v618 = vadd.f32 0.0, %v617
    %619 = vmatprep.mubr.f32.mxu0 0.0
    %620 = vmatmul.mubr.f32.gmra.mrb[0].mxu0 %v82
    %v621 = vpop.f32.mrb[0].mxu0
    %v622 = vadd.f32 0.0, %v621
    %v623 = vpop.f32.mrb[0].mxu0
    %v624 = vadd.f32 0.0, %v623
    %625 = vmatprep.mubr.f32.mxu0 0.0
    %626 = vmatmul.mubr.f32.gmra.mrb[0].mxu0 %v83
    %v627 = vpop.f32.mrb[0].mxu0
    %v628 = vadd.f32 0.0, %v627
    %v629 = vpop.f32.mrb[0].mxu0
    %v630 = vadd.f32 0.0, %v629
    %631 = vmatprep.mubr.f32.mxu0 0.0
    %632 = vmatmul.mubr.f32.gmra.mrb[0].mxu0 %v84
    %v633 = vpop.f32.mrb[0].mxu0
    %v634 = vadd.f32 0.0, %v633
    %v635 = vpop.f32.mrb[0].mxu0
    %v636 = vadd.f32 0.0, %v635
    %637 = vdwg.mxu0
    %v638 = vld [vmem:[#allocation2] sm:$0xff]
    %v639 = vld [vmem:[#allocation2 + $0x8] sm:$0xff]
    %v640 = vld [vmem:[#allocation2 + $0x10] sm:$0xff]
    %v641 = vld [vmem:[#allocation2 + $0x18] sm:$0xff]
    %v642 = vld [vmem:[#allocation2 + $0x20] sm:$0xff]
    %v643 = vld [vmem:[#allocation2 + $0x28] sm:$0xff]
    %v644 = vld [vmem:[#allocation2 + $0x30] sm:$0xff]
    %v645 = vld [vmem:[#allocation2 + $0x38] sm:$0xff]
    %v646 = vld [vmem:[#allocation2 + $0x40] sm:$0xff]
    %v647 = vld [vmem:[#allocation2 + $0x48] sm:$0xff]
    %v648 = vld [vmem:[#allocation2 + $0x50] sm:$0xff]
    %v649 = vld [vmem:[#allocation2 + $0x58] sm:$0xff]
    %v650 = vld [vmem:[#allocation2 + $0x60] sm:$0xff]
    %v651 = vld [vmem:[#allocation2 + $0x68] sm:$0xff]
    %v652 = vld [vmem:[#allocation2 + $0x70] sm:$0xff]
    %v653 = vld [vmem:[#allocation2 + $0x78] sm:$0xff]
    %655 = vset.pattern.permute.xlu0 0
    %656 = vperm.xlu0 %655, %v638
    %v657 = vpop.permute.xlu0 %656
    %660 = vset.pattern.permute.xlu0 0
    %661 = vperm.xlu0 %660, %v639
    %v662 = vpop.permute.xlu0 %661
    %665 = vset.pattern.permute.xlu0 0
    %666 = vperm.xlu0 %665, %v640
    %v667 = vpop.permute.xlu0 %666
    %670 = vset.pattern.permute.xlu0 0
    %671 = vperm.xlu0 %670, %v641
    %v672 = vpop.permute.xlu0 %671
    %675 = vset.pattern.permute.xlu0 0
    %676 = vperm.xlu0 %675, %v642
    %v677 = vpop.permute.xlu0 %676
    %680 = vset.pattern.permute.xlu0 0
    %681 = vperm.xlu0 %680, %v643
    %v682 = vpop.permute.xlu0 %681
    %685 = vset.pattern.permute.xlu0 0
    %686 = vperm.xlu0 %685, %v644
    %v687 = vpop.permute.xlu0 %686
    %690 = vset.pattern.permute.xlu0 0
    %691 = vperm.xlu0 %690, %v645
    %v692 = vpop.permute.xlu0 %691
    %695 = vset.pattern.permute.xlu0 0
    %696 = vperm.xlu0 %695, %v646
    %v697 = vpop.permute.xlu0 %696
    %700 = vset.pattern.permute.xlu0 0
    %701 = vperm.xlu0 %700, %v647
    %v702 = vpop.permute.xlu0 %701
    %705 = vset.pattern.permute.xlu0 0
    %706 = vperm.xlu0 %705, %v648
    %v707 = vpop.permute.xlu0 %706
    %710 = vset.pattern.permute.xlu0 0
    %711 = vperm.xlu0 %710, %v649
    %v712 = vpop.permute.xlu0 %711
    %715 = vset.pattern.permute.xlu0 0
    %716 = vperm.xlu0 %715, %v650
    %v717 = vpop.permute.xlu0 %716
    %720 = vset.pattern.permute.xlu0 0
    %721 = vperm.xlu0 %720, %v651
    %v722 = vpop.permute.xlu0 %721
    %725 = vset.pattern.permute.xlu0 0
    %726 = vperm.xlu0 %725, %v652
    %v727 = vpop.permute.xlu0 %726
    %730 = vset.pattern.permute.xlu0 0
    %731 = vperm.xlu0 %730, %v653
    %v732 = vpop.permute.xlu0 %731
    %v735 = vlaneseq
    %v736 = vshrl.u32 %v735, 7
    %v737 = vsub.s32 0, %v736
    %v738 = vrot.slane %v315, %v737
    %v739 = vlaneseq
    %v740 = vshrl.u32 %v739, 7
    %v741 = vsub.s32 2, %v740
    %v742 = vrot.slane %v315, %v741
    %v743 = vlaneseq
    %v744 = vshrl.u32 %v743, 7
    %v745 = vsub.s32 4, %v744
    %v746 = vrot.slane %v315, %v745
    %v747 = vlaneseq
    %v748 = vshrl.u32 %v747, 7
    %v749 = vsub.s32 6, %v748
    %v750 = vrot.slane %v315, %v749
    %v755 = vlaneseq
    %v756 = vshrl.u32 %v755, 7
    %v757 = vsub.s32 0, %v756
    %v758 = vrot.slane %v738, %v757
    %v759 = vlaneseq
    %v760 = vshrl.u32 %v759, 7
    %v761 = vsub.s32 0, %v760
    %v762 = vrot.slane %v742, %v761
    %v763 = vlaneseq
    %v764 = vshrl.u32 %v763, 7
    %v765 = vsub.s32 0, %v764
    %v766 = vrot.slane %v746, %v765
    %v767 = vlaneseq
    %v768 = vshrl.u32 %v767, 7
    %v769 = vsub.s32 0, %v768
    %v770 = vrot.slane %v750, %v769
    %v771 = vadd.f32 %v657, %v758
    %v772 = vadd.f32 %v657, %v762
    %v773 = vadd.f32 %v657, %v766
    %v774 = vadd.f32 %v657, %v770
    %v775 = vadd.f32 %v662, %v758
    %v776 = vadd.f32 %v662, %v762
    %v777 = vadd.f32 %v662, %v766
    %v778 = vadd.f32 %v662, %v770
    %v779 = vadd.f32 %v667, %v758
    %v780 = vadd.f32 %v667, %v762
    %v781 = vadd.f32 %v667, %v766
    %v782 = vadd.f32 %v667, %v770
    %v783 = vadd.f32 %v672, %v758
    %v784 = vadd.f32 %v672, %v762
    %v785 = vadd.f32 %v672, %v766
    %v786 = vadd.f32 %v672, %v770
    %v787 = vadd.f32 %v677, %v758
    %v788 = vadd.f32 %v677, %v762
    %v789 = vadd.f32 %v677, %v766
    %v790 = vadd.f32 %v677, %v770
    %v791 = vadd.f32 %v682, %v758
    %v792 = vadd.f32 %v682, %v762
    %v793 = vadd.f32 %v682, %v766
    %v794 = vadd.f32 %v682, %v770
    %v795 = vadd.f32 %v687, %v758
    %v796 = vadd.f32 %v687, %v762
    %v797 = vadd.f32 %v687, %v766
    %v798 = vadd.f32 %v687, %v770
    %v799 = vadd.f32 %v692, %v758
    %v800 = vadd.f32 %v692, %v762
    %v801 = vadd.f32 %v692, %v766
    %v802 = vadd.f32 %v692, %v770
    %v803 = vadd.f32 %v697, %v758
    %v804 = vadd.f32 %v697, %v762
    %v805 = vadd.f32 %v697, %v766
    %v806 = vadd.f32 %v697, %v770
    %v807 = vadd.f32 %v702, %v758
    %v808 = vadd.f32 %v702, %v762
    %v809 = vadd.f32 %v702, %v766
    %v810 = vadd.f32 %v702, %v770
    %v811 = vadd.f32 %v707, %v758
    %v812 = vadd.f32 %v707, %v762
    %v813 = vadd.f32 %v707, %v766
    %v814 = vadd.f32 %v707, %v770
    %v815 = vadd.f32 %v712, %v758
    %v816 = vadd.f32 %v712, %v762
    %v817 = vadd.f32 %v712, %v766
    %v818 = vadd.f32 %v712, %v770
    %v819 = vadd.f32 %v717, %v758
    %v820 = vadd.f32 %v717, %v762
    %v821 = vadd.f32 %v717, %v766
    %v822 = vadd.f32 %v717, %v770
    %v823 = vadd.f32 %v722, %v758
    %v824 = vadd.f32 %v722, %v762
    %v825 = vadd.f32 %v722, %v766
    %v826 = vadd.f32 %v722, %v770
    %v827 = vadd.f32 %v727, %v758
    %v828 = vadd.f32 %v727, %v762
    %v829 = vadd.f32 %v727, %v766
    %v830 = vadd.f32 %v727, %v770
    %v831 = vadd.f32 %v732, %v758
    %v832 = vadd.f32 %v732, %v762
    %v833 = vadd.f32 %v732, %v766
    %v834 = vadd.f32 %v732, %v770
    %v835 = vmul.f32 %v383, 2.0
    %v836 = vmul.f32 %v385, 2.0
    %v837 = vmul.f32 %v544, 2.0
    %v838 = vmul.f32 %v546, 2.0
    %v839 = vmul.f32 %v389, 2.0
    %v840 = vmul.f32 %v391, 2.0
    %v841 = vmul.f32 %v550, 2.0
    %v842 = vmul.f32 %v552, 2.0
    %v843 = vmul.f32 %v395, 2.0
    %v844 = vmul.f32 %v397, 2.0
    %v845 = vmul.f32 %v556, 2.0
    %v846 = vmul.f32 %v558, 2.0
    %v847 = vmul.f32 %v401, 2.0
    %v848 = vmul.f32 %v403, 2.0
    %v849 = vmul.f32 %v562, 2.0
    %v850 = vmul.f32 %v564, 2.0
    %v851 = vmul.f32 %v407, 2.0
    %v852 = vmul.f32 %v409, 2.0
    %v853 = vmul.f32 %v568, 2.0
    %v854 = vmul.f32 %v570, 2.0
    %v855 = vmul.f32 %v413, 2.0
    %v856 = vmul.f32 %v415, 2.0
    %v857 = vmul.f32 %v574, 2.0
    %v858 = vmul.f32 %v576, 2.0
    %v859 = vmul.f32 %v419, 2.0
    %v860 = vmul.f32 %v421, 2.0
    %v861 = vmul.f32 %v580, 2.0
    %v862 = vmul.f32 %v582, 2.0
    %v863 = vmul.f32 %v425, 2.0
    %v864 = vmul.f32 %v427, 2.0
    %v865 = vmul.f32 %v586, 2.0
    %v866 = vmul.f32 %v588, 2.0
    %v867 = vmul.f32 %v431, 2.0
    %v868 = vmul.f32 %v433, 2.0
    %v869 = vmul.f32 %v592, 2.0
    %v870 = vmul.f32 %v594, 2.0
    %v871 = vmul.f32 %v437, 2.0
    %v872 = vmul.f32 %v439, 2.0
    %v873 = vmul.f32 %v598, 2.0
    %v874 = vmul.f32 %v600, 2.0
    %v875 = vmul.f32 %v443, 2.0
    %v876 = vmul.f32 %v445, 2.0
    %v877 = vmul.f32 %v604, 2.0
    %v878 = vmul.f32 %v606, 2.0
    %v879 = vmul.f32 %v449, 2.0
    %v880 = vmul.f32 %v451, 2.0
    %v881 = vmul.f32 %v610, 2.0
    %v882 = vmul.f32 %v612, 2.0
    %v883 = vmul.f32 %v455, 2.0
    %v884 = vmul.f32 %v457, 2.0
    %v885 = vmul.f32 %v616, 2.0
    %v886 = vmul.f32 %v618, 2.0
    %v887 = vmul.f32 %v461, 2.0
    %v888 = vmul.f32 %v463, 2.0
    %v889 = vmul.f32 %v622, 2.0
    %v890 = vmul.f32 %v624, 2.0
    %v891 = vmul.f32 %v467, 2.0
    %v892 = vmul.f32 %v469, 2.0
    %v893 = vmul.f32 %v628, 2.0
    %v894 = vmul.f32 %v630, 2.0
    %v895 = vmul.f32 %v473, 2.0
    %v896 = vmul.f32 %v475, 2.0
    %v897 = vmul.f32 %v634, 2.0
    %v898 = vmul.f32 %v636, 2.0
    %v899 = vsub.f32 %v771, %v835
    %v900 = vsub.f32 %v772, %v836
    %v901 = vsub.f32 %v773, %v837
    %v902 = vsub.f32 %v774, %v838
    %v903 = vsub.f32 %v775, %v839
    %v904 = vsub.f32 %v776, %v840
    %v905 = vsub.f32 %v777, %v841
    %v906 = vsub.f32 %v778, %v842
    %v907 = vsub.f32 %v779, %v843
    %v908 = vsub.f32 %v780, %v844
    %v909 = vsub.f32 %v781, %v845
    %v910 = vsub.f32 %v782, %v846
    %v911 = vsub.f32 %v783, %v847
    %v912 = vsub.f32 %v784, %v848
    %v913 = vsub.f32 %v785, %v849
    %v914 = vsub.f32 %v786, %v850
    %v915 = vsub.f32 %v787, %v851
    %v916 = vsub.f32 %v788, %v852
    %v917 = vsub.f32 %v789, %v853
    %v918 = vsub.f32 %v790, %v854
    %v919 = vsub.f32 %v791, %v855
    %v920 = vsub.f32 %v792, %v856
    %v921 = vsub.f32 %v793, %v857
    %v922 = vsub.f32 %v794, %v858
    %v923 = vsub.f32 %v795, %v859
    %v924 = vsub.f32 %v796, %v860
    %v925 = vsub.f32 %v797, %v861
    %v926 = vsub.f32 %v798, %v862
    %v927 = vsub.f32 %v799, %v863
    %v928 = vsub.f32 %v800, %v864
    %v929 = vsub.f32 %v801, %v865
    %v930 = vsub.f32 %v802, %v866
    %v931 = vsub.f32 %v803, %v867
    %v932 = vsub.f32 %v804, %v868
    %v933 = vsub.f32 %v805, %v869
    %v934 = vsub.f32 %v806, %v870
    %v935 = vsub.f32 %v807, %v871
    %v936 = vsub.f32 %v808, %v872
    %v937 = vsub.f32 %v809, %v873
    %v938 = vsub.f32 %v810, %v874
    %v939 = vsub.f32 %v811, %v875
    %v940 = vsub.f32 %v812, %v876
    %v941 = vsub.f32 %v813, %v877
    %v942 = vsub.f32 %v814, %v878
    %v943 = vsub.f32 %v815, %v879
    %v944 = vsub.f32 %v816, %v880
    %v945 = vsub.f32 %v817, %v881
    %v946 = vsub.f32 %v818, %v882
    %v947 = vsub.f32 %v819, %v883
    %v948 = vsub.f32 %v820, %v884
    %v949 = vsub.f32 %v821, %v885
    %v950 = vsub.f32 %v822, %v886
    %v951 = vsub.f32 %v823, %v887
    %v952 = vsub.f32 %v824, %v888
    %v953 = vsub.f32 %v825, %v889
    %v954 = vsub.f32 %v826, %v890
    %v955 = vsub.f32 %v827, %v891
    %v956 = vsub.f32 %v828, %v892
    %v957 = vsub.f32 %v829, %v893
    %v958 = vsub.f32 %v830, %v894
    %v959 = vsub.f32 %v831, %v895
    %v960 = vsub.f32 %v832, %v896
    %v961 = vsub.f32 %v833, %v897
    %v962 = vsub.f32 %v834, %v898
    %v963 = vmax.f32 %v899, 0.0
    %v964 = vmax.f32 %v900, 0.0
    %v965 = vmax.f32 %v901, 0.0
    %v966 = vmax.f32 %v902, 0.0
    %v967 = vmax.f32 %v903, 0.0
    %v968 = vmax.f32 %v904, 0.0
    %v969 = vmax.f32 %v905, 0.0
    %v970 = vmax.f32 %v906, 0.0
    %v971 = vmax.f32 %v907, 0.0
    %v972 = vmax.f32 %v908, 0.0
    %v973 = vmax.f32 %v909, 0.0
    %v974 = vmax.f32 %v910, 0.0
    %v975 = vmax.f32 %v911, 0.0
    %v976 = vmax.f32 %v912, 0.0
    %v977 = vmax.f32 %v913, 0.0
    %v978 = vmax.f32 %v914, 0.0
    %v979 = vmax.f32 %v915, 0.0
    %v980 = vmax.f32 %v916, 0.0
    %v981 = vmax.f32 %v917, 0.0
    %v982 = vmax.f32 %v918, 0.0
    %v983 = vmax.f32 %v919, 0.0
    %v984 = vmax.f32 %v920, 0.0
    %v985 = vmax.f32 %v921, 0.0
    %v986 = vmax.f32 %v922, 0.0
    %v987 = vmax.f32 %v923, 0.0
    %v988 = vmax.f32 %v924, 0.0
    %v989 = vmax.f32 %v925, 0.0
    %v990 = vmax.f32 %v926, 0.0
    %v991 = vmax.f32 %v927, 0.0
    %v992 = vmax.f32 %v928, 0.0
    %v993 = vmax.f32 %v929, 0.0
    %v994 = vmax.f32 %v930, 0.0
    %v995 = vmax.f32 %v931, 0.0
    %v996 = vmax.f32 %v932, 0.0
    %v997 = vmax.f32 %v933, 0.0
    %v998 = vmax.f32 %v934, 0.0
    %v999 = vmax.f32 %v935, 0.0
    %v1000 = vmax.f32 %v936, 0.0
    %v1001 = vmax.f32 %v937, 0.0
    %v1002 = vmax.f32 %v938, 0.0
    %v1003 = vmax.f32 %v939, 0.0
    %v1004 = vmax.f32 %v940, 0.0
    %v1005 = vmax.f32 %v941, 0.0
    %v1006 = vmax.f32 %v942, 0.0
    %v1007 = vmax.f32 %v943, 0.0
    %v1008 = vmax.f32 %v944, 0.0
    %v1009 = vmax.f32 %v945, 0.0
    %v1010 = vmax.f32 %v946, 0.0
    %v1011 = vmax.f32 %v947, 0.0
    %v1012 = vmax.f32 %v948, 0.0
    %v1013 = vmax.f32 %v949, 0.0
    %v1014 = vmax.f32 %v950, 0.0
    %v1015 = vmax.f32 %v951, 0.0
    %v1016 = vmax.f32 %v952, 0.0
    %v1017 = vmax.f32 %v953, 0.0
    %v1018 = vmax.f32 %v954, 0.0
    %v1019 = vmax.f32 %v955, 0.0
    %v1020 = vmax.f32 %v956, 0.0
    %v1021 = vmax.f32 %v957, 0.0
    %v1022 = vmax.f32 %v958, 0.0
    %v1023 = vmax.f32 %v959, 0.0
    %v1024 = vmax.f32 %v960, 0.0
    %v1025 = vmax.f32 %v961, 0.0
    %v1026 = vmax.f32 %v962, 0.0
    %v1027 = vrsqrt.pop %v963
    %v1028 = vmul.f32 %v963, %v1027
    %vm1029 = vcmp.eq.f32.partialorder %v963, inf
    %v1030 = vsel %vm1029, %v963, %v1028
    %vm1031 = vcmp.eq.f32.partialorder %v963, 0.0
    %v1032 = vand.u32 %v963, 2147483648
    %v1033 = vsel %vm1031, %v1032, %v1030
    %v1034 = vrsqrt.pop %v964
    %v1035 = vmul.f32 %v964, %v1034
    %vm1036 = vcmp.eq.f32.partialorder %v964, inf
    %v1037 = vsel %vm1036, %v964, %v1035
    %vm1038 = vcmp.eq.f32.partialorder %v964, 0.0
    %v1039 = vand.u32 %v964, 2147483648
    %v1040 = vsel %vm1038, %v1039, %v1037
    %v1041 = vrsqrt.pop %v965
    %v1042 = vmul.f32 %v965, %v1041
    %vm1043 = vcmp.eq.f32.partialorder %v965, inf
    %v1044 = vsel %vm1043, %v965, %v1042
    %vm1045 = vcmp.eq.f32.partialorder %v965, 0.0
    %v1046 = vand.u32 %v965, 2147483648
    %v1047 = vsel %vm1045, %v1046, %v1044
    %v1048 = vrsqrt.pop %v966
    %v1049 = vmul.f32 %v966, %v1048
    %vm1050 = vcmp.eq.f32.partialorder %v966, inf
    %v1051 = vsel %vm1050, %v966, %v1049
    %vm1052 = vcmp.eq.f32.partialorder %v966, 0.0
    %v1053 = vand.u32 %v966, 2147483648
    %v1054 = vsel %vm1052, %v1053, %v1051
    %v1055 = vrsqrt.pop %v967
    %v1056 = vmul.f32 %v967, %v1055
    %vm1057 = vcmp.eq.f32.partialorder %v967, inf
    %v1058 = vsel %vm1057, %v967, %v1056
    %vm1059 = vcmp.eq.f32.partialorder %v967, 0.0
    %v1060 = vand.u32 %v967, 2147483648
    %v1061 = vsel %vm1059, %v1060, %v1058
    %v1062 = vrsqrt.pop %v968
    %v1063 = vmul.f32 %v968, %v1062
    %vm1064 = vcmp.eq.f32.partialorder %v968, inf
    %v1065 = vsel %vm1064, %v968, %v1063
    %vm1066 = vcmp.eq.f32.partialorder %v968, 0.0
    %v1067 = vand.u32 %v968, 2147483648
    %v1068 = vsel %vm1066, %v1067, %v1065
    %v1069 = vrsqrt.pop %v969
    %v1070 = vmul.f32 %v969, %v1069
    %vm1071 = vcmp.eq.f32.partialorder %v969, inf
    %v1072 = vsel %vm1071, %v969, %v1070
    %vm1073 = vcmp.eq.f32.partialorder %v969, 0.0
    %v1074 = vand.u32 %v969, 2147483648
    %v1075 = vsel %vm1073, %v1074, %v1072
    %v1076 = vrsqrt.pop %v970
    %v1077 = vmul.f32 %v970, %v1076
    %vm1078 = vcmp.eq.f32.partialorder %v970, inf
    %v1079 = vsel %vm1078, %v970, %v1077
    %vm1080 = vcmp.eq.f32.partialorder %v970, 0.0
    %v1081 = vand.u32 %v970, 2147483648
    %v1082 = vsel %vm1080, %v1081, %v1079
    %v1083 = vrsqrt.pop %v971
    %v1084 = vmul.f32 %v971, %v1083
    %vm1085 = vcmp.eq.f32.partialorder %v971, inf
    %v1086 = vsel %vm1085, %v971, %v1084
    %vm1087 = vcmp.eq.f32.partialorder %v971, 0.0
    %v1088 = vand.u32 %v971, 2147483648
    %v1089 = vsel %vm1087, %v1088, %v1086
    %v1090 = vrsqrt.pop %v972
    %v1091 = vmul.f32 %v972, %v1090
    %vm1092 = vcmp.eq.f32.partialorder %v972, inf
    %v1093 = vsel %vm1092, %v972, %v1091
    %vm1094 = vcmp.eq.f32.partialorder %v972, 0.0
    %v1095 = vand.u32 %v972, 2147483648
    %v1096 = vsel %vm1094, %v1095, %v1093
    %v1097 = vrsqrt.pop %v973
    %v1098 = vmul.f32 %v973, %v1097
    %vm1099 = vcmp.eq.f32.partialorder %v973, inf
    %v1100 = vsel %vm1099, %v973, %v1098
    %vm1101 = vcmp.eq.f32.partialorder %v973, 0.0
    %v1102 = vand.u32 %v973, 2147483648
    %v1103 = vsel %vm1101, %v1102, %v1100
    %v1104 = vrsqrt.pop %v974
    %v1105 = vmul.f32 %v974, %v1104
    %vm1106 = vcmp.eq.f32.partialorder %v974, inf
    %v1107 = vsel %vm1106, %v974, %v1105
    %vm1108 = vcmp.eq.f32.partialorder %v974, 0.0
    %v1109 = vand.u32 %v974, 2147483648
    %v1110 = vsel %vm1108, %v1109, %v1107
    %v1111 = vrsqrt.pop %v975
    %v1112 = vmul.f32 %v975, %v1111
    %vm1113 = vcmp.eq.f32.partialorder %v975, inf
    %v1114 = vsel %vm1113, %v975, %v1112
    %vm1115 = vcmp.eq.f32.partialorder %v975, 0.0
    %v1116 = vand.u32 %v975, 2147483648
    %v1117 = vsel %vm1115, %v1116, %v1114
    %v1118 = vrsqrt.pop %v976
    %v1119 = vmul.f32 %v976, %v1118
    %vm1120 = vcmp.eq.f32.partialorder %v976, inf
    %v1121 = vsel %vm1120, %v976, %v1119
    %vm1122 = vcmp.eq.f32.partialorder %v976, 0.0
    %v1123 = vand.u32 %v976, 2147483648
    %v1124 = vsel %vm1122, %v1123, %v1121
    %v1125 = vrsqrt.pop %v977
    %v1126 = vmul.f32 %v977, %v1125
    %vm1127 = vcmp.eq.f32.partialorder %v977, inf
    %v1128 = vsel %vm1127, %v977, %v1126
    %vm1129 = vcmp.eq.f32.partialorder %v977, 0.0
    %v1130 = vand.u32 %v977, 2147483648
    %v1131 = vsel %vm1129, %v1130, %v1128
    %v1132 = vrsqrt.pop %v978
    %v1133 = vmul.f32 %v978, %v1132
    %vm1134 = vcmp.eq.f32.partialorder %v978, inf
    %v1135 = vsel %vm1134, %v978, %v1133
    %vm1136 = vcmp.eq.f32.partialorder %v978, 0.0
    %v1137 = vand.u32 %v978, 2147483648
    %v1138 = vsel %vm1136, %v1137, %v1135
    %v1139 = vrsqrt.pop %v979
    %v1140 = vmul.f32 %v979, %v1139
    %vm1141 = vcmp.eq.f32.partialorder %v979, inf
    %v1142 = vsel %vm1141, %v979, %v1140
    %vm1143 = vcmp.eq.f32.partialorder %v979, 0.0
    %v1144 = vand.u32 %v979, 2147483648
    %v1145 = vsel %vm1143, %v1144, %v1142
    %v1146 = vrsqrt.pop %v980
    %v1147 = vmul.f32 %v980, %v1146
    %vm1148 = vcmp.eq.f32.partialorder %v980, inf
    %v1149 = vsel %vm1148, %v980, %v1147
    %vm1150 = vcmp.eq.f32.partialorder %v980, 0.0
    %v1151 = vand.u32 %v980, 2147483648
    %v1152 = vsel %vm1150, %v1151, %v1149
    %v1153 = vrsqrt.pop %v981
    %v1154 = vmul.f32 %v981, %v1153
    %vm1155 = vcmp.eq.f32.partialorder %v981, inf
    %v1156 = vsel %vm1155, %v981, %v1154
    %vm1157 = vcmp.eq.f32.partialorder %v981, 0.0
    %v1158 = vand.u32 %v981, 2147483648
    %v1159 = vsel %vm1157, %v1158, %v1156
    %v1160 = vrsqrt.pop %v982
    %v1161 = vmul.f32 %v982, %v1160
    %vm1162 = vcmp.eq.f32.partialorder %v982, inf
    %v1163 = vsel %vm1162, %v982, %v1161
    %vm1164 = vcmp.eq.f32.partialorder %v982, 0.0
    %v1165 = vand.u32 %v982, 2147483648
    %v1166 = vsel %vm1164, %v1165, %v1163
    %v1167 = vrsqrt.pop %v983
    %v1168 = vmul.f32 %v983, %v1167
    %vm1169 = vcmp.eq.f32.partialorder %v983, inf
    %v1170 = vsel %vm1169, %v983, %v1168
    %vm1171 = vcmp.eq.f32.partialorder %v983, 0.0
    %v1172 = vand.u32 %v983, 2147483648
    %v1173 = vsel %vm1171, %v1172, %v1170
    %v1174 = vrsqrt.pop %v984
    %v1175 = vmul.f32 %v984, %v1174
    %vm1176 = vcmp.eq.f32.partialorder %v984, inf
    %v1177 = vsel %vm1176, %v984, %v1175
    %vm1178 = vcmp.eq.f32.partialorder %v984, 0.0
    %v1179 = vand.u32 %v984, 2147483648
    %v1180 = vsel %vm1178, %v1179, %v1177
    %v1181 = vrsqrt.pop %v985
    %v1182 = vmul.f32 %v985, %v1181
    %vm1183 = vcmp.eq.f32.partialorder %v985, inf
    %v1184 = vsel %vm1183, %v985, %v1182
    %vm1185 = vcmp.eq.f32.partialorder %v985, 0.0
    %v1186 = vand.u32 %v985, 2147483648
    %v1187 = vsel %vm1185, %v1186, %v1184
    %v1188 = vrsqrt.pop %v986
    %v1189 = vmul.f32 %v986, %v1188
    %vm1190 = vcmp.eq.f32.partialorder %v986, inf
    %v1191 = vsel %vm1190, %v986, %v1189
    %vm1192 = vcmp.eq.f32.partialorder %v986, 0.0
    %v1193 = vand.u32 %v986, 2147483648
    %v1194 = vsel %vm1192, %v1193, %v1191
    %v1195 = vrsqrt.pop %v987
    %v1196 = vmul.f32 %v987, %v1195
    %vm1197 = vcmp.eq.f32.partialorder %v987, inf
    %v1198 = vsel %vm1197, %v987, %v1196
    %vm1199 = vcmp.eq.f32.partialorder %v987, 0.0
    %v1200 = vand.u32 %v987, 2147483648
    %v1201 = vsel %vm1199, %v1200, %v1198
    %v1202 = vrsqrt.pop %v988
    %v1203 = vmul.f32 %v988, %v1202
    %vm1204 = vcmp.eq.f32.partialorder %v988, inf
    %v1205 = vsel %vm1204, %v988, %v1203
    %vm1206 = vcmp.eq.f32.partialorder %v988, 0.0
    %v1207 = vand.u32 %v988, 2147483648
    %v1208 = vsel %vm1206, %v1207, %v1205
    %v1209 = vrsqrt.pop %v989
    %v1210 = vmul.f32 %v989, %v1209
    %vm1211 = vcmp.eq.f32.partialorder %v989, inf
    %v1212 = vsel %vm1211, %v989, %v1210
    %vm1213 = vcmp.eq.f32.partialorder %v989, 0.0
    %v1214 = vand.u32 %v989, 2147483648
    %v1215 = vsel %vm1213, %v1214, %v1212
    %v1216 = vrsqrt.pop %v990
    %v1217 = vmul.f32 %v990, %v1216
    %vm1218 = vcmp.eq.f32.partialorder %v990, inf
    %v1219 = vsel %vm1218, %v990, %v1217
    %vm1220 = vcmp.eq.f32.partialorder %v990, 0.0
    %v1221 = vand.u32 %v990, 2147483648
    %v1222 = vsel %vm1220, %v1221, %v1219
    %v1223 = vrsqrt.pop %v991
    %v1224 = vmul.f32 %v991, %v1223
    %vm1225 = vcmp.eq.f32.partialorder %v991, inf
    %v1226 = vsel %vm1225, %v991, %v1224
    %vm1227 = vcmp.eq.f32.partialorder %v991, 0.0
    %v1228 = vand.u32 %v991, 2147483648
    %v1229 = vsel %vm1227, %v1228, %v1226
    %v1230 = vrsqrt.pop %v992
    %v1231 = vmul.f32 %v992, %v1230
    %vm1232 = vcmp.eq.f32.partialorder %v992, inf
    %v1233 = vsel %vm1232, %v992, %v1231
    %vm1234 = vcmp.eq.f32.partialorder %v992, 0.0
    %v1235 = vand.u32 %v992, 2147483648
    %v1236 = vsel %vm1234, %v1235, %v1233
    %v1237 = vrsqrt.pop %v993
    %v1238 = vmul.f32 %v993, %v1237
    %vm1239 = vcmp.eq.f32.partialorder %v993, inf
    %v1240 = vsel %vm1239, %v993, %v1238
    %vm1241 = vcmp.eq.f32.partialorder %v993, 0.0
    %v1242 = vand.u32 %v993, 2147483648
    %v1243 = vsel %vm1241, %v1242, %v1240
    %v1244 = vrsqrt.pop %v994
    %v1245 = vmul.f32 %v994, %v1244
    %vm1246 = vcmp.eq.f32.partialorder %v994, inf
    %v1247 = vsel %vm1246, %v994, %v1245
    %vm1248 = vcmp.eq.f32.partialorder %v994, 0.0
    %v1249 = vand.u32 %v994, 2147483648
    %v1250 = vsel %vm1248, %v1249, %v1247
    %v1251 = vrsqrt.pop %v995
    %v1252 = vmul.f32 %v995, %v1251
    %vm1253 = vcmp.eq.f32.partialorder %v995, inf
    %v1254 = vsel %vm1253, %v995, %v1252
    %vm1255 = vcmp.eq.f32.partialorder %v995, 0.0
    %v1256 = vand.u32 %v995, 2147483648
    %v1257 = vsel %vm1255, %v1256, %v1254
    %v1258 = vrsqrt.pop %v996
    %v1259 = vmul.f32 %v996, %v1258
    %vm1260 = vcmp.eq.f32.partialorder %v996, inf
    %v1261 = vsel %vm1260, %v996, %v1259
    %vm1262 = vcmp.eq.f32.partialorder %v996, 0.0
    %v1263 = vand.u32 %v996, 2147483648
    %v1264 = vsel %vm1262, %v1263, %v1261
    %v1265 = vrsqrt.pop %v997
    %v1266 = vmul.f32 %v997, %v1265
    %vm1267 = vcmp.eq.f32.partialorder %v997, inf
    %v1268 = vsel %vm1267, %v997, %v1266
    %vm1269 = vcmp.eq.f32.partialorder %v997, 0.0
    %v1270 = vand.u32 %v997, 2147483648
    %v1271 = vsel %vm1269, %v1270, %v1268
    %v1272 = vrsqrt.pop %v998
    %v1273 = vmul.f32 %v998, %v1272
    %vm1274 = vcmp.eq.f32.partialorder %v998, inf
    %v1275 = vsel %vm1274, %v998, %v1273
    %vm1276 = vcmp.eq.f32.partialorder %v998, 0.0
    %v1277 = vand.u32 %v998, 2147483648
    %v1278 = vsel %vm1276, %v1277, %v1275
    %v1279 = vrsqrt.pop %v999
    %v1280 = vmul.f32 %v999, %v1279
    %vm1281 = vcmp.eq.f32.partialorder %v999, inf
    %v1282 = vsel %vm1281, %v999, %v1280
    %vm1283 = vcmp.eq.f32.partialorder %v999, 0.0
    %v1284 = vand.u32 %v999, 2147483648
    %v1285 = vsel %vm1283, %v1284, %v1282
    %v1286 = vrsqrt.pop %v1000
    %v1287 = vmul.f32 %v1000, %v1286
    %vm1288 = vcmp.eq.f32.partialorder %v1000, inf
    %v1289 = vsel %vm1288, %v1000, %v1287
    %vm1290 = vcmp.eq.f32.partialorder %v1000, 0.0
    %v1291 = vand.u32 %v1000, 2147483648
    %v1292 = vsel %vm1290, %v1291, %v1289
    %v1293 = vrsqrt.pop %v1001
    %v1294 = vmul.f32 %v1001, %v1293
    %vm1295 = vcmp.eq.f32.partialorder %v1001, inf
    %v1296 = vsel %vm1295, %v1001, %v1294
    %vm1297 = vcmp.eq.f32.partialorder %v1001, 0.0
    %v1298 = vand.u32 %v1001, 2147483648
    %v1299 = vsel %vm1297, %v1298, %v1296
    %v1300 = vrsqrt.pop %v1002
    %v1301 = vmul.f32 %v1002, %v1300
    %vm1302 = vcmp.eq.f32.partialorder %v1002, inf
    %v1303 = vsel %vm1302, %v1002, %v1301
    %vm1304 = vcmp.eq.f32.partialorder %v1002, 0.0
    %v1305 = vand.u32 %v1002, 2147483648
    %v1306 = vsel %vm1304, %v1305, %v1303
    %v1307 = vrsqrt.pop %v1003
    %v1308 = vmul.f32 %v1003, %v1307
    %vm1309 = vcmp.eq.f32.partialorder %v1003, inf
    %v1310 = vsel %vm1309, %v1003, %v1308
    %vm1311 = vcmp.eq.f32.partialorder %v1003, 0.0
    %v1312 = vand.u32 %v1003, 2147483648
    %v1313 = vsel %vm1311, %v1312, %v1310
    %v1314 = vrsqrt.pop %v1004
    %v1315 = vmul.f32 %v1004, %v1314
    %vm1316 = vcmp.eq.f32.partialorder %v1004, inf
    %v1317 = vsel %vm1316, %v1004, %v1315
    %vm1318 = vcmp.eq.f32.partialorder %v1004, 0.0
    %v1319 = vand.u32 %v1004, 2147483648
    %v1320 = vsel %vm1318, %v1319, %v1317
    %v1321 = vrsqrt.pop %v1005
    %v1322 = vmul.f32 %v1005, %v1321
    %vm1323 = vcmp.eq.f32.partialorder %v1005, inf
    %v1324 = vsel %vm1323, %v1005, %v1322
    %vm1325 = vcmp.eq.f32.partialorder %v1005, 0.0
    %v1326 = vand.u32 %v1005, 2147483648
    %v1327 = vsel %vm1325, %v1326, %v1324
    %v1328 = vrsqrt.pop %v1006
    %v1329 = vmul.f32 %v1006, %v1328
    %vm1330 = vcmp.eq.f32.partialorder %v1006, inf
    %v1331 = vsel %vm1330, %v1006, %v1329
    %vm1332 = vcmp.eq.f32.partialorder %v1006, 0.0
    %v1333 = vand.u32 %v1006, 2147483648
    %v1334 = vsel %vm1332, %v1333, %v1331
    %v1335 = vrsqrt.pop %v1007
    %v1336 = vmul.f32 %v1007, %v1335
    %vm1337 = vcmp.eq.f32.partialorder %v1007, inf
    %v1338 = vsel %vm1337, %v1007, %v1336
    %vm1339 = vcmp.eq.f32.partialorder %v1007, 0.0
    %v1340 = vand.u32 %v1007, 2147483648
    %v1341 = vsel %vm1339, %v1340, %v1338
    %v1342 = vrsqrt.pop %v1008
    %v1343 = vmul.f32 %v1008, %v1342
    %vm1344 = vcmp.eq.f32.partialorder %v1008, inf
    %v1345 = vsel %vm1344, %v1008, %v1343
    %vm1346 = vcmp.eq.f32.partialorder %v1008, 0.0
    %v1347 = vand.u32 %v1008, 2147483648
    %v1348 = vsel %vm1346, %v1347, %v1345
    %v1349 = vrsqrt.pop %v1009
    %v1350 = vmul.f32 %v1009, %v1349
    %vm1351 = vcmp.eq.f32.partialorder %v1009, inf
    %v1352 = vsel %vm1351, %v1009, %v1350
    %vm1353 = vcmp.eq.f32.partialorder %v1009, 0.0
    %v1354 = vand.u32 %v1009, 2147483648
    %v1355 = vsel %vm1353, %v1354, %v1352
    %v1356 = vrsqrt.pop %v1010
    %v1357 = vmul.f32 %v1010, %v1356
    %vm1358 = vcmp.eq.f32.partialorder %v1010, inf
    %v1359 = vsel %vm1358, %v1010, %v1357
    %vm1360 = vcmp.eq.f32.partialorder %v1010, 0.0
    %v1361 = vand.u32 %v1010, 2147483648
    %v1362 = vsel %vm1360, %v1361, %v1359
    %v1363 = vrsqrt.pop %v1011
    %v1364 = vmul.f32 %v1011, %v1363
    %vm1365 = vcmp.eq.f32.partialorder %v1011, inf
    %v1366 = vsel %vm1365, %v1011, %v1364
    %vm1367 = vcmp.eq.f32.partialorder %v1011, 0.0
    %v1368 = vand.u32 %v1011, 2147483648
    %v1369 = vsel %vm1367, %v1368, %v1366
    %v1370 = vrsqrt.pop %v1012
    %v1371 = vmul.f32 %v1012, %v1370
    %vm1372 = vcmp.eq.f32.partialorder %v1012, inf
    %v1373 = vsel %vm1372, %v1012, %v1371
    %vm1374 = vcmp.eq.f32.partialorder %v1012, 0.0
    %v1375 = vand.u32 %v1012, 2147483648
    %v1376 = vsel %vm1374, %v1375, %v1373
    %v1377 = vrsqrt.pop %v1013
    %v1378 = vmul.f32 %v1013, %v1377
    %vm1379 = vcmp.eq.f32.partialorder %v1013, inf
    %v1380 = vsel %vm1379, %v1013, %v1378
    %vm1381 = vcmp.eq.f32.partialorder %v1013, 0.0
    %v1382 = vand.u32 %v1013, 2147483648
    %v1383 = vsel %vm1381, %v1382, %v1380
    %v1384 = vrsqrt.pop %v1014
    %v1385 = vmul.f32 %v1014, %v1384
    %vm1386 = vcmp.eq.f32.partialorder %v1014, inf
    %v1387 = vsel %vm1386, %v1014, %v1385
    %vm1388 = vcmp.eq.f32.partialorder %v1014, 0.0
    %v1389 = vand.u32 %v1014, 2147483648
    %v1390 = vsel %vm1388, %v1389, %v1387
    %v1391 = vrsqrt.pop %v1015
    %v1392 = vmul.f32 %v1015, %v1391
    %vm1393 = vcmp.eq.f32.partialorder %v1015, inf
    %v1394 = vsel %vm1393, %v1015, %v1392
    %vm1395 = vcmp.eq.f32.partialorder %v1015, 0.0
    %v1396 = vand.u32 %v1015, 2147483648
    %v1397 = vsel %vm1395, %v1396, %v1394
    %v1398 = vrsqrt.pop %v1016
    %v1399 = vmul.f32 %v1016, %v1398
    %vm1400 = vcmp.eq.f32.partialorder %v1016, inf
    %v1401 = vsel %vm1400, %v1016, %v1399
    %vm1402 = vcmp.eq.f32.partialorder %v1016, 0.0
    %v1403 = vand.u32 %v1016, 2147483648
    %v1404 = vsel %vm1402, %v1403, %v1401
    %v1405 = vrsqrt.pop %v1017
    %v1406 = vmul.f32 %v1017, %v1405
    %vm1407 = vcmp.eq.f32.partialorder %v1017, inf
    %v1408 = vsel %vm1407, %v1017, %v1406
    %vm1409 = vcmp.eq.f32.partialorder %v1017, 0.0
    %v1410 = vand.u32 %v1017, 2147483648
    %v1411 = vsel %vm1409, %v1410, %v1408
    %v1412 = vrsqrt.pop %v1018
    %v1413 = vmul.f32 %v1018, %v1412
    %vm1414 = vcmp.eq.f32.partialorder %v1018, inf
    %v1415 = vsel %vm1414, %v1018, %v1413
    %vm1416 = vcmp.eq.f32.partialorder %v1018, 0.0
    %v1417 = vand.u32 %v1018, 2147483648
    %v1418 = vsel %vm1416, %v1417, %v1415
    %v1419 = vrsqrt.pop %v1019
    %v1420 = vmul.f32 %v1019, %v1419
    %vm1421 = vcmp.eq.f32.partialorder %v1019, inf
    %v1422 = vsel %vm1421, %v1019, %v1420
    %vm1423 = vcmp.eq.f32.partialorder %v1019, 0.0
    %v1424 = vand.u32 %v1019, 2147483648
    %v1425 = vsel %vm1423, %v1424, %v1422
    %v1426 = vrsqrt.pop %v1020
    %v1427 = vmul.f32 %v1020, %v1426
    %vm1428 = vcmp.eq.f32.partialorder %v1020, inf
    %v1429 = vsel %vm1428, %v1020, %v1427
    %vm1430 = vcmp.eq.f32.partialorder %v1020, 0.0
    %v1431 = vand.u32 %v1020, 2147483648
    %v1432 = vsel %vm1430, %v1431, %v1429
    %v1433 = vrsqrt.pop %v1021
    %v1434 = vmul.f32 %v1021, %v1433
    %vm1435 = vcmp.eq.f32.partialorder %v1021, inf
    %v1436 = vsel %vm1435, %v1021, %v1434
    %vm1437 = vcmp.eq.f32.partialorder %v1021, 0.0
    %v1438 = vand.u32 %v1021, 2147483648
    %v1439 = vsel %vm1437, %v1438, %v1436
    %v1440 = vrsqrt.pop %v1022
    %v1441 = vmul.f32 %v1022, %v1440
    %vm1442 = vcmp.eq.f32.partialorder %v1022, inf
    %v1443 = vsel %vm1442, %v1022, %v1441
    %vm1444 = vcmp.eq.f32.partialorder %v1022, 0.0
    %v1445 = vand.u32 %v1022, 2147483648
    %v1446 = vsel %vm1444, %v1445, %v1443
    %v1447 = vrsqrt.pop %v1023
    %v1448 = vmul.f32 %v1023, %v1447
    %vm1449 = vcmp.eq.f32.partialorder %v1023, inf
    %v1450 = vsel %vm1449, %v1023, %v1448
    %vm1451 = vcmp.eq.f32.partialorder %v1023, 0.0
    %v1452 = vand.u32 %v1023, 2147483648
    %v1453 = vsel %vm1451, %v1452, %v1450
    %v1454 = vrsqrt.pop %v1024
    %v1455 = vmul.f32 %v1024, %v1454
    %vm1456 = vcmp.eq.f32.partialorder %v1024, inf
    %v1457 = vsel %vm1456, %v1024, %v1455
    %vm1458 = vcmp.eq.f32.partialorder %v1024, 0.0
    %v1459 = vand.u32 %v1024, 2147483648
    %v1460 = vsel %vm1458, %v1459, %v1457
    %v1461 = vrsqrt.pop %v1025
    %v1462 = vmul.f32 %v1025, %v1461
    %vm1463 = vcmp.eq.f32.partialorder %v1025, inf
    %v1464 = vsel %vm1463, %v1025, %v1462
    %vm1465 = vcmp.eq.f32.partialorder %v1025, 0.0
    %v1466 = vand.u32 %v1025, 2147483648
    %v1467 = vsel %vm1465, %v1466, %v1464
    %v1468 = vrsqrt.pop %v1026
    %v1469 = vmul.f32 %v1026, %v1468
    %vm1470 = vcmp.eq.f32.partialorder %v1026, inf
    %v1471 = vsel %vm1470, %v1026, %v1469
    %vm1472 = vcmp.eq.f32.partialorder %v1026, 0.0
    %v1473 = vand.u32 %v1026, 2147483648
    %v1474 = vsel %vm1472, %v1473, %v1471
    %v1475 = vmul.f32 %v1033, 0.2236068
    %v1476 = vmul.f32 %v1040, 0.2236068
    %v1477 = vmul.f32 %v1047, 0.2236068
    %v1478 = vmul.f32 %v1054, 0.2236068
    %v1479 = vmul.f32 %v1061, 0.2236068
    %v1480 = vmul.f32 %v1068, 0.2236068
    %v1481 = vmul.f32 %v1075, 0.2236068
    %v1482 = vmul.f32 %v1082, 0.2236068
    %v1483 = vmul.f32 %v1089, 0.2236068
    %v1484 = vmul.f32 %v1096, 0.2236068
    %v1485 = vmul.f32 %v1103, 0.2236068
    %v1486 = vmul.f32 %v1110, 0.2236068
    %v1487 = vmul.f32 %v1117, 0.2236068
    %v1488 = vmul.f32 %v1124, 0.2236068
    %v1489 = vmul.f32 %v1131, 0.2236068
    %v1490 = vmul.f32 %v1138, 0.2236068
    %v1491 = vmul.f32 %v1145, 0.2236068
    %v1492 = vmul.f32 %v1152, 0.2236068
    %v1493 = vmul.f32 %v1159, 0.2236068
    %v1494 = vmul.f32 %v1166, 0.2236068
    %v1495 = vmul.f32 %v1173, 0.2236068
    %v1496 = vmul.f32 %v1180, 0.2236068
    %v1497 = vmul.f32 %v1187, 0.2236068
    %v1498 = vmul.f32 %v1194, 0.2236068
    %v1499 = vmul.f32 %v1201, 0.2236068
    %v1500 = vmul.f32 %v1208, 0.2236068
    %v1501 = vmul.f32 %v1215, 0.2236068
    %v1502 = vmul.f32 %v1222, 0.2236068
    %v1503 = vmul.f32 %v1229, 0.2236068
    %v1504 = vmul.f32 %v1236, 0.2236068
    %v1505 = vmul.f32 %v1243, 0.2236068
    %v1506 = vmul.f32 %v1250, 0.2236068
    %v1507 = vmul.f32 %v1257, 0.2236068
    %v1508 = vmul.f32 %v1264, 0.2236068
    %v1509 = vmul.f32 %v1271, 0.2236068
    %v1510 = vmul.f32 %v1278, 0.2236068
    %v1511 = vmul.f32 %v1285, 0.2236068
    %v1512 = vmul.f32 %v1292, 0.2236068
    %v1513 = vmul.f32 %v1299, 0.2236068
    %v1514 = vmul.f32 %v1306, 0.2236068
    %v1515 = vmul.f32 %v1313, 0.2236068
    %v1516 = vmul.f32 %v1320, 0.2236068
    %v1517 = vmul.f32 %v1327, 0.2236068
    %v1518 = vmul.f32 %v1334, 0.2236068
    %v1519 = vmul.f32 %v1341, 0.2236068
    %v1520 = vmul.f32 %v1348, 0.2236068
    %v1521 = vmul.f32 %v1355, 0.2236068
    %v1522 = vmul.f32 %v1362, 0.2236068
    %v1523 = vmul.f32 %v1369, 0.2236068
    %v1524 = vmul.f32 %v1376, 0.2236068
    %v1525 = vmul.f32 %v1383, 0.2236068
    %v1526 = vmul.f32 %v1390, 0.2236068
    %v1527 = vmul.f32 %v1397, 0.2236068
    %v1528 = vmul.f32 %v1404, 0.2236068
    %v1529 = vmul.f32 %v1411, 0.2236068
    %v1530 = vmul.f32 %v1418, 0.2236068
    %v1531 = vmul.f32 %v1425, 0.2236068
    %v1532 = vmul.f32 %v1432, 0.2236068
    %v1533 = vmul.f32 %v1439, 0.2236068
    %v1534 = vmul.f32 %v1446, 0.2236068
    %v1535 = vmul.f32 %v1453, 0.2236068
    %v1536 = vmul.f32 %v1460, 0.2236068
    %v1537 = vmul.f32 %v1467, 0.2236068
    %v1538 = vmul.f32 %v1474, 0.2236068
    %v1539 = vsub.f32 0.0, %v1475
    %v1540 = vsub.f32 0.0, %v1476
    %v1541 = vsub.f32 0.0, %v1477
    %v1542 = vsub.f32 0.0, %v1478
    %v1543 = vsub.f32 0.0, %v1479
    %v1544 = vsub.f32 0.0, %v1480
    %v1545 = vsub.f32 0.0, %v1481
    %v1546 = vsub.f32 0.0, %v1482
    %v1547 = vsub.f32 0.0, %v1483
    %v1548 = vsub.f32 0.0, %v1484
    %v1549 = vsub.f32 0.0, %v1485
    %v1550 = vsub.f32 0.0, %v1486
    %v1551 = vsub.f32 0.0, %v1487
    %v1552 = vsub.f32 0.0, %v1488
    %v1553 = vsub.f32 0.0, %v1489
    %v1554 = vsub.f32 0.0, %v1490
    %v1555 = vsub.f32 0.0, %v1491
    %v1556 = vsub.f32 0.0, %v1492
    %v1557 = vsub.f32 0.0, %v1493
    %v1558 = vsub.f32 0.0, %v1494
    %v1559 = vsub.f32 0.0, %v1495
    %v1560 = vsub.f32 0.0, %v1496
    %v1561 = vsub.f32 0.0, %v1497
    %v1562 = vsub.f32 0.0, %v1498
    %v1563 = vsub.f32 0.0, %v1499
    %v1564 = vsub.f32 0.0, %v1500
    %v1565 = vsub.f32 0.0, %v1501
    %v1566 = vsub.f32 0.0, %v1502
    %v1567 = vsub.f32 0.0, %v1503
    %v1568 = vsub.f32 0.0, %v1504
    %v1569 = vsub.f32 0.0, %v1505
    %v1570 = vsub.f32 0.0, %v1506
    %v1571 = vsub.f32 0.0, %v1507
    %v1572 = vsub.f32 0.0, %v1508
    %v1573 = vsub.f32 0.0, %v1509
    %v1574 = vsub.f32 0.0, %v1510
    %v1575 = vsub.f32 0.0, %v1511
    %v1576 = vsub.f32 0.0, %v1512
    %v1577 = vsub.f32 0.0, %v1513
    %v1578 = vsub.f32 0.0, %v1514
    %v1579 = vsub.f32 0.0, %v1515
    %v1580 = vsub.f32 0.0, %v1516
    %v1581 = vsub.f32 0.0, %v1517
    %v1582 = vsub.f32 0.0, %v1518
    %v1583 = vsub.f32 0.0, %v1519
    %v1584 = vsub.f32 0.0, %v1520
    %v1585 = vsub.f32 0.0, %v1521
    %v1586 = vsub.f32 0.0, %v1522
    %v1587 = vsub.f32 0.0, %v1523
    %v1588 = vsub.f32 0.0, %v1524
    %v1589 = vsub.f32 0.0, %v1525
    %v1590 = vsub.f32 0.0, %v1526
    %v1591 = vsub.f32 0.0, %v1527
    %v1592 = vsub.f32 0.0, %v1528
    %v1593 = vsub.f32 0.0, %v1529
    %v1594 = vsub.f32 0.0, %v1530
    %v1595 = vsub.f32 0.0, %v1531
    %v1596 = vsub.f32 0.0, %v1532
    %v1597 = vsub.f32 0.0, %v1533
    %v1598 = vsub.f32 0.0, %v1534
    %v1599 = vsub.f32 0.0, %v1535
    %v1600 = vsub.f32 0.0, %v1536
    %v1601 = vsub.f32 0.0, %v1537
    %v1602 = vsub.f32 0.0, %v1538
    %v1603 = vmul.f32 %v1539, 1.442695
    %v1604 = vpow.pop %v1603
    %v1605 = vmul.f32 %v1540, 1.442695
    %v1606 = vpow.pop %v1605
    %v1607 = vmul.f32 %v1541, 1.442695
    %v1608 = vpow.pop %v1607
    %v1609 = vmul.f32 %v1542, 1.442695
    %v1610 = vpow.pop %v1609
    %v1611 = vmul.f32 %v1543, 1.442695
    %v1612 = vpow.pop %v1611
    %v1613 = vmul.f32 %v1544, 1.442695
    %v1614 = vpow.pop %v1613
    %v1615 = vmul.f32 %v1545, 1.442695
    %v1616 = vpow.pop %v1615
    %v1617 = vmul.f32 %v1546, 1.442695
    %v1618 = vpow.pop %v1617
    %v1619 = vmul.f32 %v1547, 1.442695
    %v1620 = vpow.pop %v1619
    %v1621 = vmul.f32 %v1548, 1.442695
    %v1622 = vpow.pop %v1621
    %v1623 = vmul.f32 %v1549, 1.442695
    %v1624 = vpow.pop %v1623
    %v1625 = vmul.f32 %v1550, 1.442695
    %v1626 = vpow.pop %v1625
    %v1627 = vmul.f32 %v1551, 1.442695
    %v1628 = vpow.pop %v1627
    %v1629 = vmul.f32 %v1552, 1.442695
    %v1630 = vpow.pop %v1629
    %v1631 = vmul.f32 %v1553, 1.442695
    %v1632 = vpow.pop %v1631
    %v1633 = vmul.f32 %v1554, 1.442695
    %v1634 = vpow.pop %v1633
    %v1635 = vmul.f32 %v1555, 1.442695
    %v1636 = vpow.pop %v1635
    %v1637 = vmul.f32 %v1556, 1.442695
    %v1638 = vpow.pop %v1637
    %v1639 = vmul.f32 %v1557, 1.442695
    %v1640 = vpow.pop %v1639
    %v1641 = vmul.f32 %v1558, 1.442695
    %v1642 = vpow.pop %v1641
    %v1643 = vmul.f32 %v1559, 1.442695
    %v1644 = vpow.pop %v1643
    %v1645 = vmul.f32 %v1560, 1.442695
    %v1646 = vpow.pop %v1645
    %v1647 = vmul.f32 %v1561, 1.442695
    %v1648 = vpow.pop %v1647
    %v1649 = vmul.f32 %v1562, 1.442695
    %v1650 = vpow.pop %v1649
    %v1651 = vmul.f32 %v1563, 1.442695
    %v1652 = vpow.pop %v1651
    %v1653 = vmul.f32 %v1564, 1.442695
    %v1654 = vpow.pop %v1653
    %v1655 = vmul.f32 %v1565, 1.442695
    %v1656 = vpow.pop %v1655
    %v1657 = vmul.f32 %v1566, 1.442695
    %v1658 = vpow.pop %v1657
    %v1659 = vmul.f32 %v1567, 1.442695
    %v1660 = vpow.pop %v1659
    %v1661 = vmul.f32 %v1568, 1.442695
    %v1662 = vpow.pop %v1661
    %v1663 = vmul.f32 %v1569, 1.442695
    %v1664 = vpow.pop %v1663
    %v1665 = vmul.f32 %v1570, 1.442695
    %v1666 = vpow.pop %v1665
    %v1667 = vmul.f32 %v1571, 1.442695
    %v1668 = vpow.pop %v1667
    %v1669 = vmul.f32 %v1572, 1.442695
    %v1670 = vpow.pop %v1669
    %v1671 = vmul.f32 %v1573, 1.442695
    %v1672 = vpow.pop %v1671
    %v1673 = vmul.f32 %v1574, 1.442695
    %v1674 = vpow.pop %v1673
    %v1675 = vmul.f32 %v1575, 1.442695
    %v1676 = vpow.pop %v1675
    %v1677 = vmul.f32 %v1576, 1.442695
    %v1678 = vpow.pop %v1677
    %v1679 = vmul.f32 %v1577, 1.442695
    %v1680 = vpow.pop %v1679
    %v1681 = vmul.f32 %v1578, 1.442695
    %v1682 = vpow.pop %v1681
    %v1683 = vmul.f32 %v1579, 1.442695
    %v1684 = vpow.pop %v1683
    %v1685 = vmul.f32 %v1580, 1.442695
    %v1686 = vpow.pop %v1685
    %v1687 = vmul.f32 %v1581, 1.442695
    %v1688 = vpow.pop %v1687
    %v1689 = vmul.f32 %v1582, 1.442695
    %v1690 = vpow.pop %v1689
    %v1691 = vmul.f32 %v1583, 1.442695
    %v1692 = vpow.pop %v1691
    %v1693 = vmul.f32 %v1584, 1.442695
    %v1694 = vpow.pop %v1693
    %v1695 = vmul.f32 %v1585, 1.442695
    %v1696 = vpow.pop %v1695
    %v1697 = vmul.f32 %v1586, 1.442695
    %v1698 = vpow.pop %v1697
    %v1699 = vmul.f32 %v1587, 1.442695
    %v1700 = vpow.pop %v1699
    %v1701 = vmul.f32 %v1588, 1.442695
    %v1702 = vpow.pop %v1701
    %v1703 = vmul.f32 %v1589, 1.442695
    %v1704 = vpow.pop %v1703
    %v1705 = vmul.f32 %v1590, 1.442695
    %v1706 = vpow.pop %v1705
    %v1707 = vmul.f32 %v1591, 1.442695
    %v1708 = vpow.pop %v1707
    %v1709 = vmul.f32 %v1592, 1.442695
    %v1710 = vpow.pop %v1709
    %v1711 = vmul.f32 %v1593, 1.442695
    %v1712 = vpow.pop %v1711
    %v1713 = vmul.f32 %v1594, 1.442695
    %v1714 = vpow.pop %v1713
    %v1715 = vmul.f32 %v1595, 1.442695
    %v1716 = vpow.pop %v1715
    %v1717 = vmul.f32 %v1596, 1.442695
    %v1718 = vpow.pop %v1717
    %v1719 = vmul.f32 %v1597, 1.442695
    %v1720 = vpow.pop %v1719
    %v1721 = vmul.f32 %v1598, 1.442695
    %v1722 = vpow.pop %v1721
    %v1723 = vmul.f32 %v1599, 1.442695
    %v1724 = vpow.pop %v1723
    %v1725 = vmul.f32 %v1600, 1.442695
    %v1726 = vpow.pop %v1725
    %v1727 = vmul.f32 %v1601, 1.442695
    %v1728 = vpow.pop %v1727
    %v1729 = vmul.f32 %v1602, 1.442695
    %v1730 = vpow.pop %v1729
    %v1731 = vmul.f32 %v1604, 0.016666668
    %v1732 = vmul.f32 %v1606, 0.016666668
    %v1733 = vmul.f32 %v1608, 0.016666668
    %v1734 = vmul.f32 %v1610, 0.016666668
    %v1735 = vmul.f32 %v1612, 0.016666668
    %v1736 = vmul.f32 %v1614, 0.016666668
    %v1737 = vmul.f32 %v1616, 0.016666668
    %v1738 = vmul.f32 %v1618, 0.016666668
    %v1739 = vmul.f32 %v1620, 0.016666668
    %v1740 = vmul.f32 %v1622, 0.016666668
    %v1741 = vmul.f32 %v1624, 0.016666668
    %v1742 = vmul.f32 %v1626, 0.016666668
    %v1743 = vmul.f32 %v1628, 0.016666668
    %v1744 = vmul.f32 %v1630, 0.016666668
    %v1745 = vmul.f32 %v1632, 0.016666668
    %v1746 = vmul.f32 %v1634, 0.016666668
    %v1747 = vmul.f32 %v1636, 0.016666668
    %v1748 = vmul.f32 %v1638, 0.016666668
    %v1749 = vmul.f32 %v1640, 0.016666668
    %v1750 = vmul.f32 %v1642, 0.016666668
    %v1751 = vmul.f32 %v1644, 0.016666668
    %v1752 = vmul.f32 %v1646, 0.016666668
    %v1753 = vmul.f32 %v1648, 0.016666668
    %v1754 = vmul.f32 %v1650, 0.016666668
    %v1755 = vmul.f32 %v1652, 0.016666668
    %v1756 = vmul.f32 %v1654, 0.016666668
    %v1757 = vmul.f32 %v1656, 0.016666668
    %v1758 = vmul.f32 %v1658, 0.016666668
    %v1759 = vmul.f32 %v1660, 0.016666668
    %v1760 = vmul.f32 %v1662, 0.016666668
    %v1761 = vmul.f32 %v1664, 0.016666668
    %v1762 = vmul.f32 %v1666, 0.016666668
    %v1763 = vmul.f32 %v1668, 0.016666668
    %v1764 = vmul.f32 %v1670, 0.016666668
    %v1765 = vmul.f32 %v1672, 0.016666668
    %v1766 = vmul.f32 %v1674, 0.016666668
    %v1767 = vmul.f32 %v1676, 0.016666668
    %v1768 = vmul.f32 %v1678, 0.016666668
    %v1769 = vmul.f32 %v1680, 0.016666668
    %v1770 = vmul.f32 %v1682, 0.016666668
    %v1771 = vmul.f32 %v1684, 0.016666668
    %v1772 = vmul.f32 %v1686, 0.016666668
    %v1773 = vmul.f32 %v1688, 0.016666668
    %v1774 = vmul.f32 %v1690, 0.016666668
    %v1775 = vmul.f32 %v1692, 0.016666668
    %v1776 = vmul.f32 %v1694, 0.016666668
    %v1777 = vmul.f32 %v1696, 0.016666668
    %v1778 = vmul.f32 %v1698, 0.016666668
    %v1779 = vmul.f32 %v1700, 0.016666668
    %v1780 = vmul.f32 %v1702, 0.016666668
    %v1781 = vmul.f32 %v1704, 0.016666668
    %v1782 = vmul.f32 %v1706, 0.016666668
    %v1783 = vmul.f32 %v1708, 0.016666668
    %v1784 = vmul.f32 %v1710, 0.016666668
    %v1785 = vmul.f32 %v1712, 0.016666668
    %v1786 = vmul.f32 %v1714, 0.016666668
    %v1787 = vmul.f32 %v1716, 0.016666668
    %v1788 = vmul.f32 %v1718, 0.016666668
    %v1789 = vmul.f32 %v1720, 0.016666668
    %v1790 = vmul.f32 %v1722, 0.016666668
    %v1791 = vmul.f32 %v1724, 0.016666668
    %v1792 = vmul.f32 %v1726, 0.016666668
    %v1793 = vmul.f32 %v1728, 0.016666668
    %v1794 = vmul.f32 %v1730, 0.016666668
    %1795 = vmatprep.subr.mxu0 0.0
    %1796 = vmatpush1.xpose.msra.mxu0 %v251
    %1797 = vmatprep.subr.mxu0 0.0
    %1798 = vmatpush1.xpose.msra.mxu0 %v252
    %1799 = vmatprep.subr.mxu0 0.0
    %1800 = vmatpush1.xpose.msra.mxu0 %v253
    %1801 = vmatprep.subr.mxu0 0.0
    %1802 = vmatpush1.xpose.msra.mxu0 %v254
    %1803 = vmatprep.subr.mxu0 0.0
    %1804 = vmatpush1.xpose.msra.mxu0 %v255
    %1805 = vmatprep.subr.mxu0 0.0
    %1806 = vmatpush1.xpose.msra.mxu0 %v256
    %1807 = vmatprep.subr.mxu0 0.0
    %1808 = vmatpush1.xpose.msra.mxu0 %v257
    %1809 = vmatprep.subr.mxu0 0.0
    %1810 = vmatpush1.xpose.msra.mxu0 %v258
    %1811 = vmatprep.subr.mxu0 0.0
    %1812 = vmatpush1.xpose.msra.mxu0 %v259
    %1813 = vmatprep.subr.mxu0 0.0
    %1814 = vmatpush1.xpose.msra.mxu0 %v260
    %1815 = vmatprep.subr.mxu0 0.0
    %1816 = vmatpush1.xpose.msra.mxu0 %v261
    %1817 = vmatprep.subr.mxu0 0.0
    %1818 = vmatpush1.xpose.msra.mxu0 %v262
    %1819 = vmatprep.subr.mxu0 0.0
    %1820 = vmatpush1.xpose.msra.mxu0 %v263
    %1821 = vmatprep.subr.mxu0 0.0
    %1822 = vmatpush1.xpose.msra.mxu0 %v264
    %1823 = vmatprep.subr.mxu0 0.0
    %1824 = vmatpush1.xpose.msra.mxu0 %v265
    %1825 = vmatprep.subr.mxu0 0.0
    %1826 = vmatpush1.xpose.msra.mxu0 %v266
    %1827 = vmatprep.subr.mxu0 0.0
    %1828 = vmatpush1.xpose.msra.mxu0 %v267
    %1829 = vmatprep.subr.mxu0 0.0
    %1830 = vmatpush1.xpose.msra.mxu0 %v268
    %1831 = vmatprep.subr.mxu0 0.0
    %1832 = vmatpush1.xpose.msra.mxu0 %v269
    %1833 = vmatprep.subr.mxu0 0.0
    %1834 = vmatpush1.xpose.msra.mxu0 %v270
    %1835 = vmatprep.subr.mxu0 0.0
    %1836 = vmatpush1.xpose.msra.mxu0 %v271
    %1837 = vmatprep.subr.mxu0 0.0
    %1838 = vmatpush1.xpose.msra.mxu0 %v272
    %1839 = vmatprep.subr.mxu0 0.0
    %1840 = vmatpush1.xpose.msra.mxu0 %v273
    %1841 = vmatprep.subr.mxu0 0.0
    %1842 = vmatpush1.xpose.msra.mxu0 %v274
    %1843 = vmatprep.subr.mxu0 0.0
    %1844 = vmatpush1.xpose.msra.mxu0 %v275
    %1845 = vmatprep.subr.mxu0 0.0
    %1846 = vmatpush1.xpose.msra.mxu0 %v276
    %1847 = vmatprep.subr.mxu0 0.0
    %1848 = vmatpush1.xpose.msra.mxu0 %v277
    %1849 = vmatprep.subr.mxu0 0.0
    %1850 = vmatpush1.xpose.msra.mxu0 %v278
    %1851 = vmatprep.subr.mxu0 0.0
    %1852 = vmatpush1.xpose.msra.mxu0 %v279
    %1853 = vmatprep.subr.mxu0 0.0
    %1854 = vmatpush1.xpose.msra.mxu0 %v280
    %1855 = vmatprep.subr.mxu0 0.0
    %1856 = vmatpush1.xpose.msra.mxu0 %v281
    %1857 = vmatprep.subr.mxu0 0.0
    %1858 = vmatpush1.xpose.msra.mxu0 %v282
    %1859 = vmatprep.mubr.f32.mxu0 0.0
    %1860 = vmatmul.mubr.f32.gmra.mrb[0].mxu0 %v69
    %v1861 = vpop.f32.mrb[0].mxu0
    %v1862 = vadd.f32 0.0, %v1861
    %v1863 = vpop.f32.mrb[0].mxu0
    %v1864 = vadd.f32 0.0, %v1863
    %1865 = vmatprep.mubr.f32.mxu0 0.0
    %1866 = vmatmul.mubr.f32.gmra.mrb[0].mxu0 %v70
    %v1867 = vpop.f32.mrb[0].mxu0
    %v1868 = vadd.f32 0.0, %v1867
    %v1869 = vpop.f32.mrb[0].mxu0
    %v1870 = vadd.f32 0.0, %v1869
    %1871 = vmatprep.mubr.f32.mxu0 0.0
    %1872 = vmatmul.mubr.f32.gmra.mrb[0].mxu0 %v71
    %v1873 = vpop.f32.mrb[0].mxu0
    %v1874 = vadd.f32 0.0, %v1873
    %v1875 = vpop.f32.mrb[0].mxu0
    %v1876 = vadd.f32 0.0, %v1875
    %1877 = vmatprep.mubr.f32.mxu0 0.0
    %1878 = vmatmul.mubr.f32.gmra.mrb[0].mxu0 %v72
    %v1879 = vpop.f32.mrb[0].mxu0
    %v1880 = vadd.f32 0.0, %v1879
    %v1881 = vpop.f32.mrb[0].mxu0
    %v1882 = vadd.f32 0.0, %v1881
    %1883 = vmatprep.mubr.f32.mxu0 0.0
    %1884 = vmatmul.mubr.f32.gmra.mrb[0].mxu0 %v73
    %v1885 = vpop.f32.mrb[0].mxu0
    %v1886 = vadd.f32 0.0, %v1885
    %v1887 = vpop.f32.mrb[0].mxu0
    %v1888 = vadd.f32 0.0, %v1887
    %1889 = vmatprep.mubr.f32.mxu0 0.0
    %1890 = vmatmul.mubr.f32.gmra.mrb[0].mxu0 %v74
    %v1891 = vpop.f32.mrb[0].mxu0
    %v1892 = vadd.f32 0.0, %v1891
    %v1893 = vpop.f32.mrb[0].mxu0
    %v1894 = vadd.f32 0.0, %v1893
    %1895 = vmatprep.mubr.f32.mxu0 0.0
    %1896 = vmatmul.mubr.f32.gmra.mrb[0].mxu0 %v75
    %v1897 = vpop.f32.mrb[0].mxu0
    %v1898 = vadd.f32 0.0, %v1897
    %v1899 = vpop.f32.mrb[0].mxu0
    %v1900 = vadd.f32 0.0, %v1899
    %1901 = vmatprep.mubr.f32.mxu0 0.0
    %1902 = vmatmul.mubr.f32.gmra.mrb[0].mxu0 %v76
    %v1903 = vpop.f32.mrb[0].mxu0
    %v1904 = vadd.f32 0.0, %v1903
    %v1905 = vpop.f32.mrb[0].mxu0
    %v1906 = vadd.f32 0.0, %v1905
    %1907 = vmatprep.mubr.f32.mxu0 0.0
    %1908 = vmatmul.mubr.f32.gmra.mrb[0].mxu0 %v77
    %v1909 = vpop.f32.mrb[0].mxu0
    %v1910 = vadd.f32 0.0, %v1909
    %v1911 = vpop.f32.mrb[0].mxu0
    %v1912 = vadd.f32 0.0, %v1911
    %1913 = vmatprep.mubr.f32.mxu0 0.0
    %1914 = vmatmul.mubr.f32.gmra.mrb[0].mxu0 %v78
    %v1915 = vpop.f32.mrb[0].mxu0
    %v1916 = vadd.f32 0.0, %v1915
    %v1917 = vpop.f32.mrb[0].mxu0
    %v1918 = vadd.f32 0.0, %v1917
    %1919 = vmatprep.mubr.f32.mxu0 0.0
    %1920 = vmatmul.mubr.f32.gmra.mrb[0].mxu0 %v79
    %v1921 = vpop.f32.mrb[0].mxu0
    %v1922 = vadd.f32 0.0, %v1921
    %v1923 = vpop.f32.mrb[0].mxu0
    %v1924 = vadd.f32 0.0, %v1923
    %1925 = vmatprep.mubr.f32.mxu0 0.0
    %1926 = vmatmul.mubr.f32.gmra.mrb[0].mxu0 %v80
    %v1927 = vpop.f32.mrb[0].mxu0
    %v1928 = vadd.f32 0.0, %v1927
    %v1929 = vpop.f32.mrb[0].mxu0
    %v1930 = vadd.f32 0.0, %v1929
    %1931 = vmatprep.mubr.f32.mxu0 0.0
    %1932 = vmatmul.mubr.f32.gmra.mrb[0].mxu0 %v81
    %v1933 = vpop.f32.mrb[0].mxu0
    %v1934 = vadd.f32 0.0, %v1933
    %v1935 = vpop.f32.mrb[0].mxu0
    %v1936 = vadd.f32 0.0, %v1935
    %1937 = vmatprep.mubr.f32.mxu0 0.0
    %1938 = vmatmul.mubr.f32.gmra.mrb[0].mxu0 %v82
    %v1939 = vpop.f32.mrb[0].mxu0
    %v1940 = vadd.f32 0.0, %v1939
    %v1941 = vpop.f32.mrb[0].mxu0
    %v1942 = vadd.f32 0.0, %v1941
    %1943 = vmatprep.mubr.f32.mxu0 0.0
    %1944 = vmatmul.mubr.f32.gmra.mrb[0].mxu0 %v83
    %v1945 = vpop.f32.mrb[0].mxu0
    %v1946 = vadd.f32 0.0, %v1945
    %v1947 = vpop.f32.mrb[0].mxu0
    %v1948 = vadd.f32 0.0, %v1947
    %1949 = vmatprep.mubr.f32.mxu0 0.0
    %1950 = vmatmul.mubr.f32.gmra.mrb[0].mxu0 %v84
    %v1951 = vpop.f32.mrb[0].mxu0
    %v1952 = vadd.f32 0.0, %v1951
    %v1953 = vpop.f32.mrb[0].mxu0
    %v1954 = vadd.f32 0.0, %v1953
    %1955 = vdwg.mxu0
    %1956 = vmatprep.subr.mxu0 0.0
    %1957 = vmatpush1.xpose.msra.mxu0 %v283
    %1958 = vmatprep.subr.mxu0 0.0
    %1959 = vmatpush1.xpose.msra.mxu0 %v284
    %1960 = vmatprep.subr.mxu0 0.0
    %1961 = vmatpush1.xpose.msra.mxu0 %v285
    %1962 = vmatprep.subr.mxu0 0.0
    %1963 = vmatpush1.xpose.msra.mxu0 %v286
    %1964 = vmatprep.subr.mxu0 0.0
    %1965 = vmatpush1.xpose.msra.mxu0 %v287
    %1966 = vmatprep.subr.mxu0 0.0
    %1967 = vmatpush1.xpose.msra.mxu0 %v288
    %1968 = vmatprep.subr.mxu0 0.0
    %1969 = vmatpush1.xpose.msra.mxu0 %v289
    %1970 = vmatprep.subr.mxu0 0.0
    %1971 = vmatpush1.xpose.msra.mxu0 %v290
    %1972 = vmatprep.subr.mxu0 0.0
    %1973 = vmatpush1.xpose.msra.mxu0 %v291
    %1974 = vmatprep.subr.mxu0 0.0
    %1975 = vmatpush1.xpose.msra.mxu0 %v292
    %1976 = vmatprep.subr.mxu0 0.0
    %1977 = vmatpush1.xpose.msra.mxu0 %v293
    %1978 = vmatprep.subr.mxu0 0.0
    %1979 = vmatpush1.xpose.msra.mxu0 %v294
    %1980 = vmatprep.subr.mxu0 0.0
    %1981 = vmatpush1.xpose.msra.mxu0 %v295
    %1982 = vmatprep.subr.mxu0 0.0
    %1983 = vmatpush1.xpose.msra.mxu0 %v296
    %1984 = vmatprep.subr.mxu0 0.0
    %1985 = vmatpush1.xpose.msra.mxu0 %v297
    %1986 = vmatprep.subr.mxu0 0.0
    %1987 = vmatpush1.xpose.msra.mxu0 %v298
    %1988 = vmatprep.subr.mxu0 0.0
    %1989 = vmatpush1.xpose.msra.mxu0 %v299
    %1990 = vmatprep.subr.mxu0 0.0
    %1991 = vmatpush1.xpose.msra.mxu0 %v300
    %1992 = vmatprep.subr.mxu0 0.0
    %1993 = vmatpush1.xpose.msra.mxu0 %v301
    %1994 = vmatprep.subr.mxu0 0.0
    %1995 = vmatpush1.xpose.msra.mxu0 %v302
    %1996 = vmatprep.subr.mxu0 0.0
    %1997 = vmatpush1.xpose.msra.mxu0 %v303
    %1998 = vmatprep.subr.mxu0 0.0
    %1999 = vmatpush1.xpose.msra.mxu0 %v304
    %2000 = vmatprep.subr.mxu0 0.0
    %2001 = vmatpush1.xpose.msra.mxu0 %v305
    %2002 = vmatprep.subr.mxu0 0.0
    %2003 = vmatpush1.xpose.msra.mxu0 %v306
    %2004 = vmatprep.subr.mxu0 0.0
    %2005 = vmatpush1.xpose.msra.mxu0 %v307
    %2006 = vmatprep.subr.mxu0 0.0
    %2007 = vmatpush1.xpose.msra.mxu0 %v308
    %2008 = vmatprep.subr.mxu0 0.0
    %2009 = vmatpush1.xpose.msra.mxu0 %v309
    %2010 = vmatprep.subr.mxu0 0.0
    %2011 = vmatpush1.xpose.msra.mxu0 %v310
    %2012 = vmatprep.subr.mxu0 0.0
    %2013 = vmatpush1.xpose.msra.mxu0 %v311
    %2014 = vmatprep.subr.mxu0 0.0
    %2015 = vmatpush1.xpose.msra.mxu0 %v312
    %2016 = vmatprep.subr.mxu0 0.0
    %2017 = vmatpush1.xpose.msra.mxu0 %v313
    %2018 = vmatprep.subr.mxu0 0.0
    %2019 = vmatpush1.xpose.msra.mxu0 %v314
    %2020 = vmatprep.mubr.f32.mxu0 0.0
    %2021 = vmatmul.mubr.f32.gmra.mrb[0].mxu0 %v69
    %v2022 = vpop.f32.mrb[0].mxu0
    %v2023 = vadd.f32 0.0, %v2022
    %v2024 = vpop.f32.mrb[0].mxu0
    %v2025 = vadd.f32 0.0, %v2024
    %2026 = vmatprep.mubr.f32.mxu0 0.0
    %2027 = vmatmul.mubr.f32.gmra.mrb[0].mxu0 %v70
    %v2028 = vpop.f32.mrb[0].mxu0
    %v2029 = vadd.f32 0.0, %v2028
    %v2030 = vpop.f32.mrb[0].mxu0
    %v2031 = vadd.f32 0.0, %v2030
    %2032 = vmatprep.mubr.f32.mxu0 0.0
    %2033 = vmatmul.mubr.f32.gmra.mrb[0].mxu0 %v71
    %v2034 = vpop.f32.mrb[0].mxu0
    %v2035 = vadd.f32 0.0, %v2034
    %v2036 = vpop.f32.mrb[0].mxu0
    %v2037 = vadd.f32 0.0, %v2036
    %2038 = vmatprep.mubr.f32.mxu0 0.0
    %2039 = vmatmul.mubr.f32.gmra.mrb[0].mxu0 %v72
    %v2040 = vpop.f32.mrb[0].mxu0
    %v2041 = vadd.f32 0.0, %v2040
    %v2042 = vpop.f32.mrb[0].mxu0
    %v2043 = vadd.f32 0.0, %v2042
    %2044 = vmatprep.mubr.f32.mxu0 0.0
    %2045 = vmatmul.mubr.f32.gmra.mrb[0].mxu0 %v73
    %v2046 = vpop.f32.mrb[0].mxu0
    %v2047 = vadd.f32 0.0, %v2046
    %v2048 = vpop.f32.mrb[0].mxu0
    %v2049 = vadd.f32 0.0, %v2048
    %2050 = vmatprep.mubr.f32.mxu0 0.0
    %2051 = vmatmul.mubr.f32.gmra.mrb[0].mxu0 %v74
    %v2052 = vpop.f32.mrb[0].mxu0
    %v2053 = vadd.f32 0.0, %v2052
    %v2054 = vpop.f32.mrb[0].mxu0
    %v2055 = vadd.f32 0.0, %v2054
    %2056 = vmatprep.mubr.f32.mxu0 0.0
    %2057 = vmatmul.mubr.f32.gmra.mrb[0].mxu0 %v75
    %v2058 = vpop.f32.mrb[0].mxu0
    %v2059 = vadd.f32 0.0, %v2058
    %v2060 = vpop.f32.mrb[0].mxu0
    %v2061 = vadd.f32 0.0, %v2060
    %2062 = vmatprep.mubr.f32.mxu0 0.0
    %2063 = vmatmul.mubr.f32.gmra.mrb[0].mxu0 %v76
    %v2064 = vpop.f32.mrb[0].mxu0
    %v2065 = vadd.f32 0.0, %v2064
    %v2066 = vpop.f32.mrb[0].mxu0
    %v2067 = vadd.f32 0.0, %v2066
    %2068 = vmatprep.mubr.f32.mxu0 0.0
    %2069 = vmatmul.mubr.f32.gmra.mrb[0].mxu0 %v77
    %v2070 = vpop.f32.mrb[0].mxu0
    %v2071 = vadd.f32 0.0, %v2070
    %v2072 = vpop.f32.mrb[0].mxu0
    %v2073 = vadd.f32 0.0, %v2072
    %2074 = vmatprep.mubr.f32.mxu0 0.0
    %2075 = vmatmul.mubr.f32.gmra.mrb[0].mxu0 %v78
    %v2076 = vpop.f32.mrb[0].mxu0
    %v2077 = vadd.f32 0.0, %v2076
    %v2078 = vpop.f32.mrb[0].mxu0
    %v2079 = vadd.f32 0.0, %v2078
    %2080 = vmatprep.mubr.f32.mxu0 0.0
    %2081 = vmatmul.mubr.f32.gmra.mrb[0].mxu0 %v79
    %v2082 = vpop.f32.mrb[0].mxu0
    %v2083 = vadd.f32 0.0, %v2082
    %v2084 = vpop.f32.mrb[0].mxu0
    %v2085 = vadd.f32 0.0, %v2084
    %2086 = vmatprep.mubr.f32.mxu0 0.0
    %2087 = vmatmul.mubr.f32.gmra.mrb[0].mxu0 %v80
    %v2088 = vpop.f32.mrb[0].mxu0
    %v2089 = vadd.f32 0.0, %v2088
    %v2090 = vpop.f32.mrb[0].mxu0
    %v2091 = vadd.f32 0.0, %v2090
    %2092 = vmatprep.mubr.f32.mxu0 0.0
    %2093 = vmatmul.mubr.f32.gmra.mrb[0].mxu0 %v81
    %v2094 = vpop.f32.mrb[0].mxu0
    %v2095 = vadd.f32 0.0, %v2094
    %v2096 = vpop.f32.mrb[0].mxu0
    %v2097 = vadd.f32 0.0, %v2096
    %2098 = vmatprep.mubr.f32.mxu0 0.0
    %2099 = vmatmul.mubr.f32.gmra.mrb[0].mxu0 %v82
    %v2100 = vpop.f32.mrb[0].mxu0
    %v2101 = vadd.f32 0.0, %v2100
    %v2102 = vpop.f32.mrb[0].mxu0
    %v2103 = vadd.f32 0.0, %v2102
    %2104 = vmatprep.mubr.f32.mxu0 0.0
    %2105 = vmatmul.mubr.f32.gmra.mrb[0].mxu0 %v83
    %v2106 = vpop.f32.mrb[0].mxu0
    %v2107 = vadd.f32 0.0, %v2106
    %v2108 = vpop.f32.mrb[0].mxu0
    %v2109 = vadd.f32 0.0, %v2108
    %2110 = vmatprep.mubr.f32.mxu0 0.0
    %2111 = vmatmul.mubr.f32.gmra.mrb[0].mxu0 %v84
    %v2112 = vpop.f32.mrb[0].mxu0
    %v2113 = vadd.f32 0.0, %v2112
    %v2114 = vpop.f32.mrb[0].mxu0
    %v2115 = vadd.f32 0.0, %v2114
    %2116 = vdwg.mxu0
    %v2117 = vlaneseq
    %v2118 = vshrl.u32 %v2117, 7
    %v2119 = vsub.s32 1, %v2118
    %v2120 = vrot.slane %v315, %v2119
    %v2121 = vlaneseq
    %v2122 = vshrl.u32 %v2121, 7
    %v2123 = vsub.s32 3, %v2122
    %v2124 = vrot.slane %v315, %v2123
    %v2125 = vlaneseq
    %v2126 = vshrl.u32 %v2125, 7
    %v2127 = vsub.s32 5, %v2126
    %v2128 = vrot.slane %v315, %v2127
    %v2129 = vlaneseq
    %v2130 = vshrl.u32 %v2129, 7
    %v2131 = vsub.s32 7, %v2130
    %v2132 = vrot.slane %v315, %v2131
    %v2137 = vlaneseq
    %v2138 = vshrl.u32 %v2137, 7
    %v2139 = vsub.s32 1, %v2138
    %v2140 = vrot.slane %v2120, %v2139
    %v2141 = vlaneseq
    %v2142 = vshrl.u32 %v2141, 7
    %v2143 = vsub.s32 1, %v2142
    %v2144 = vrot.slane %v2124, %v2143
    %v2145 = vlaneseq
    %v2146 = vshrl.u32 %v2145, 7
    %v2147 = vsub.s32 1, %v2146
    %v2148 = vrot.slane %v2128, %v2147
    %v2149 = vlaneseq
    %v2150 = vshrl.u32 %v2149, 7
    %v2151 = vsub.s32 1, %v2150
    %v2152 = vrot.slane %v2132, %v2151
    %v2153 = vsub.f32 %v1862, %v2140
    %v2154 = vsub.f32 %v1864, %v2144
    %v2155 = vsub.f32 %v2023, %v2148
    %v2156 = vsub.f32 %v2025, %v2152
    %v2157 = vsub.f32 %v1868, %v2140
    %v2158 = vsub.f32 %v1870, %v2144
    %v2159 = vsub.f32 %v2029, %v2148
    %v2160 = vsub.f32 %v2031, %v2152
    %v2161 = vsub.f32 %v1874, %v2140
    %v2162 = vsub.f32 %v1876, %v2144
    %v2163 = vsub.f32 %v2035, %v2148
    %v2164 = vsub.f32 %v2037, %v2152
    %v2165 = vsub.f32 %v1880, %v2140
    %v2166 = vsub.f32 %v1882, %v2144
    %v2167 = vsub.f32 %v2041, %v2148
    %v2168 = vsub.f32 %v2043, %v2152
    %v2169 = vsub.f32 %v1886, %v2140
    %v2170 = vsub.f32 %v1888, %v2144
    %v2171 = vsub.f32 %v2047, %v2148
    %v2172 = vsub.f32 %v2049, %v2152
    %v2173 = vsub.f32 %v1892, %v2140
    %v2174 = vsub.f32 %v1894, %v2144
    %v2175 = vsub.f32 %v2053, %v2148
    %v2176 = vsub.f32 %v2055, %v2152
    %v2177 = vsub.f32 %v1898, %v2140
    %v2178 = vsub.f32 %v1900, %v2144
    %v2179 = vsub.f32 %v2059, %v2148
    %v2180 = vsub.f32 %v2061, %v2152
    %v2181 = vsub.f32 %v1904, %v2140
    %v2182 = vsub.f32 %v1906, %v2144
    %v2183 = vsub.f32 %v2065, %v2148
    %v2184 = vsub.f32 %v2067, %v2152
    %v2185 = vsub.f32 %v1910, %v2140
    %v2186 = vsub.f32 %v1912, %v2144
    %v2187 = vsub.f32 %v2071, %v2148
    %v2188 = vsub.f32 %v2073, %v2152
    %v2189 = vsub.f32 %v1916, %v2140
    %v2190 = vsub.f32 %v1918, %v2144
    %v2191 = vsub.f32 %v2077, %v2148
    %v2192 = vsub.f32 %v2079, %v2152
    %v2193 = vsub.f32 %v1922, %v2140
    %v2194 = vsub.f32 %v1924, %v2144
    %v2195 = vsub.f32 %v2083, %v2148
    %v2196 = vsub.f32 %v2085, %v2152
    %v2197 = vsub.f32 %v1928, %v2140
    %v2198 = vsub.f32 %v1930, %v2144
    %v2199 = vsub.f32 %v2089, %v2148
    %v2200 = vsub.f32 %v2091, %v2152
    %v2201 = vsub.f32 %v1934, %v2140
    %v2202 = vsub.f32 %v1936, %v2144
    %v2203 = vsub.f32 %v2095, %v2148
    %v2204 = vsub.f32 %v2097, %v2152
    %v2205 = vsub.f32 %v1940, %v2140
    %v2206 = vsub.f32 %v1942, %v2144
    %v2207 = vsub.f32 %v2101, %v2148
    %v2208 = vsub.f32 %v2103, %v2152
    %v2209 = vsub.f32 %v1946, %v2140
    %v2210 = vsub.f32 %v1948, %v2144
    %v2211 = vsub.f32 %v2107, %v2148
    %v2212 = vsub.f32 %v2109, %v2152
    %v2213 = vsub.f32 %v1952, %v2140
    %v2214 = vsub.f32 %v1954, %v2144
    %v2215 = vsub.f32 %v2113, %v2148
    %v2216 = vsub.f32 %v2115, %v2152
    %v2217 = vadd.f32 %v1475, 1.0
    %v2218 = vadd.f32 %v1476, 1.0
    %v2219 = vadd.f32 %v1477, 1.0
    %v2220 = vadd.f32 %v1478, 1.0
    %v2221 = vadd.f32 %v1479, 1.0
    %v2222 = vadd.f32 %v1480, 1.0
    %v2223 = vadd.f32 %v1481, 1.0
    %v2224 = vadd.f32 %v1482, 1.0
    %v2225 = vadd.f32 %v1483, 1.0
    %v2226 = vadd.f32 %v1484, 1.0
    %v2227 = vadd.f32 %v1485, 1.0
    %v2228 = vadd.f32 %v1486, 1.0
    %v2229 = vadd.f32 %v1487, 1.0
    %v2230 = vadd.f32 %v1488, 1.0
    %v2231 = vadd.f32 %v1489, 1.0
    %v2232 = vadd.f32 %v1490, 1.0
    %v2233 = vadd.f32 %v1491, 1.0
    %v2234 = vadd.f32 %v1492, 1.0
    %v2235 = vadd.f32 %v1493, 1.0
    %v2236 = vadd.f32 %v1494, 1.0
    %v2237 = vadd.f32 %v1495, 1.0
    %v2238 = vadd.f32 %v1496, 1.0
    %v2239 = vadd.f32 %v1497, 1.0
    %v2240 = vadd.f32 %v1498, 1.0
    %v2241 = vadd.f32 %v1499, 1.0
    %v2242 = vadd.f32 %v1500, 1.0
    %v2243 = vadd.f32 %v1501, 1.0
    %v2244 = vadd.f32 %v1502, 1.0
    %v2245 = vadd.f32 %v1503, 1.0
    %v2246 = vadd.f32 %v1504, 1.0
    %v2247 = vadd.f32 %v1505, 1.0
    %v2248 = vadd.f32 %v1506, 1.0
    %v2249 = vadd.f32 %v1507, 1.0
    %v2250 = vadd.f32 %v1508, 1.0
    %v2251 = vadd.f32 %v1509, 1.0
    %v2252 = vadd.f32 %v1510, 1.0
    %v2253 = vadd.f32 %v1511, 1.0
    %v2254 = vadd.f32 %v1512, 1.0
    %v2255 = vadd.f32 %v1513, 1.0
    %v2256 = vadd.f32 %v1514, 1.0
    %v2257 = vadd.f32 %v1515, 1.0
    %v2258 = vadd.f32 %v1516, 1.0
    %v2259 = vadd.f32 %v1517, 1.0
    %v2260 = vadd.f32 %v1518, 1.0
    %v2261 = vadd.f32 %v1519, 1.0
    %v2262 = vadd.f32 %v1520, 1.0
    %v2263 = vadd.f32 %v1521, 1.0
    %v2264 = vadd.f32 %v1522, 1.0
    %v2265 = vadd.f32 %v1523, 1.0
    %v2266 = vadd.f32 %v1524, 1.0
    %v2267 = vadd.f32 %v1525, 1.0
    %v2268 = vadd.f32 %v1526, 1.0
    %v2269 = vadd.f32 %v1527, 1.0
    %v2270 = vadd.f32 %v1528, 1.0
    %v2271 = vadd.f32 %v1529, 1.0
    %v2272 = vadd.f32 %v1530, 1.0
    %v2273 = vadd.f32 %v1531, 1.0
    %v2274 = vadd.f32 %v1532, 1.0
    %v2275 = vadd.f32 %v1533, 1.0
    %v2276 = vadd.f32 %v1534, 1.0
    %v2277 = vadd.f32 %v1535, 1.0
    %v2278 = vadd.f32 %v1536, 1.0
    %v2279 = vadd.f32 %v1537, 1.0
    %v2280 = vadd.f32 %v1538, 1.0
    %v2281 = vmul.f32 %v1731, %v2217
    %v2282 = vmul.f32 %v1732, %v2218
    %v2283 = vmul.f32 %v1733, %v2219
    %v2284 = vmul.f32 %v1734, %v2220
    %v2285 = vmul.f32 %v1735, %v2221
    %v2286 = vmul.f32 %v1736, %v2222
    %v2287 = vmul.f32 %v1737, %v2223
    %v2288 = vmul.f32 %v1738, %v2224
    %v2289 = vmul.f32 %v1739, %v2225
    %v2290 = vmul.f32 %v1740, %v2226
    %v2291 = vmul.f32 %v1741, %v2227
    %v2292 = vmul.f32 %v1742, %v2228
    %v2293 = vmul.f32 %v1743, %v2229
    %v2294 = vmul.f32 %v1744, %v2230
    %v2295 = vmul.f32 %v1745, %v2231
    %v2296 = vmul.f32 %v1746, %v2232
    %v2297 = vmul.f32 %v1747, %v2233
    %v2298 = vmul.f32 %v1748, %v2234
    %v2299 = vmul.f32 %v1749, %v2235
    %v2300 = vmul.f32 %v1750, %v2236
    %v2301 = vmul.f32 %v1751, %v2237
    %v2302 = vmul.f32 %v1752, %v2238
    %v2303 = vmul.f32 %v1753, %v2239
    %v2304 = vmul.f32 %v1754, %v2240
    %v2305 = vmul.f32 %v1755, %v2241
    %v2306 = vmul.f32 %v1756, %v2242
    %v2307 = vmul.f32 %v1757, %v2243
    %v2308 = vmul.f32 %v1758, %v2244
    %v2309 = vmul.f32 %v1759, %v2245
    %v2310 = vmul.f32 %v1760, %v2246
    %v2311 = vmul.f32 %v1761, %v2247
    %v2312 = vmul.f32 %v1762, %v2248
    %v2313 = vmul.f32 %v1763, %v2249
    %v2314 = vmul.f32 %v1764, %v2250
    %v2315 = vmul.f32 %v1765, %v2251
    %v2316 = vmul.f32 %v1766, %v2252
    %v2317 = vmul.f32 %v1767, %v2253
    %v2318 = vmul.f32 %v1768, %v2254
    %v2319 = vmul.f32 %v1769, %v2255
    %v2320 = vmul.f32 %v1770, %v2256
    %v2321 = vmul.f32 %v1771, %v2257
    %v2322 = vmul.f32 %v1772, %v2258
    %v2323 = vmul.f32 %v1773, %v2259
    %v2324 = vmul.f32 %v1774, %v2260
    %v2325 = vmul.f32 %v1775, %v2261
    %v2326 = vmul.f32 %v1776, %v2262
    %v2327 = vmul.f32 %v1777, %v2263
    %v2328 = vmul.f32 %v1778, %v2264
    %v2329 = vmul.f32 %v1779, %v2265
    %v2330 = vmul.f32 %v1780, %v2266
    %v2331 = vmul.f32 %v1781, %v2267
    %v2332 = vmul.f32 %v1782, %v2268
    %v2333 = vmul.f32 %v1783, %v2269
    %v2334 = vmul.f32 %v1784, %v2270
    %v2335 = vmul.f32 %v1785, %v2271
    %v2336 = vmul.f32 %v1786, %v2272
    %v2337 = vmul.f32 %v1787, %v2273
    %v2338 = vmul.f32 %v1788, %v2274
    %v2339 = vmul.f32 %v1789, %v2275
    %v2340 = vmul.f32 %v1790, %v2276
    %v2341 = vmul.f32 %v1791, %v2277
    %v2342 = vmul.f32 %v1792, %v2278
    %v2343 = vmul.f32 %v1793, %v2279
    %v2344 = vmul.f32 %v1794, %v2280
    %v2345 = vmul.f32 %v1731, %v2153
    %v2346 = vmul.f32 %v1732, %v2154
    %v2347 = vmul.f32 %v1733, %v2155
    %v2348 = vmul.f32 %v1734, %v2156
    %v2349 = vmul.f32 %v1735, %v2157
    %v2350 = vmul.f32 %v1736, %v2158
    %v2351 = vmul.f32 %v1737, %v2159
    %v2352 = vmul.f32 %v1738, %v2160
    %v2353 = vmul.f32 %v1739, %v2161
    %v2354 = vmul.f32 %v1740, %v2162
    %v2355 = vmul.f32 %v1741, %v2163
    %v2356 = vmul.f32 %v1742, %v2164
    %v2357 = vmul.f32 %v1743, %v2165
    %v2358 = vmul.f32 %v1744, %v2166
    %v2359 = vmul.f32 %v1745, %v2167
    %v2360 = vmul.f32 %v1746, %v2168
    %v2361 = vmul.f32 %v1747, %v2169
    %v2362 = vmul.f32 %v1748, %v2170
    %v2363 = vmul.f32 %v1749, %v2171
    %v2364 = vmul.f32 %v1750, %v2172
    %v2365 = vmul.f32 %v1751, %v2173
    %v2366 = vmul.f32 %v1752, %v2174
    %v2367 = vmul.f32 %v1753, %v2175
    %v2368 = vmul.f32 %v1754, %v2176
    %v2369 = vmul.f32 %v1755, %v2177
    %v2370 = vmul.f32 %v1756, %v2178
    %v2371 = vmul.f32 %v1757, %v2179
    %v2372 = vmul.f32 %v1758, %v2180
    %v2373 = vmul.f32 %v1759, %v2181
    %v2374 = vmul.f32 %v1760, %v2182
    %v2375 = vmul.f32 %v1761, %v2183
    %v2376 = vmul.f32 %v1762, %v2184
    %v2377 = vmul.f32 %v1763, %v2185
    %v2378 = vmul.f32 %v1764, %v2186
    %v2379 = vmul.f32 %v1765, %v2187
    %v2380 = vmul.f32 %v1766, %v2188
    %v2381 = vmul.f32 %v1767, %v2189
    %v2382 = vmul.f32 %v1768, %v2190
    %v2383 = vmul.f32 %v1769, %v2191
    %v2384 = vmul.f32 %v1770, %v2192
    %v2385 = vmul.f32 %v1771, %v2193
    %v2386 = vmul.f32 %v1772, %v2194
    %v2387 = vmul.f32 %v1773, %v2195
    %v2388 = vmul.f32 %v1774, %v2196
    %v2389 = vmul.f32 %v1775, %v2197
    %v2390 = vmul.f32 %v1776, %v2198
    %v2391 = vmul.f32 %v1777, %v2199
    %v2392 = vmul.f32 %v1778, %v2200
    %v2393 = vmul.f32 %v1779, %v2201
    %v2394 = vmul.f32 %v1780, %v2202
    %v2395 = vmul.f32 %v1781, %v2203
    %v2396 = vmul.f32 %v1782, %v2204
    %v2397 = vmul.f32 %v1783, %v2205
    %v2398 = vmul.f32 %v1784, %v2206
    %v2399 = vmul.f32 %v1785, %v2207
    %v2400 = vmul.f32 %v1786, %v2208
    %v2401 = vmul.f32 %v1787, %v2209
    %v2402 = vmul.f32 %v1788, %v2210
    %v2403 = vmul.f32 %v1789, %v2211
    %v2404 = vmul.f32 %v1790, %v2212
    %v2405 = vmul.f32 %v1791, %v2213
    %v2406 = vmul.f32 %v1792, %v2214
    %v2407 = vmul.f32 %v1793, %v2215
    %v2408 = vmul.f32 %v1794, %v2216
    %v2409 = vmul.f32 %v2345, 0.05
    %v2410 = vmul.f32 %v2346, 0.05
    %v2411 = vmul.f32 %v2347, 0.05
    %v2412 = vmul.f32 %v2348, 0.05
    %v2413 = vmul.f32 %v2349, 0.05
    %v2414 = vmul.f32 %v2350, 0.05
    %v2415 = vmul.f32 %v2351, 0.05
    %v2416 = vmul.f32 %v2352, 0.05
    %v2417 = vmul.f32 %v2353, 0.05
    %v2418 = vmul.f32 %v2354, 0.05
    %v2419 = vmul.f32 %v2355, 0.05
    %v2420 = vmul.f32 %v2356, 0.05
    %v2421 = vmul.f32 %v2357, 0.05
    %v2422 = vmul.f32 %v2358, 0.05
    %v2423 = vmul.f32 %v2359, 0.05
    %v2424 = vmul.f32 %v2360, 0.05
    %v2425 = vmul.f32 %v2361, 0.05
    %v2426 = vmul.f32 %v2362, 0.05
    %v2427 = vmul.f32 %v2363, 0.05
    %v2428 = vmul.f32 %v2364, 0.05
    %v2429 = vmul.f32 %v2365, 0.05
    %v2430 = vmul.f32 %v2366, 0.05
    %v2431 = vmul.f32 %v2367, 0.05
    %v2432 = vmul.f32 %v2368, 0.05
    %v2433 = vmul.f32 %v2369, 0.05
    %v2434 = vmul.f32 %v2370, 0.05
    %v2435 = vmul.f32 %v2371, 0.05
    %v2436 = vmul.f32 %v2372, 0.05
    %v2437 = vmul.f32 %v2373, 0.05
    %v2438 = vmul.f32 %v2374, 0.05
    %v2439 = vmul.f32 %v2375, 0.05
    %v2440 = vmul.f32 %v2376, 0.05
    %v2441 = vmul.f32 %v2377, 0.05
    %v2442 = vmul.f32 %v2378, 0.05
    %v2443 = vmul.f32 %v2379, 0.05
    %v2444 = vmul.f32 %v2380, 0.05
    %v2445 = vmul.f32 %v2381, 0.05
    %v2446 = vmul.f32 %v2382, 0.05
    %v2447 = vmul.f32 %v2383, 0.05
    %v2448 = vmul.f32 %v2384, 0.05
    %v2449 = vmul.f32 %v2385, 0.05
    %v2450 = vmul.f32 %v2386, 0.05
    %v2451 = vmul.f32 %v2387, 0.05
    %v2452 = vmul.f32 %v2388, 0.05
    %v2453 = vmul.f32 %v2389, 0.05
    %v2454 = vmul.f32 %v2390, 0.05
    %v2455 = vmul.f32 %v2391, 0.05
    %v2456 = vmul.f32 %v2392, 0.05
    %v2457 = vmul.f32 %v2393, 0.05
    %v2458 = vmul.f32 %v2394, 0.05
    %v2459 = vmul.f32 %v2395, 0.05
    %v2460 = vmul.f32 %v2396, 0.05
    %v2461 = vmul.f32 %v2397, 0.05
    %v2462 = vmul.f32 %v2398, 0.05
    %v2463 = vmul.f32 %v2399, 0.05
    %v2464 = vmul.f32 %v2400, 0.05
    %v2465 = vmul.f32 %v2401, 0.05
    %v2466 = vmul.f32 %v2402, 0.05
    %v2467 = vmul.f32 %v2403, 0.05
    %v2468 = vmul.f32 %v2404, 0.05
    %v2469 = vmul.f32 %v2405, 0.05
    %v2470 = vmul.f32 %v2406, 0.05
    %v2471 = vmul.f32 %v2407, 0.05
    %v2472 = vmul.f32 %v2408, 0.05
    %v2473 = vpack.c.bf16 %v187, %v186
    %v2474 = vpack.c.bf16 %v189, %v188
    %v2475 = vpack.c.bf16 %v191, %v190
    %v2476 = vpack.c.bf16 %v193, %v192
    %v2477 = vpack.c.bf16 %v195, %v194
    %v2478 = vpack.c.bf16 %v197, %v196
    %v2479 = vpack.c.bf16 %v199, %v198
    %v2480 = vpack.c.bf16 %v201, %v200
    %v2481 = vpack.c.bf16 %v203, %v202
    %v2482 = vpack.c.bf16 %v205, %v204
    %v2483 = vpack.c.bf16 %v207, %v206
    %v2484 = vpack.c.bf16 %v209, %v208
    %v2485 = vpack.c.bf16 %v211, %v210
    %v2486 = vpack.c.bf16 %v213, %v212
    %v2487 = vpack.c.bf16 %v215, %v214
    %v2488 = vpack.c.bf16 %v217, %v216
    %v2489 = vpack.c.bf16 %v219, %v218
    %v2490 = vpack.c.bf16 %v221, %v220
    %v2491 = vpack.c.bf16 %v223, %v222
    %v2492 = vpack.c.bf16 %v225, %v224
    %v2493 = vpack.c.bf16 %v227, %v226
    %v2494 = vpack.c.bf16 %v229, %v228
    %v2495 = vpack.c.bf16 %v231, %v230
    %v2496 = vpack.c.bf16 %v233, %v232
    %v2497 = vpack.c.bf16 %v235, %v234
    %v2498 = vpack.c.bf16 %v237, %v236
    %v2499 = vpack.c.bf16 %v239, %v238
    %v2500 = vpack.c.bf16 %v241, %v240
    %v2501 = vpack.c.bf16 %v243, %v242
    %v2502 = vpack.c.bf16 %v245, %v244
    %v2503 = vpack.c.bf16 %v247, %v246
    %v2504 = vpack.c.bf16 %v249, %v248
    %v2505 = vpack.c.bf16 %v252, %v251
    %v2506 = vpack.c.bf16 %v254, %v253
    %v2507 = vpack.c.bf16 %v256, %v255
    %v2508 = vpack.c.bf16 %v258, %v257
    %v2509 = vpack.c.bf16 %v260, %v259
    %v2510 = vpack.c.bf16 %v262, %v261
    %v2511 = vpack.c.bf16 %v264, %v263
    %v2512 = vpack.c.bf16 %v266, %v265
    %v2513 = vpack.c.bf16 %v268, %v267
    %v2514 = vpack.c.bf16 %v270, %v269
    %v2515 = vpack.c.bf16 %v272, %v271
    %v2516 = vpack.c.bf16 %v274, %v273
    %v2517 = vpack.c.bf16 %v276, %v275
    %v2518 = vpack.c.bf16 %v278, %v277
    %v2519 = vpack.c.bf16 %v280, %v279
    %v2520 = vpack.c.bf16 %v282, %v281
    %v2521 = vpack.c.bf16 %v284, %v283
    %v2522 = vpack.c.bf16 %v286, %v285
    %v2523 = vpack.c.bf16 %v288, %v287
    %v2524 = vpack.c.bf16 %v290, %v289
    %v2525 = vpack.c.bf16 %v292, %v291
    %v2526 = vpack.c.bf16 %v294, %v293
    %v2527 = vpack.c.bf16 %v296, %v295
    %v2528 = vpack.c.bf16 %v298, %v297
    %v2529 = vpack.c.bf16 %v300, %v299
    %v2530 = vpack.c.bf16 %v302, %v301
    %v2531 = vpack.c.bf16 %v304, %v303
    %v2532 = vpack.c.bf16 %v306, %v305
    %v2533 = vpack.c.bf16 %v308, %v307
    %v2534 = vpack.c.bf16 %v310, %v309
    %v2535 = vpack.c.bf16 %v312, %v311
    %v2536 = vpack.c.bf16 %v314, %v313
    %v2537 = vadd.f32 %v2409, %v2410
    %v2538 = vadd.f32 %v2537, %v2411
    %v2539 = vadd.f32 %v2538, %v2412
    %2540 = vadd.xlane.f32.xlu0 %v2539
    %v2541 = vpop.xlane.xlu0 %2540
    %v2542 = vadd.f32 %v2413, %v2414
    %v2543 = vadd.f32 %v2542, %v2415
    %v2544 = vadd.f32 %v2543, %v2416
    %2545 = vadd.xlane.f32.xlu0 %v2544
    %v2546 = vpop.xlane.xlu0 %2545
    %v2547 = vadd.f32 %v2417, %v2418
    %v2548 = vadd.f32 %v2547, %v2419
    %v2549 = vadd.f32 %v2548, %v2420
    %2550 = vadd.xlane.f32.xlu0 %v2549
    %v2551 = vpop.xlane.xlu0 %2550
    %v2552 = vadd.f32 %v2421, %v2422
    %v2553 = vadd.f32 %v2552, %v2423
    %v2554 = vadd.f32 %v2553, %v2424
    %2555 = vadd.xlane.f32.xlu0 %v2554
    %v2556 = vpop.xlane.xlu0 %2555
    %v2557 = vadd.f32 %v2425, %v2426
    %v2558 = vadd.f32 %v2557, %v2427
    %v2559 = vadd.f32 %v2558, %v2428
    %2560 = vadd.xlane.f32.xlu0 %v2559
    %v2561 = vpop.xlane.xlu0 %2560
    %v2562 = vadd.f32 %v2429, %v2430
    %v2563 = vadd.f32 %v2562, %v2431
    %v2564 = vadd.f32 %v2563, %v2432
    %2565 = vadd.xlane.f32.xlu0 %v2564
    %v2566 = vpop.xlane.xlu0 %2565
    %v2567 = vadd.f32 %v2433, %v2434
    %v2568 = vadd.f32 %v2567, %v2435
    %v2569 = vadd.f32 %v2568, %v2436
    %2570 = vadd.xlane.f32.xlu0 %v2569
    %v2571 = vpop.xlane.xlu0 %2570
    %v2572 = vadd.f32 %v2437, %v2438
    %v2573 = vadd.f32 %v2572, %v2439
    %v2574 = vadd.f32 %v2573, %v2440
    %2575 = vadd.xlane.f32.xlu0 %v2574
    %v2576 = vpop.xlane.xlu0 %2575
    %v2577 = vadd.f32 %v2441, %v2442
    %v2578 = vadd.f32 %v2577, %v2443
    %v2579 = vadd.f32 %v2578, %v2444
    %2580 = vadd.xlane.f32.xlu0 %v2579
    %v2581 = vpop.xlane.xlu0 %2580
    %v2582 = vadd.f32 %v2445, %v2446
    %v2583 = vadd.f32 %v2582, %v2447
    %v2584 = vadd.f32 %v2583, %v2448
    %2585 = vadd.xlane.f32.xlu0 %v2584
    %v2586 = vpop.xlane.xlu0 %2585
    %v2587 = vadd.f32 %v2449, %v2450
    %v2588 = vadd.f32 %v2587, %v2451
    %v2589 = vadd.f32 %v2588, %v2452
    %2590 = vadd.xlane.f32.xlu0 %v2589
    %v2591 = vpop.xlane.xlu0 %2590
    %v2592 = vadd.f32 %v2453, %v2454
    %v2593 = vadd.f32 %v2592, %v2455
    %v2594 = vadd.f32 %v2593, %v2456
    %2595 = vadd.xlane.f32.xlu0 %v2594
    %v2596 = vpop.xlane.xlu0 %2595
    %v2597 = vadd.f32 %v2457, %v2458
    %v2598 = vadd.f32 %v2597, %v2459
    %v2599 = vadd.f32 %v2598, %v2460
    %2600 = vadd.xlane.f32.xlu0 %v2599
    %v2601 = vpop.xlane.xlu0 %2600
    %v2602 = vadd.f32 %v2461, %v2462
    %v2603 = vadd.f32 %v2602, %v2463
    %v2604 = vadd.f32 %v2603, %v2464
    %2605 = vadd.xlane.f32.xlu0 %v2604
    %v2606 = vpop.xlane.xlu0 %2605
    %v2607 = vadd.f32 %v2465, %v2466
    %v2608 = vadd.f32 %v2607, %v2467
    %v2609 = vadd.f32 %v2608, %v2468
    %2610 = vadd.xlane.f32.xlu0 %v2609
    %v2611 = vpop.xlane.xlu0 %2610
    %v2612 = vadd.f32 %v2469, %v2470
    %v2613 = vadd.f32 %v2612, %v2471
    %v2614 = vadd.f32 %v2613, %v2472
    %2615 = vadd.xlane.f32.xlu0 %v2614
    %v2616 = vpop.xlane.xlu0 %2615
    %v2617 = vmul.f32 %v2541, %v69
    %v2618 = vmul.f32 %v2546, %v70
    %v2619 = vmul.f32 %v2551, %v71
    %v2620 = vmul.f32 %v2556, %v72
    %v2621 = vmul.f32 %v2561, %v73
    %v2622 = vmul.f32 %v2566, %v74
    %v2623 = vmul.f32 %v2571, %v75
    %v2624 = vmul.f32 %v2576, %v76
    %v2625 = vmul.f32 %v2581, %v77
    %v2626 = vmul.f32 %v2586, %v78
    %v2627 = vmul.f32 %v2591, %v79
    %v2628 = vmul.f32 %v2596, %v80
    %v2629 = vmul.f32 %v2601, %v81
    %v2630 = vmul.f32 %v2606, %v82
    %v2631 = vmul.f32 %v2611, %v83
    %v2632 = vmul.f32 %v2616, %v84
    %v2633 = vpack.c.bf16 %v2413, %v2409
    %v2634 = vpack.c.bf16 %v2414, %v2410
    %v2635 = vpack.c.bf16 %v2415, %v2411
    %v2636 = vpack.c.bf16 %v2416, %v2412
    %v2637 = vpack.c.bf16 %v2421, %v2417
    %v2638 = vpack.c.bf16 %v2422, %v2418
    %v2639 = vpack.c.bf16 %v2423, %v2419
    %v2640 = vpack.c.bf16 %v2424, %v2420
    %v2641 = vpack.c.bf16 %v2429, %v2425
    %v2642 = vpack.c.bf16 %v2430, %v2426
    %v2643 = vpack.c.bf16 %v2431, %v2427
    %v2644 = vpack.c.bf16 %v2432, %v2428
    %v2645 = vpack.c.bf16 %v2437, %v2433
    %v2646 = vpack.c.bf16 %v2438, %v2434
    %v2647 = vpack.c.bf16 %v2439, %v2435
    %v2648 = vpack.c.bf16 %v2440, %v2436
    %v2649 = vpack.c.bf16 %v2445, %v2441
    %v2650 = vpack.c.bf16 %v2446, %v2442
    %v2651 = vpack.c.bf16 %v2447, %v2443
    %v2652 = vpack.c.bf16 %v2448, %v2444
    %v2653 = vpack.c.bf16 %v2453, %v2449
    %v2654 = vpack.c.bf16 %v2454, %v2450
    %v2655 = vpack.c.bf16 %v2455, %v2451
    %v2656 = vpack.c.bf16 %v2456, %v2452
    %v2657 = vpack.c.bf16 %v2461, %v2457
    %v2658 = vpack.c.bf16 %v2462, %v2458
    %v2659 = vpack.c.bf16 %v2463, %v2459
    %v2660 = vpack.c.bf16 %v2464, %v2460
    %v2661 = vpack.c.bf16 %v2469, %v2465
    %v2662 = vpack.c.bf16 %v2470, %v2466
    %v2663 = vpack.c.bf16 %v2471, %v2467
    %v2664 = vpack.c.bf16 %v2472, %v2468
    %2665 = vmatprep.subr.bf16.mxu0 0
    %2666 = vmatpush1.bf16.msra.mxu0 %v2473
    %2667 = vmatprep.subr.bf16.mxu0 0
    %2668 = vmatpush1.bf16.msra.mxu0 %v2474
    %2669 = vmatprep.subr.bf16.mxu0 0
    %2670 = vmatpush1.bf16.msra.mxu0 %v2475
    %2671 = vmatprep.subr.bf16.mxu0 0
    %2672 = vmatpush1.bf16.msra.mxu0 %v2476
    %2673 = vmatprep.subr.bf16.mxu0 0
    %2674 = vmatpush1.bf16.msra.mxu0 %v2477
    %2675 = vmatprep.subr.bf16.mxu0 0
    %2676 = vmatpush1.bf16.msra.mxu0 %v2478
    %2677 = vmatprep.subr.bf16.mxu0 0
    %2678 = vmatpush1.bf16.msra.mxu0 %v2479
    %2679 = vmatprep.subr.bf16.mxu0 0
    %2680 = vmatpush1.bf16.msra.mxu0 %v2480
    %2681 = vmatprep.subr.bf16.mxu0 0
    %2682 = vmatpush1.bf16.msra.mxu0 %v2481
    %2683 = vmatprep.subr.bf16.mxu0 0
    %2684 = vmatpush1.bf16.msra.mxu0 %v2482
    %2685 = vmatprep.subr.bf16.mxu0 0
    %2686 = vmatpush1.bf16.msra.mxu0 %v2483
    %2687 = vmatprep.subr.bf16.mxu0 0
    %2688 = vmatpush1.bf16.msra.mxu0 %v2484
    %2689 = vmatprep.subr.bf16.mxu0 0
    %2690 = vmatpush1.bf16.msra.mxu0 %v2485
    %2691 = vmatprep.subr.bf16.mxu0 0
    %2692 = vmatpush1.bf16.msra.mxu0 %v2486
    %2693 = vmatprep.subr.bf16.mxu0 0
    %2694 = vmatpush1.bf16.msra.mxu0 %v2487
    %2695 = vmatprep.subr.bf16.mxu0 0
    %2696 = vmatpush1.bf16.msra.mxu0 %v2488
    %2697 = vmatprep.mubr.bf16.mxu0 %v2634
    %2698 = vmatmul.mubr.bf16.gmra.mrb[0].mxu0 %v2633
    %v2699 = vpop.f32.mrb[0].mxu0
    %v2700 = vadd.f32 0.0, %v2699
    %v2701 = vpop.f32.mrb[0].mxu0
    %v2702 = vpop.f32.mrb[0].mxu0
    %v2703 = vadd.f32 0.0, %v2702
    %v2704 = vpop.f32.mrb[0].mxu0
    %2705 = vmatprep.mubr.bf16.mxu0 %v2638
    %2706 = vmatmul.mubr.bf16.gmra.mrb[0].mxu0 %v2637
    %v2707 = vpop.f32.mrb[0].mxu0
    %v2708 = vadd.f32 0.0, %v2707
    %v2709 = vpop.f32.mrb[0].mxu0
    %v2710 = vpop.f32.mrb[0].mxu0
    %v2711 = vadd.f32 0.0, %v2710
    %v2712 = vpop.f32.mrb[0].mxu0
    %2713 = vmatprep.mubr.bf16.mxu0 %v2642
    %2714 = vmatmul.mubr.bf16.gmra.mrb[0].mxu0 %v2641
    %v2715 = vpop.f32.mrb[0].mxu0
    %v2716 = vadd.f32 0.0, %v2715
    %v2717 = vpop.f32.mrb[0].mxu0
    %v2718 = vpop.f32.mrb[0].mxu0
    %v2719 = vadd.f32 0.0, %v2718
    %v2720 = vpop.f32.mrb[0].mxu0
    %2721 = vmatprep.mubr.bf16.mxu0 %v2646
    %2722 = vmatmul.mubr.bf16.gmra.mrb[0].mxu0 %v2645
    %v2723 = vpop.f32.mrb[0].mxu0
    %v2724 = vadd.f32 0.0, %v2723
    %v2725 = vpop.f32.mrb[0].mxu0
    %v2726 = vpop.f32.mrb[0].mxu0
    %v2727 = vadd.f32 0.0, %v2726
    %v2728 = vpop.f32.mrb[0].mxu0
    %2729 = vmatprep.mubr.bf16.mxu0 %v2650
    %2730 = vmatmul.mubr.bf16.gmra.mrb[0].mxu0 %v2649
    %v2731 = vpop.f32.mrb[0].mxu0
    %v2732 = vadd.f32 0.0, %v2731
    %v2733 = vpop.f32.mrb[0].mxu0
    %v2734 = vpop.f32.mrb[0].mxu0
    %v2735 = vadd.f32 0.0, %v2734
    %v2736 = vpop.f32.mrb[0].mxu0
    %2737 = vmatprep.mubr.bf16.mxu0 %v2654
    %2738 = vmatmul.mubr.bf16.gmra.mrb[0].mxu0 %v2653
    %v2739 = vpop.f32.mrb[0].mxu0
    %v2740 = vadd.f32 0.0, %v2739
    %v2741 = vpop.f32.mrb[0].mxu0
    %v2742 = vpop.f32.mrb[0].mxu0
    %v2743 = vadd.f32 0.0, %v2742
    %v2744 = vpop.f32.mrb[0].mxu0
    %2745 = vmatprep.mubr.bf16.mxu0 %v2658
    %2746 = vmatmul.mubr.bf16.gmra.mrb[0].mxu0 %v2657
    %v2747 = vpop.f32.mrb[0].mxu0
    %v2748 = vadd.f32 0.0, %v2747
    %v2749 = vpop.f32.mrb[0].mxu0
    %v2750 = vpop.f32.mrb[0].mxu0
    %v2751 = vadd.f32 0.0, %v2750
    %v2752 = vpop.f32.mrb[0].mxu0
    %2753 = vmatprep.mubr.bf16.mxu0 %v2662
    %2754 = vmatmul.mubr.bf16.gmra.mrb[0].mxu0 %v2661
    %v2755 = vpop.f32.mrb[0].mxu0
    %v2756 = vadd.f32 0.0, %v2755
    %v2757 = vpop.f32.mrb[0].mxu0
    %v2758 = vpop.f32.mrb[0].mxu0
    %v2759 = vadd.f32 0.0, %v2758
    %v2760 = vpop.f32.mrb[0].mxu0
    %2761 = vdwg.mxu0
    %2762 = vmatprep.subr.bf16.mxu0 0
    %2763 = vmatpush1.bf16.msra.mxu0 %v2489
    %2764 = vmatprep.subr.bf16.mxu0 0
    %2765 = vmatpush1.bf16.msra.mxu0 %v2490
    %2766 = vmatprep.subr.bf16.mxu0 0
    %2767 = vmatpush1.bf16.msra.mxu0 %v2491
    %2768 = vmatprep.subr.bf16.mxu0 0
    %2769 = vmatpush1.bf16.msra.mxu0 %v2492
    %2770 = vmatprep.subr.bf16.mxu0 0
    %2771 = vmatpush1.bf16.msra.mxu0 %v2493
    %2772 = vmatprep.subr.bf16.mxu0 0
    %2773 = vmatpush1.bf16.msra.mxu0 %v2494
    %2774 = vmatprep.subr.bf16.mxu0 0
    %2775 = vmatpush1.bf16.msra.mxu0 %v2495
    %2776 = vmatprep.subr.bf16.mxu0 0
    %2777 = vmatpush1.bf16.msra.mxu0 %v2496
    %2778 = vmatprep.subr.bf16.mxu0 0
    %2779 = vmatpush1.bf16.msra.mxu0 %v2497
    %2780 = vmatprep.subr.bf16.mxu0 0
    %2781 = vmatpush1.bf16.msra.mxu0 %v2498
    %2782 = vmatprep.subr.bf16.mxu0 0
    %2783 = vmatpush1.bf16.msra.mxu0 %v2499
    %2784 = vmatprep.subr.bf16.mxu0 0
    %2785 = vmatpush1.bf16.msra.mxu0 %v2500
    %2786 = vmatprep.subr.bf16.mxu0 0
    %2787 = vmatpush1.bf16.msra.mxu0 %v2501
    %2788 = vmatprep.subr.bf16.mxu0 0
    %2789 = vmatpush1.bf16.msra.mxu0 %v2502
    %2790 = vmatprep.subr.bf16.mxu0 0
    %2791 = vmatpush1.bf16.msra.mxu0 %v2503
    %2792 = vmatprep.subr.bf16.mxu0 0
    %2793 = vmatpush1.bf16.msra.mxu0 %v2504
    %2794 = vmatprep.mubr.bf16.mxu0 %v2636
    %2795 = vmatmul.mubr.bf16.gmra.mrb[0].mxu0 %v2635
    %v2796 = vpop.f32.mrb[0].mxu0
    %v2797 = vadd.f32 %v2700, %v2796
    %v2798 = vpop.f32.mrb[0].mxu0
    %v2799 = vpop.f32.mrb[0].mxu0
    %v2800 = vadd.f32 %v2703, %v2799
    %v2801 = vpop.f32.mrb[0].mxu0
    %2802 = vmatprep.mubr.bf16.mxu0 %v2640
    %2803 = vmatmul.mubr.bf16.gmra.mrb[0].mxu0 %v2639
    %v2804 = vpop.f32.mrb[0].mxu0
    %v2805 = vadd.f32 %v2708, %v2804
    %v2806 = vpop.f32.mrb[0].mxu0
    %v2807 = vpop.f32.mrb[0].mxu0
    %v2808 = vadd.f32 %v2711, %v2807
    %v2809 = vpop.f32.mrb[0].mxu0
    %2810 = vmatprep.mubr.bf16.mxu0 %v2644
    %2811 = vmatmul.mubr.bf16.gmra.mrb[0].mxu0 %v2643
    %v2812 = vpop.f32.mrb[0].mxu0
    %v2813 = vadd.f32 %v2716, %v2812
    %v2814 = vpop.f32.mrb[0].mxu0
    %v2815 = vpop.f32.mrb[0].mxu0
    %v2816 = vadd.f32 %v2719, %v2815
    %v2817 = vpop.f32.mrb[0].mxu0
    %2818 = vmatprep.mubr.bf16.mxu0 %v2648
    %2819 = vmatmul.mubr.bf16.gmra.mrb[0].mxu0 %v2647
    %v2820 = vpop.f32.mrb[0].mxu0
    %v2821 = vadd.f32 %v2724, %v2820
    %v2822 = vpop.f32.mrb[0].mxu0
    %v2823 = vpop.f32.mrb[0].mxu0
    %v2824 = vadd.f32 %v2727, %v2823
    %v2825 = vpop.f32.mrb[0].mxu0
    %2826 = vmatprep.mubr.bf16.mxu0 %v2652
    %2827 = vmatmul.mubr.bf16.gmra.mrb[0].mxu0 %v2651
    %v2828 = vpop.f32.mrb[0].mxu0
    %v2829 = vadd.f32 %v2732, %v2828
    %v2830 = vpop.f32.mrb[0].mxu0
    %v2831 = vpop.f32.mrb[0].mxu0
    %v2832 = vadd.f32 %v2735, %v2831
    %v2833 = vpop.f32.mrb[0].mxu0
    %2834 = vmatprep.mubr.bf16.mxu0 %v2656
    %2835 = vmatmul.mubr.bf16.gmra.mrb[0].mxu0 %v2655
    %v2836 = vpop.f32.mrb[0].mxu0
    %v2837 = vadd.f32 %v2740, %v2836
    %v2838 = vpop.f32.mrb[0].mxu0
    %v2839 = vpop.f32.mrb[0].mxu0
    %v2840 = vadd.f32 %v2743, %v2839
    %v2841 = vpop.f32.mrb[0].mxu0
    %2842 = vmatprep.mubr.bf16.mxu0 %v2660
    %2843 = vmatmul.mubr.bf16.gmra.mrb[0].mxu0 %v2659
    %v2844 = vpop.f32.mrb[0].mxu0
    %v2845 = vadd.f32 %v2748, %v2844
    %v2846 = vpop.f32.mrb[0].mxu0
    %v2847 = vpop.f32.mrb[0].mxu0
    %v2848 = vadd.f32 %v2751, %v2847
    %v2849 = vpop.f32.mrb[0].mxu0
    %2850 = vmatprep.mubr.bf16.mxu0 %v2664
    %2851 = vmatmul.mubr.bf16.gmra.mrb[0].mxu0 %v2663
    %v2852 = vpop.f32.mrb[0].mxu0
    %v2853 = vadd.f32 %v2756, %v2852
    %v2854 = vpop.f32.mrb[0].mxu0
    %v2855 = vpop.f32.mrb[0].mxu0
    %v2856 = vadd.f32 %v2759, %v2855
    %v2857 = vpop.f32.mrb[0].mxu0
    %2858 = vdwg.mxu0
    %v2859 = vsub.f32 %v2617, %v2797
    %v2860 = vsub.f32 %v2618, %v2800
    %v2861 = vsub.f32 %v2619, %v2805
    %v2862 = vsub.f32 %v2620, %v2808
    %v2863 = vsub.f32 %v2621, %v2813
    %v2864 = vsub.f32 %v2622, %v2816
    %v2865 = vsub.f32 %v2623, %v2821
    %v2866 = vsub.f32 %v2624, %v2824
    %v2867 = vsub.f32 %v2625, %v2829
    %v2868 = vsub.f32 %v2626, %v2832
    %v2869 = vsub.f32 %v2627, %v2837
    %v2870 = vsub.f32 %v2628, %v2840
    %v2871 = vsub.f32 %v2629, %v2845
    %v2872 = vsub.f32 %v2630, %v2848
    %v2873 = vsub.f32 %v2631, %v2853
    %v2874 = vsub.f32 %v2632, %v2856
    %v2875 = vpack.c.bf16 %v2285, %v2281
    %v2876 = vpack.c.bf16 %v2286, %v2282
    %v2877 = vpack.c.bf16 %v2287, %v2283
    %v2878 = vpack.c.bf16 %v2288, %v2284
    %v2879 = vpack.c.bf16 %v2293, %v2289
    %v2880 = vpack.c.bf16 %v2294, %v2290
    %v2881 = vpack.c.bf16 %v2295, %v2291
    %v2882 = vpack.c.bf16 %v2296, %v2292
    %v2883 = vpack.c.bf16 %v2301, %v2297
    %v2884 = vpack.c.bf16 %v2302, %v2298
    %v2885 = vpack.c.bf16 %v2303, %v2299
    %v2886 = vpack.c.bf16 %v2304, %v2300
    %v2887 = vpack.c.bf16 %v2309, %v2305
    %v2888 = vpack.c.bf16 %v2310, %v2306
    %v2889 = vpack.c.bf16 %v2311, %v2307
    %v2890 = vpack.c.bf16 %v2312, %v2308
    %v2891 = vpack.c.bf16 %v2317, %v2313
    %v2892 = vpack.c.bf16 %v2318, %v2314
    %v2893 = vpack.c.bf16 %v2319, %v2315
    %v2894 = vpack.c.bf16 %v2320, %v2316
    %v2895 = vpack.c.bf16 %v2325, %v2321
    %v2896 = vpack.c.bf16 %v2326, %v2322
    %v2897 = vpack.c.bf16 %v2327, %v2323
    %v2898 = vpack.c.bf16 %v2328, %v2324
    %v2899 = vpack.c.bf16 %v2333, %v2329
    %v2900 = vpack.c.bf16 %v2334, %v2330
    %v2901 = vpack.c.bf16 %v2335, %v2331
    %v2902 = vpack.c.bf16 %v2336, %v2332
    %v2903 = vpack.c.bf16 %v2341, %v2337
    %v2904 = vpack.c.bf16 %v2342, %v2338
    %v2905 = vpack.c.bf16 %v2343, %v2339
    %v2906 = vpack.c.bf16 %v2344, %v2340
    %2907 = vmatprep.subr.bf16.mxu0 0
    %2908 = vmatpush1.bf16.msra.mxu0 %v2505
    %2909 = vmatprep.subr.bf16.mxu0 0
    %2910 = vmatpush1.bf16.msra.mxu0 %v2506
    %2911 = vmatprep.subr.bf16.mxu0 0
    %2912 = vmatpush1.bf16.msra.mxu0 %v2507
    %2913 = vmatprep.subr.bf16.mxu0 0
    %2914 = vmatpush1.bf16.msra.mxu0 %v2508
    %2915 = vmatprep.subr.bf16.mxu0 0
    %2916 = vmatpush1.bf16.msra.mxu0 %v2509
    %2917 = vmatprep.subr.bf16.mxu0 0
    %2918 = vmatpush1.bf16.msra.mxu0 %v2510
    %2919 = vmatprep.subr.bf16.mxu0 0
    %2920 = vmatpush1.bf16.msra.mxu0 %v2511
    %2921 = vmatprep.subr.bf16.mxu0 0
    %2922 = vmatpush1.bf16.msra.mxu0 %v2512
    %2923 = vmatprep.subr.bf16.mxu0 0
    %2924 = vmatpush1.bf16.msra.mxu0 %v2513
    %2925 = vmatprep.subr.bf16.mxu0 0
    %2926 = vmatpush1.bf16.msra.mxu0 %v2514
    %2927 = vmatprep.subr.bf16.mxu0 0
    %2928 = vmatpush1.bf16.msra.mxu0 %v2515
    %2929 = vmatprep.subr.bf16.mxu0 0
    %2930 = vmatpush1.bf16.msra.mxu0 %v2516
    %2931 = vmatprep.subr.bf16.mxu0 0
    %2932 = vmatpush1.bf16.msra.mxu0 %v2517
    %2933 = vmatprep.subr.bf16.mxu0 0
    %2934 = vmatpush1.bf16.msra.mxu0 %v2518
    %2935 = vmatprep.subr.bf16.mxu0 0
    %2936 = vmatpush1.bf16.msra.mxu0 %v2519
    %2937 = vmatprep.subr.bf16.mxu0 0
    %2938 = vmatpush1.bf16.msra.mxu0 %v2520
    %2939 = vmatprep.mubr.bf16.mxu0 %v2876
    %2940 = vmatmul.mubr.bf16.gmra.mrb[0].mxu0 %v2875
    %v2941 = vpop.f32.mrb[0].mxu0
    %v2942 = vadd.f32 0.0, %v2941
    %v2943 = vpop.f32.mrb[0].mxu0
    %v2944 = vpop.f32.mrb[0].mxu0
    %v2945 = vadd.f32 0.0, %v2944
    %v2946 = vpop.f32.mrb[0].mxu0
    %2947 = vmatprep.mubr.bf16.mxu0 %v2880
    %2948 = vmatmul.mubr.bf16.gmra.mrb[0].mxu0 %v2879
    %v2949 = vpop.f32.mrb[0].mxu0
    %v2950 = vadd.f32 0.0, %v2949
    %v2951 = vpop.f32.mrb[0].mxu0
    %v2952 = vpop.f32.mrb[0].mxu0
    %v2953 = vadd.f32 0.0, %v2952
    %v2954 = vpop.f32.mrb[0].mxu0
    %2955 = vmatprep.mubr.bf16.mxu0 %v2884
    %2956 = vmatmul.mubr.bf16.gmra.mrb[0].mxu0 %v2883
    %v2957 = vpop.f32.mrb[0].mxu0
    %v2958 = vadd.f32 0.0, %v2957
    %v2959 = vpop.f32.mrb[0].mxu0
    %v2960 = vpop.f32.mrb[0].mxu0
    %v2961 = vadd.f32 0.0, %v2960
    %v2962 = vpop.f32.mrb[0].mxu0
    %2963 = vmatprep.mubr.bf16.mxu0 %v2888
    %2964 = vmatmul.mubr.bf16.gmra.mrb[0].mxu0 %v2887
    %v2965 = vpop.f32.mrb[0].mxu0
    %v2966 = vadd.f32 0.0, %v2965
    %v2967 = vpop.f32.mrb[0].mxu0
    %v2968 = vpop.f32.mrb[0].mxu0
    %v2969 = vadd.f32 0.0, %v2968
    %v2970 = vpop.f32.mrb[0].mxu0
    %2971 = vmatprep.mubr.bf16.mxu0 %v2892
    %2972 = vmatmul.mubr.bf16.gmra.mrb[0].mxu0 %v2891
    %v2973 = vpop.f32.mrb[0].mxu0
    %v2974 = vadd.f32 0.0, %v2973
    %v2975 = vpop.f32.mrb[0].mxu0
    %v2976 = vpop.f32.mrb[0].mxu0
    %v2977 = vadd.f32 0.0, %v2976
    %v2978 = vpop.f32.mrb[0].mxu0
    %2979 = vmatprep.mubr.bf16.mxu0 %v2896
    %2980 = vmatmul.mubr.bf16.gmra.mrb[0].mxu0 %v2895
    %v2981 = vpop.f32.mrb[0].mxu0
    %v2982 = vadd.f32 0.0, %v2981
    %v2983 = vpop.f32.mrb[0].mxu0
    %v2984 = vpop.f32.mrb[0].mxu0
    %v2985 = vadd.f32 0.0, %v2984
    %v2986 = vpop.f32.mrb[0].mxu0
    %2987 = vmatprep.mubr.bf16.mxu0 %v2900
    %2988 = vmatmul.mubr.bf16.gmra.mrb[0].mxu0 %v2899
    %v2989 = vpop.f32.mrb[0].mxu0
    %v2990 = vadd.f32 0.0, %v2989
    %v2991 = vpop.f32.mrb[0].mxu0
    %v2992 = vpop.f32.mrb[0].mxu0
    %v2993 = vadd.f32 0.0, %v2992
    %v2994 = vpop.f32.mrb[0].mxu0
    %2995 = vmatprep.mubr.bf16.mxu0 %v2904
    %2996 = vmatmul.mubr.bf16.gmra.mrb[0].mxu0 %v2903
    %v2997 = vpop.f32.mrb[0].mxu0
    %v2998 = vadd.f32 0.0, %v2997
    %v2999 = vpop.f32.mrb[0].mxu0
    %v3000 = vpop.f32.mrb[0].mxu0
    %v3001 = vadd.f32 0.0, %v3000
    %v3002 = vpop.f32.mrb[0].mxu0
    %3003 = vdwg.mxu0
    %3004 = vmatprep.subr.bf16.mxu0 0
    %3005 = vmatpush1.bf16.msra.mxu0 %v2521
    %3006 = vmatprep.subr.bf16.mxu0 0
    %3007 = vmatpush1.bf16.msra.mxu0 %v2522
    %3008 = vmatprep.subr.bf16.mxu0 0
    %3009 = vmatpush1.bf16.msra.mxu0 %v2523
    %3010 = vmatprep.subr.bf16.mxu0 0
    %3011 = vmatpush1.bf16.msra.mxu0 %v2524
    %3012 = vmatprep.subr.bf16.mxu0 0
    %3013 = vmatpush1.bf16.msra.mxu0 %v2525
    %3014 = vmatprep.subr.bf16.mxu0 0
    %3015 = vmatpush1.bf16.msra.mxu0 %v2526
    %3016 = vmatprep.subr.bf16.mxu0 0
    %3017 = vmatpush1.bf16.msra.mxu0 %v2527
    %3018 = vmatprep.subr.bf16.mxu0 0
    %3019 = vmatpush1.bf16.msra.mxu0 %v2528
    %3020 = vmatprep.subr.bf16.mxu0 0
    %3021 = vmatpush1.bf16.msra.mxu0 %v2529
    %3022 = vmatprep.subr.bf16.mxu0 0
    %3023 = vmatpush1.bf16.msra.mxu0 %v2530
    %3024 = vmatprep.subr.bf16.mxu0 0
    %3025 = vmatpush1.bf16.msra.mxu0 %v2531
    %3026 = vmatprep.subr.bf16.mxu0 0
    %3027 = vmatpush1.bf16.msra.mxu0 %v2532
    %3028 = vmatprep.subr.bf16.mxu0 0
    %3029 = vmatpush1.bf16.msra.mxu0 %v2533
    %3030 = vmatprep.subr.bf16.mxu0 0
    %3031 = vmatpush1.bf16.msra.mxu0 %v2534
    %3032 = vmatprep.subr.bf16.mxu0 0
    %3033 = vmatpush1.bf16.msra.mxu0 %v2535
    %3034 = vmatprep.subr.bf16.mxu0 0
    %3035 = vmatpush1.bf16.msra.mxu0 %v2536
    %3036 = vmatprep.mubr.bf16.mxu0 %v2878
    %3037 = vmatmul.mubr.bf16.gmra.mrb[0].mxu0 %v2877
    %v3038 = vpop.f32.mrb[0].mxu0
    %v3039 = vadd.f32 %v2942, %v3038
    %v3040 = vpop.f32.mrb[0].mxu0
    %v3041 = vpop.f32.mrb[0].mxu0
    %v3042 = vadd.f32 %v2945, %v3041
    %v3043 = vpop.f32.mrb[0].mxu0
    %3044 = vmatprep.mubr.bf16.mxu0 %v2882
    %3045 = vmatmul.mubr.bf16.gmra.mrb[0].mxu0 %v2881
    %v3046 = vpop.f32.mrb[0].mxu0
    %v3047 = vadd.f32 %v2950, %v3046
    %v3048 = vpop.f32.mrb[0].mxu0
    %v3049 = vpop.f32.mrb[0].mxu0
    %v3050 = vadd.f32 %v2953, %v3049
    %v3051 = vpop.f32.mrb[0].mxu0
    %3052 = vmatprep.mubr.bf16.mxu0 %v2886
    %3053 = vmatmul.mubr.bf16.gmra.mrb[0].mxu0 %v2885
    %v3054 = vpop.f32.mrb[0].mxu0
    %v3055 = vadd.f32 %v2958, %v3054
    %v3056 = vpop.f32.mrb[0].mxu0
    %v3057 = vpop.f32.mrb[0].mxu0
    %v3058 = vadd.f32 %v2961, %v3057
    %v3059 = vpop.f32.mrb[0].mxu0
    %3060 = vmatprep.mubr.bf16.mxu0 %v2890
    %3061 = vmatmul.mubr.bf16.gmra.mrb[0].mxu0 %v2889
    %v3062 = vpop.f32.mrb[0].mxu0
    %v3063 = vadd.f32 %v2966, %v3062
    %v3064 = vpop.f32.mrb[0].mxu0
    %v3065 = vpop.f32.mrb[0].mxu0
    %v3066 = vadd.f32 %v2969, %v3065
    %v3067 = vpop.f32.mrb[0].mxu0
    %3068 = vmatprep.mubr.bf16.mxu0 %v2894
    %3069 = vmatmul.mubr.bf16.gmra.mrb[0].mxu0 %v2893
    %v3070 = vpop.f32.mrb[0].mxu0
    %v3071 = vadd.f32 %v2974, %v3070
    %v3072 = vpop.f32.mrb[0].mxu0
    %v3073 = vpop.f32.mrb[0].mxu0
    %v3074 = vadd.f32 %v2977, %v3073
    %v3075 = vpop.f32.mrb[0].mxu0
    %3076 = vmatprep.mubr.bf16.mxu0 %v2898
    %3077 = vmatmul.mubr.bf16.gmra.mrb[0].mxu0 %v2897
    %v3078 = vpop.f32.mrb[0].mxu0
    %v3079 = vadd.f32 %v2982, %v3078
    %v3080 = vpop.f32.mrb[0].mxu0
    %v3081 = vpop.f32.mrb[0].mxu0
    %v3082 = vadd.f32 %v2985, %v3081
    %v3083 = vpop.f32.mrb[0].mxu0
    %3084 = vmatprep.mubr.bf16.mxu0 %v2902
    %3085 = vmatmul.mubr.bf16.gmra.mrb[0].mxu0 %v2901
    %v3086 = vpop.f32.mrb[0].mxu0
    %v3087 = vadd.f32 %v2990, %v3086
    %v3088 = vpop.f32.mrb[0].mxu0
    %v3089 = vpop.f32.mrb[0].mxu0
    %v3090 = vadd.f32 %v2993, %v3089
    %v3091 = vpop.f32.mrb[0].mxu0
    %3092 = vmatprep.mubr.bf16.mxu0 %v2906
    %3093 = vmatmul.mubr.bf16.gmra.mrb[0].mxu0 %v2905
    %v3094 = vpop.f32.mrb[0].mxu0
    %v3095 = vadd.f32 %v2998, %v3094
    %v3096 = vpop.f32.mrb[0].mxu0
    %v3097 = vpop.f32.mrb[0].mxu0
    %v3098 = vadd.f32 %v3001, %v3097
    %v3099 = vpop.f32.mrb[0].mxu0
    %3100 = vdwg.mxu0
    %v3101 = vld [vmem:[#allocation10] sm:$0xff]
    %v3102 = vld [vmem:[#allocation10 + $0x8] sm:$0xff]
    %v3103 = vld [vmem:[#allocation10 + $0x10] sm:$0xff]
    %v3104 = vld [vmem:[#allocation10 + $0x18] sm:$0xff]
    %v3105 = vld [vmem:[#allocation10 + $0x20] sm:$0xff]
    %v3106 = vld [vmem:[#allocation10 + $0x28] sm:$0xff]
    %v3107 = vld [vmem:[#allocation10 + $0x30] sm:$0xff]
    %v3108 = vld [vmem:[#allocation10 + $0x38] sm:$0xff]
    %v3109 = vld [vmem:[#allocation10 + $0x40] sm:$0xff]
    %v3110 = vld [vmem:[#allocation10 + $0x48] sm:$0xff]
    %v3111 = vld [vmem:[#allocation10 + $0x50] sm:$0xff]
    %v3112 = vld [vmem:[#allocation10 + $0x58] sm:$0xff]
    %v3113 = vld [vmem:[#allocation10 + $0x60] sm:$0xff]
    %v3114 = vld [vmem:[#allocation10 + $0x68] sm:$0xff]
    %v3115 = vld [vmem:[#allocation10 + $0x70] sm:$0xff]
    %v3116 = vld [vmem:[#allocation10 + $0x78] sm:$0xff]
    %v3117 = vsub.f32 %v2859, %v3039
    %v3118 = vsub.f32 %v2860, %v3042
    %v3119 = vsub.f32 %v2861, %v3047
    %v3120 = vsub.f32 %v2862, %v3050
    %v3121 = vsub.f32 %v2863, %v3055
    %v3122 = vsub.f32 %v2864, %v3058
    %v3123 = vsub.f32 %v2865, %v3063
    %v3124 = vsub.f32 %v2866, %v3066
    %v3125 = vsub.f32 %v2867, %v3071
    %v3126 = vsub.f32 %v2868, %v3074
    %v3127 = vsub.f32 %v2869, %v3079
    %v3128 = vsub.f32 %v2870, %v3082
    %v3129 = vsub.f32 %v2871, %v3087
    %v3130 = vsub.f32 %v2872, %v3090
    %v3131 = vsub.f32 %v2873, %v3095
    %v3132 = vsub.f32 %v2874, %v3098
    %v3133 = vadd.f32 %v3101, %v3117
    %v3134 = vadd.f32 %v3102, %v3118
    %v3135 = vadd.f32 %v3103, %v3119
    %v3136 = vadd.f32 %v3104, %v3120
    %v3137 = vadd.f32 %v3105, %v3121
    %v3138 = vadd.f32 %v3106, %v3122
    %v3139 = vadd.f32 %v3107, %v3123
    %v3140 = vadd.f32 %v3108, %v3124
    %v3141 = vadd.f32 %v3109, %v3125
    %v3142 = vadd.f32 %v3110, %v3126
    %v3143 = vadd.f32 %v3111, %v3127
    %v3144 = vadd.f32 %v3112, %v3128
    %v3145 = vadd.f32 %v3113, %v3129
    %v3146 = vadd.f32 %v3114, %v3130
    %v3147 = vadd.f32 %v3115, %v3131
    %v3148 = vadd.f32 %v3116, %v3132
    %3149 = vst [vmem:[#allocation10] sm:$0xff] %v3133
    %3150 = vst [vmem:[#allocation10 + $0x8] sm:$0xff] %v3134
    %3151 = vst [vmem:[#allocation10 + $0x10] sm:$0xff] %v3135
    %3152 = vst [vmem:[#allocation10 + $0x18] sm:$0xff] %v3136
    %3153 = vst [vmem:[#allocation10 + $0x20] sm:$0xff] %v3137
    %3154 = vst [vmem:[#allocation10 + $0x28] sm:$0xff] %v3138
    %3155 = vst [vmem:[#allocation10 + $0x30] sm:$0xff] %v3139
    %3156 = vst [vmem:[#allocation10 + $0x38] sm:$0xff] %v3140
    %3157 = vst [vmem:[#allocation10 + $0x40] sm:$0xff] %v3141
    %3158 = vst [vmem:[#allocation10 + $0x48] sm:$0xff] %v3142
    %3159 = vst [vmem:[#allocation10 + $0x50] sm:$0xff] %v3143
    %3160 = vst [vmem:[#allocation10 + $0x58] sm:$0xff] %v3144
    %3161 = vst [vmem:[#allocation10 + $0x60] sm:$0xff] %v3145
    %3162 = vst [vmem:[#allocation10 + $0x68] sm:$0xff] %v3146
    %3163 = vst [vmem:[#allocation10 + $0x70] sm:$0xff] %v3147
    %3164 = vst [vmem:[#allocation10 + $0x78] sm:$0xff] %v3148
    %v3165 = vld [vmem:[#allocation3] sm:$0xff]
    %v3166 = vld [vmem:[#allocation3 + $0x8] sm:$0xff]
    %v3167 = vld [vmem:[#allocation3 + $0x10] sm:$0xff]
    %v3168 = vld [vmem:[#allocation3 + $0x18] sm:$0xff]
    %v3169 = vld [vmem:[#allocation3 + $0x20] sm:$0xff]
    %v3170 = vld [vmem:[#allocation3 + $0x28] sm:$0xff]
    %v3171 = vld [vmem:[#allocation3 + $0x30] sm:$0xff]
    %v3172 = vld [vmem:[#allocation3 + $0x38] sm:$0xff]
    %v3173 = vld [vmem:[#allocation3 + $0x40] sm:$0xff]
    %v3174 = vld [vmem:[#allocation3 + $0x48] sm:$0xff]
    %v3175 = vld [vmem:[#allocation3 + $0x50] sm:$0xff]
    %v3176 = vld [vmem:[#allocation3 + $0x58] sm:$0xff]
    %v3177 = vld [vmem:[#allocation3 + $0x60] sm:$0xff]
    %v3178 = vld [vmem:[#allocation3 + $0x68] sm:$0xff]
    %v3179 = vld [vmem:[#allocation3 + $0x70] sm:$0xff]
    %v3180 = vld [vmem:[#allocation3 + $0x78] sm:$0xff]
    %v3181 = vmul.f32 %v2281, %v2153
    %v3182 = vmul.f32 %v2282, %v2154
    %v3183 = vmul.f32 %v2283, %v2155
    %v3184 = vmul.f32 %v2284, %v2156
    %v3185 = vmul.f32 %v2285, %v2157
    %v3186 = vmul.f32 %v2286, %v2158
    %v3187 = vmul.f32 %v2287, %v2159
    %v3188 = vmul.f32 %v2288, %v2160
    %v3189 = vmul.f32 %v2289, %v2161
    %v3190 = vmul.f32 %v2290, %v2162
    %v3191 = vmul.f32 %v2291, %v2163
    %v3192 = vmul.f32 %v2292, %v2164
    %v3193 = vmul.f32 %v2293, %v2165
    %v3194 = vmul.f32 %v2294, %v2166
    %v3195 = vmul.f32 %v2295, %v2167
    %v3196 = vmul.f32 %v2296, %v2168
    %v3197 = vmul.f32 %v2297, %v2169
    %v3198 = vmul.f32 %v2298, %v2170
    %v3199 = vmul.f32 %v2299, %v2171
    %v3200 = vmul.f32 %v2300, %v2172
    %v3201 = vmul.f32 %v2301, %v2173
    %v3202 = vmul.f32 %v2302, %v2174
    %v3203 = vmul.f32 %v2303, %v2175
    %v3204 = vmul.f32 %v2304, %v2176
    %v3205 = vmul.f32 %v2305, %v2177
    %v3206 = vmul.f32 %v2306, %v2178
    %v3207 = vmul.f32 %v2307, %v2179
    %v3208 = vmul.f32 %v2308, %v2180
    %v3209 = vmul.f32 %v2309, %v2181
    %v3210 = vmul.f32 %v2310, %v2182
    %v3211 = vmul.f32 %v2311, %v2183
    %v3212 = vmul.f32 %v2312, %v2184
    %v3213 = vmul.f32 %v2313, %v2185
    %v3214 = vmul.f32 %v2314, %v2186
    %v3215 = vmul.f32 %v2315, %v2187
    %v3216 = vmul.f32 %v2316, %v2188
    %v3217 = vmul.f32 %v2317, %v2189
    %v3218 = vmul.f32 %v2318, %v2190
    %v3219 = vmul.f32 %v2319, %v2191
    %v3220 = vmul.f32 %v2320, %v2192
    %v3221 = vmul.f32 %v2321, %v2193
    %v3222 = vmul.f32 %v2322, %v2194
    %v3223 = vmul.f32 %v2323, %v2195
    %v3224 = vmul.f32 %v2324, %v2196
    %v3225 = vmul.f32 %v2325, %v2197
    %v3226 = vmul.f32 %v2326, %v2198
    %v3227 = vmul.f32 %v2327, %v2199
    %v3228 = vmul.f32 %v2328, %v2200
    %v3229 = vmul.f32 %v2329, %v2201
    %v3230 = vmul.f32 %v2330, %v2202
    %v3231 = vmul.f32 %v2331, %v2203
    %v3232 = vmul.f32 %v2332, %v2204
    %v3233 = vmul.f32 %v2333, %v2205
    %v3234 = vmul.f32 %v2334, %v2206
    %v3235 = vmul.f32 %v2335, %v2207
    %v3236 = vmul.f32 %v2336, %v2208
    %v3237 = vmul.f32 %v2337, %v2209
    %v3238 = vmul.f32 %v2338, %v2210
    %v3239 = vmul.f32 %v2339, %v2211
    %v3240 = vmul.f32 %v2340, %v2212
    %v3241 = vmul.f32 %v2341, %v2213
    %v3242 = vmul.f32 %v2342, %v2214
    %v3243 = vmul.f32 %v2343, %v2215
    %v3244 = vmul.f32 %v2344, %v2216
    %v3245 = vadd.f32 %v3181, %v3182
    %v3246 = vadd.f32 %v3245, %v3183
    %v3247 = vadd.f32 %v3246, %v3184
    %3248 = vadd.xlane.f32.xlu0 %v3247
    %v3249 = vpop.xlane.xlu0 %3248
    %v3250 = vadd.f32 %v3185, %v3186
    %v3251 = vadd.f32 %v3250, %v3187
    %v3252 = vadd.f32 %v3251, %v3188
    %3253 = vadd.xlane.f32.xlu0 %v3252
    %v3254 = vpop.xlane.xlu0 %3253
    %v3255 = vadd.f32 %v3189, %v3190
    %v3256 = vadd.f32 %v3255, %v3191
    %v3257 = vadd.f32 %v3256, %v3192
    %3258 = vadd.xlane.f32.xlu0 %v3257
    %v3259 = vpop.xlane.xlu0 %3258
    %v3260 = vadd.f32 %v3193, %v3194
    %v3261 = vadd.f32 %v3260, %v3195
    %v3262 = vadd.f32 %v3261, %v3196
    %3263 = vadd.xlane.f32.xlu0 %v3262
    %v3264 = vpop.xlane.xlu0 %3263
    %v3265 = vadd.f32 %v3197, %v3198
    %v3266 = vadd.f32 %v3265, %v3199
    %v3267 = vadd.f32 %v3266, %v3200
    %3268 = vadd.xlane.f32.xlu0 %v3267
    %v3269 = vpop.xlane.xlu0 %3268
    %v3270 = vadd.f32 %v3201, %v3202
    %v3271 = vadd.f32 %v3270, %v3203
    %v3272 = vadd.f32 %v3271, %v3204
    %3273 = vadd.xlane.f32.xlu0 %v3272
    %v3274 = vpop.xlane.xlu0 %3273
    %v3275 = vadd.f32 %v3205, %v3206
    %v3276 = vadd.f32 %v3275, %v3207
    %v3277 = vadd.f32 %v3276, %v3208
    %3278 = vadd.xlane.f32.xlu0 %v3277
    %v3279 = vpop.xlane.xlu0 %3278
    %v3280 = vadd.f32 %v3209, %v3210
    %v3281 = vadd.f32 %v3280, %v3211
    %v3282 = vadd.f32 %v3281, %v3212
    %3283 = vadd.xlane.f32.xlu0 %v3282
    %v3284 = vpop.xlane.xlu0 %3283
    %v3285 = vadd.f32 %v3213, %v3214
    %v3286 = vadd.f32 %v3285, %v3215
    %v3287 = vadd.f32 %v3286, %v3216
    %3288 = vadd.xlane.f32.xlu0 %v3287
    %v3289 = vpop.xlane.xlu0 %3288
    %v3290 = vadd.f32 %v3217, %v3218
    %v3291 = vadd.f32 %v3290, %v3219
    %v3292 = vadd.f32 %v3291, %v3220
    %3293 = vadd.xlane.f32.xlu0 %v3292
    %v3294 = vpop.xlane.xlu0 %3293
    %v3295 = vadd.f32 %v3221, %v3222
    %v3296 = vadd.f32 %v3295, %v3223
    %v3297 = vadd.f32 %v3296, %v3224
    %3298 = vadd.xlane.f32.xlu0 %v3297
    %v3299 = vpop.xlane.xlu0 %3298
    %v3300 = vadd.f32 %v3225, %v3226
    %v3301 = vadd.f32 %v3300, %v3227
    %v3302 = vadd.f32 %v3301, %v3228
    %3303 = vadd.xlane.f32.xlu0 %v3302
    %v3304 = vpop.xlane.xlu0 %3303
    %v3305 = vadd.f32 %v3229, %v3230
    %v3306 = vadd.f32 %v3305, %v3231
    %v3307 = vadd.f32 %v3306, %v3232
    %3308 = vadd.xlane.f32.xlu0 %v3307
    %v3309 = vpop.xlane.xlu0 %3308
    %v3310 = vadd.f32 %v3233, %v3234
    %v3311 = vadd.f32 %v3310, %v3235
    %v3312 = vadd.f32 %v3311, %v3236
    %3313 = vadd.xlane.f32.xlu0 %v3312
    %v3314 = vpop.xlane.xlu0 %3313
    %v3315 = vadd.f32 %v3237, %v3238
    %v3316 = vadd.f32 %v3315, %v3239
    %v3317 = vadd.f32 %v3316, %v3240
    %3318 = vadd.xlane.f32.xlu0 %v3317
    %v3319 = vpop.xlane.xlu0 %3318
    %v3320 = vadd.f32 %v3241, %v3242
    %v3321 = vadd.f32 %v3320, %v3243
    %v3322 = vadd.f32 %v3321, %v3244
    %3323 = vadd.xlane.f32.xlu0 %v3322
    %v3324 = vpop.xlane.xlu0 %3323
    %v3325 = vadd.f32 %v3165, %v3249
    %v3326 = vadd.f32 %v3166, %v3254
    %v3327 = vadd.f32 %v3167, %v3259
    %v3328 = vadd.f32 %v3168, %v3264
    %v3329 = vadd.f32 %v3169, %v3269
    %v3330 = vadd.f32 %v3170, %v3274
    %v3331 = vadd.f32 %v3171, %v3279
    %v3332 = vadd.f32 %v3172, %v3284
    %v3333 = vadd.f32 %v3173, %v3289
    %v3334 = vadd.f32 %v3174, %v3294
    %v3335 = vadd.f32 %v3175, %v3299
    %v3336 = vadd.f32 %v3176, %v3304
    %v3337 = vadd.f32 %v3177, %v3309
    %v3338 = vadd.f32 %v3178, %v3314
    %v3339 = vadd.f32 %v3179, %v3319
    %v3340 = vadd.f32 %v3180, %v3324
    %vm3341 = vcmask 7168
    %3342 = vst.msk [vmem:[#allocation3] sm:$0xff] %vm3341, %v3325
    %3343 = vst.msk [vmem:[#allocation3 + $0x8] sm:$0xff] %vm3341, %v3326
    %3344 = vst.msk [vmem:[#allocation3 + $0x10] sm:$0xff] %vm3341, %v3327
    %3345 = vst.msk [vmem:[#allocation3 + $0x18] sm:$0xff] %vm3341, %v3328
    %3346 = vst.msk [vmem:[#allocation3 + $0x20] sm:$0xff] %vm3341, %v3329
    %3347 = vst.msk [vmem:[#allocation3 + $0x28] sm:$0xff] %vm3341, %v3330
    %3348 = vst.msk [vmem:[#allocation3 + $0x30] sm:$0xff] %vm3341, %v3331
    %3349 = vst.msk [vmem:[#allocation3 + $0x38] sm:$0xff] %vm3341, %v3332
    %3350 = vst.msk [vmem:[#allocation3 + $0x40] sm:$0xff] %vm3341, %v3333
    %3351 = vst.msk [vmem:[#allocation3 + $0x48] sm:$0xff] %vm3341, %v3334
    %3352 = vst.msk [vmem:[#allocation3 + $0x50] sm:$0xff] %vm3341, %v3335
    %3353 = vst.msk [vmem:[#allocation3 + $0x58] sm:$0xff] %vm3341, %v3336
    %3354 = vst.msk [vmem:[#allocation3 + $0x60] sm:$0xff] %vm3341, %v3337
    %3355 = vst.msk [vmem:[#allocation3 + $0x68] sm:$0xff] %vm3341, %v3338
    %3356 = vst.msk [vmem:[#allocation3 + $0x70] sm:$0xff] %vm3341, %v3339
    %3357 = vst.msk [vmem:[#allocation3 + $0x78] sm:$0xff] %vm3341, %v3340
    // Predicated region
    $region30: #{tpu_custom_call.1} parent=1 // pred_check
      %p3358 = pneg %p85
    $region31: #{tpu_custom_call.1} parent=1 // pred_check_branch
      %3360 = sbr.rel (%p3358) target = $region33
    $region32: #{tpu_custom_call.1} parent=1 // pred_region
      %v3361 = vld [vmem:[#allocation3] sm:$0xff]
      %v3362 = vld [vmem:[#allocation3 + $0x8] sm:$0xff]
      %v3363 = vld [vmem:[#allocation3 + $0x10] sm:$0xff]
      %v3364 = vld [vmem:[#allocation3 + $0x18] sm:$0xff]
      %v3365 = vld [vmem:[#allocation3 + $0x20] sm:$0xff]
      %v3366 = vld [vmem:[#allocation3 + $0x28] sm:$0xff]
      %v3367 = vld [vmem:[#allocation3 + $0x30] sm:$0xff]
      %v3368 = vld [vmem:[#allocation3 + $0x38] sm:$0xff]
      %v3369 = vld [vmem:[#allocation3 + $0x40] sm:$0xff]
      %v3370 = vld [vmem:[#allocation3 + $0x48] sm:$0xff]
      %v3371 = vld [vmem:[#allocation3 + $0x50] sm:$0xff]
      %v3372 = vld [vmem:[#allocation3 + $0x58] sm:$0xff]
      %v3373 = vld [vmem:[#allocation3 + $0x60] sm:$0xff]
      %v3374 = vld [vmem:[#allocation3 + $0x68] sm:$0xff]
      %v3375 = vld [vmem:[#allocation3 + $0x70] sm:$0xff]
      %v3376 = vld [vmem:[#allocation3 + $0x78] sm:$0xff]
      %3377 = vst.msk [vmem:[%s4] sm:$0xff] %vm3341, %v3361
      %3378 = vst.msk [vmem:[%s4 + $0x8] sm:$0xff] %vm3341, %v3362
      %3379 = vst.msk [vmem:[%s4 + $0x10] sm:$0xff] %vm3341, %v3363
      %3380 = vst.msk [vmem:[%s4 + $0x18] sm:$0xff] %vm3341, %v3364
      %3381 = vst.msk [vmem:[%s4 + $0x20] sm:$0xff] %vm3341, %v3365
      %3382 = vst.msk [vmem:[%s4 + $0x28] sm:$0xff] %vm3341, %v3366
      %3383 = vst.msk [vmem:[%s4 + $0x30] sm:$0xff] %vm3341, %v3367
      %3384 = vst.msk [vmem:[%s4 + $0x38] sm:$0xff] %vm3341, %v3368
      %3385 = vst.msk [vmem:[%s4 + $0x40] sm:$0xff] %vm3341, %v3369
      %3386 = vst.msk [vmem:[%s4 + $0x48] sm:$0xff] %vm3341, %v3370
      %3387 = vst.msk [vmem:[%s4 + $0x50] sm:$0xff] %vm3341, %v3371
      %3388 = vst.msk [vmem:[%s4 + $0x58] sm:$0xff] %vm3341, %v3372
      %3389 = vst.msk [vmem:[%s4 + $0x60] sm:$0xff] %vm3341, %v3373
      %3390 = vst.msk [vmem:[%s4 + $0x68] sm:$0xff] %vm3341, %v3374
      %3391 = vst.msk [vmem:[%s4 + $0x70] sm:$0xff] %vm3341, %v3375
      %3392 = vst.msk [vmem:[%s4 + $0x78] sm:$0xff] %vm3341, %v3376
    $region33: #{tpu_custom_call.1} parent=1 // pred_fallthru
      _
    // Predicated region
    $region34: #{tpu_custom_call.1} parent=1 // pred_check
      _
    $region35: #{tpu_custom_call.1} parent=1 // pred_check_branch
      %3394 = sbr.rel (0) target = $region37
    $region36: #{tpu_custom_call.1} parent=1 // pred_region
      %s3396 = ssub.s32 2048, 2048
      %3397 = vsyncadd [#allocation6], %s3396
      %s3398 = sshll.u32 [#allocation10], 4
      %s3399 = int_to_ptr.vmem [resolvable:$true] %s3398
      %3404 = dma.vmem_to_hbm [thread:$0]  %s3399, 2048, %s3, [#allocation6], 128, 128, 8
    $region37: #{tpu_custom_call.1} parent=1 // pred_fallthru
      _
    // Predicated region
    $region38: #{tpu_custom_call.1} parent=1 // pred_check
      _
    $region39: #{tpu_custom_call.1} parent=1 // pred_check_branch
      %3406 = sbr.rel (0) target = $region41
    $region40: #{tpu_custom_call.1} parent=1 // pred_region
      _
    $region41: #{tpu_custom_call.1} parent=1 // pred_fallthru
      _
    // Predicated region
    $region42: #{tpu_custom_call.1} parent=1 // pred_check
      _
    $region43: #{tpu_custom_call.1} parent=1 // pred_check_branch
      %3408 = sbr.rel (0) target = $region45
    $region44: #{tpu_custom_call.1} parent=1 // pred_region
      %3409 = dma.done [#allocation6], 2048
    $region45: #{tpu_custom_call.1} parent=1 // pred_fallthru
      _
    // Predicated region
    $region46: #{tpu_custom_call.1} parent=1 // pred_check
      _
    $region47: #{tpu_custom_call.1} parent=1 // pred_check_branch
      %3411 = sbr.rel (0) target = $region49
    $region48: #{tpu_custom_call.1} parent=1 // pred_region
      _
    $region49: #{tpu_custom_call.1} parent=1 // pred_fallthru
      _
    %3412 = vsyncpa [#allocation5], 1
    %3413 = vsyncpa [#allocation8], 1
    %3414 = vsyncpa [#allocation6], 1

</llo_original>
